<compile_context>
chip_gen: v5e
topology: v5e:2x2
jax: 0.10.0
libtpu: 0.0.40
codegen_flags: <defaults>
</compile_context>

<pallas_src>
import jax
import jax.numpy as jnp
from jax.experimental import pallas as pl
from jax.experimental.pallas import tpu as pltpu

BN_EPS = 1e-5


# ----------------------------------------------------------------------------
# Kernel 1: conv1 -> maxpool(2) -> relu -> conv2(+bias), TB images per grid step
# ----------------------------------------------------------------------------
def _encoder_kernel(xe_ref, xo_ref, b1e_ref, b1o_ref, b2_ref, b2b_ref,
                    act_ref, stat_ref, p1_ref):
    tb = xe_ref.shape[0]

    def lhs(ref, d):
        # (tb, 16, 28) ref slice -> (tb*16, 28); 16 % 8 == 0 keeps the collapse
        # layout-preserving.
        return ref[:, d:d + 16, :].reshape(tb * 16, 28)

    def conv1_rows(taps, band_ref):
        acc = jnp.zeros((tb * 16, 120), jnp.float32)
        for kh, (ref, d) in enumerate(taps):
            acc = acc + jnp.dot(lhs(ref, d), band_ref[kh],
                                preferred_element_type=jnp.float32)
        return acc

    # Even / odd conv1 output rows via the host-side even/odd input-row split
    # (x[2i] -> xe, x[2i+1] -> xo): every tap slice is contiguous.
    even_taps = ((xe_ref, 0), (xo_ref, 0), (xe_ref, 1), (xo_ref, 1), (xe_ref, 2))
    odd_taps = ((xo_ref, 0), (xe_ref, 1), (xo_ref, 1), (xe_ref, 2), (xo_ref, 2))

    # W-pool is folded into the band matrices (even/odd columns), H-pool is the
    # elementwise max of the even/odd row variants; ReLU commutes with max.
    m = jnp.maximum(conv1_rows(even_taps, b1e_ref),
                    conv1_rows(even_taps, b1o_ref))
    m = jnp.maximum(m, jnp.maximum(conv1_rows(odd_taps, b1e_ref),
                                   conv1_rows(odd_taps, b1o_ref)))
    p1 = jnp.maximum(m, 0.0)          # (tb*16, 120); rows 12..15 per image are junk

    # Small VMEM scratch so conv2's shifted tap windows are plain sublane-offset
    # ref loads (rows 12..15 are never read: kh + 7 <= 11).
    for b in range(tb):
        p1_ref[b] = p1[b * 16:(b + 1) * 16, :]

    # conv2 (10->20, k=5, bias): 5 banded matmuls over the kh taps.
    out2 = jnp.zeros((tb * 8, 160), jnp.float32)
    for kh in range(5):
        out2 = out2 + jnp.dot(p1_ref[:, kh:kh + 8, :].reshape(tb * 8, 120),
                              b2_ref[kh], preferred_element_type=jnp.float32)
    out2 = out2 + b2b_ref[...]        # lanes = (w-parity, co, w2)
    act_ref[...] = out2               # (tb*8, 160) pre-BN activation

    # Per-tile BatchNorm2d partial statistics (finalized outside over all tiles).
    stat_ref[0, 0:1, :] = jnp.sum(out2, axis=0, keepdims=True)
    stat_ref[0, 1:2, :] = jnp.sum(out2 * out2, axis=0, keepdims=True)


# ----------------------------------------------------------------------------
# Kernel 2: BN2d(apply) -> maxpool(2) -> relu -> dense1, TB images per grid step
# ----------------------------------------------------------------------------
def _head_kernel(a_ref, bn2_ref, sel_e_ref, sel_o_ref, wd1_ref, bd1_ref, d1_ref):
    tb = d1_ref.shape[0]
    a = a_ref[...]                                        # (tb*8, 160)
    bn = a * bn2_ref[0:1, :] + bn2_ref[1:2, :]            # BatchNorm2d affine
    w = jnp.maximum(bn[:, :80], bn[:, 80:])               # W-pool: parity lane halves

    acc = jnp.zeros((tb, 50), jnp.float32)
    for h2 in range(4):
        ph = jnp.maximum(
            jnp.dot(sel_e_ref[h2], w, preferred_element_type=jnp.float32),
            jnp.dot(sel_o_ref[h2], w, preferred_element_type=jnp.float32))
        ph = jnp.maximum(ph, 0.0)                         # H-pool + ReLU -> (tb, 80)
        acc = acc + jnp.dot(ph, wd1_ref[h2], preferred_element_type=jnp.float32)
    d1_ref[...] = acc + bd1_ref[...]                      # pre-BN1d dense1 output


# ----------------------------------------------------------------------------
# Kernel 3 (tiny tail): BN1d -> relu -> dense2 -> relu, whole batch in one step
# ----------------------------------------------------------------------------
def _tail_kernel(d1_ref, g1_ref, be1_ref, wd2_ref, bd2_ref, o_ref):
    n = d1_ref.shape[0]
    d = d1_ref[...]
    m = jnp.sum(d, axis=0, keepdims=True) / float(n)
    e2 = jnp.sum(d * d, axis=0, keepdims=True) / float(n)
    v = e2 - m * m                                        # biased variance
    y = (d - m) * jax.lax.rsqrt(v + BN_EPS) * g1_ref[...] + be1_ref[...]
    y = jnp.maximum(y, 0.0)
    out = jnp.dot(y, wd2_ref[...], preferred_element_type=jnp.float32) + bd2_ref[...]
    o_ref[...] = jnp.maximum(out, 0.0)


# ----------------------------------------------------------------------------
# Host-side one-time weight packing
# ----------------------------------------------------------------------------
def _pick_tile(n):
    # Keeps every block either 8-row aligned or equal to the full array dims.
    return 8 if n % 8 == 0 else n


def prepare_params(params, tb):
    f32 = jnp.float32

    # conv1 band matrices with the W-pool folded in: output lanes = (c, w1),
    # c-major, where the true output column is w_out = 2*w1 + parity.
    w1 = params["w_conv1"].astype(f32).reshape(10, 5, 5)          # (c, kh, kw)
    w1_idx = jnp.arange(12)
    bands = {0: [], 1: []}
    for s in (0, 1):
        for kh in range(5):
            bk = jnp.zeros((28, 10, 12), f32)
            for kw in range(5):
                rows = 2 * w1_idx + s + kw                        # w_in per w1
                e = jnp.zeros((28, 12), f32).at[rows, w1_idx].set(1.0)
                bk = bk + e[:, None, :] * w1[:, kh, kw][None, :, None]
            bands[s].append(bk.reshape(28, 120))
    B1e = jnp.stack(bands[0])                                     # (5, 28, 120)
    B1o = jnp.stack(bands[1])

    # conv2 band matrices: input lanes (ci, w1); output lanes (w-parity, co, w2)
    # with true output column w' = 2*w2 + parity.
    w2 = params["w_conv2"].astype(f32)                            # (co, ci, kh, kw)
    w2_idx = jnp.arange(4)
    wpar_idx = jnp.arange(2)
    b2m = []
    for kh in range(5):
        bk = jnp.zeros((10, 12, 2, 20, 4), f32)                   # (ci,win,par,co,w2)
        for kw in range(5):
            rows = 2 * w2_idx[None, :] + wpar_idx[:, None] + kw   # (2, 4), <= 11
            e = jnp.zeros((12, 2, 4), f32).at[
                rows, wpar_idx[:, None], w2_idx[None, :]].set(1.0)
            wk = jnp.transpose(w2[:, :, kh, kw])                  # (ci, co)
            bk = bk + e[None, :, :, None, :] * wk[:, None, None, :, None]
        b2m.append(bk.reshape(120, 160))
    B2 = jnp.stack(b2m)                                           # (5, 120, 160)
    b2row = jnp.tile(jnp.repeat(params["b_conv2"].astype(f32), 4), 2).reshape(1, 160)

    # Head H-pool selectors: fixed (tb, tb*8) matrices, independent of batch size.
    barange = jnp.arange(tb)
    sel_e, sel_o = [], []
    for h2 in range(4):
        sel_e.append(jnp.zeros((tb, tb * 8), f32)
                     .at[barange, barange * 8 + 2 * h2].set(1.0))
        sel_o.append(jnp.zeros((tb, tb * 8), f32)
                     .at[barange, barange * 8 + 2 * h2 + 1].set(1.0))
    sel_e = jnp.stack(sel_e)                                      # (4, tb, tb*8)
    sel_o = jnp.stack(sel_o)

    # dense1 weights regrouped to lanes (co, w2), one (80, 50) block per h2,
    # matching torch's x.view(-1, 320) ordering (c*16 + h*4 + w).
    wd1 = params["w_d1"].astype(f32).reshape(50, 20, 4, 4)        # (j, c, h, w)
    Wd1 = jnp.transpose(wd1, (2, 1, 3, 0)).reshape(4, 80, 50)

    return {
        "B1e": B1e, "B1o": B1o, "B2": B2, "b2row": b2row,
        "bn2_gamma": params["bn2_gamma"].astype(f32),
        "bn2_beta": params["bn2_beta"].astype(f32),
        "sel_e": sel_e, "sel_o": sel_o,
        "Wd1": Wd1, "bd1": params["b_d1"].astype(f32).reshape(1, 50),
        "g1": params["bn1_gamma"].astype(f32).reshape(1, 50),
        "be1": params["bn1_beta"].astype(f32).reshape(1, 50),
        "Wd2": params["w_d2"].astype(f32).T,                      # (50, 10)
        "bd2": params["b_d2"].astype(f32).reshape(1, 10),
    }


def _full(shape):
    nd = len(shape)
    return pl.BlockSpec(shape, lambda i, _nd=nd: (0,) * _nd)


def _bn2_affine(stats, gamma, beta, n_images):
    # Tiny XLA finalize of the per-tile BatchNorm2d sums (a few hundred floats).
    s = jnp.sum(stats[:, 0, :], axis=0)
    q = jnp.sum(stats[:, 1, :], axis=0)
    s_c = s.reshape(2, 20, 4).sum(axis=(0, 2))                    # per-channel
    q_c = q.reshape(2, 20, 4).sum(axis=(0, 2))
    cnt = n_images * 64.0
    mean = s_c / cnt
    var = q_c / cnt - mean * mean                                 # biased variance
    scale_c = gamma * jax.lax.rsqrt(var + BN_EPS)
    shift_c = beta - mean * scale_c
    scale_l = jnp.tile(jnp.repeat(scale_c, 4), 2)                 # lane layout (par,co,w2)
    shift_l = jnp.tile(jnp.repeat(shift_c, 4), 2)
    return jnp.stack([scale_l, shift_l], axis=0)                  # (2, 160)


# ----------------------------------------------------------------------------
# Forward: three batch-tiled pallas_calls + tiny XLA glue for BN2d statistics
# ----------------------------------------------------------------------------
def forward(prep, x_nchw):
    n = x_nchw.shape[0]
    tb = prep["sel_e"].shape[1]                    # static tile size baked in prep
    if n % tb:
        raise ValueError("batch must be a multiple of the prepared tile size")
    steps = n // tb

    x = x_nchw.astype(jnp.float32).reshape(n, 28, 28)
    pad = jnp.zeros((n, 10, 28), jnp.float32)      # pad 14 -> 24 rows (junk window)
    xe = jnp.concatenate([x[:, 0::2, :], pad], axis=1)            # (n, 24, 28)
    xo = jnp.concatenate([x[:, 1::2, :], pad], axis=1)

    act, stats = pl.pallas_call(
        _encoder_kernel,
        out_shape=(jax.ShapeDtypeStruct((n * 8, 160), jnp.float32),
                   jax.ShapeDtypeStruct((steps, 2, 160), jnp.float32)),
        grid=(steps,),
        in_specs=[
            pl.BlockSpec((tb, 24, 28), lambda i: (i, 0, 0)),
            pl.BlockSpec((tb, 24, 28), lambda i: (i, 0, 0)),
            _full((5, 28, 120)),
            _full((5, 28, 120)),
            _full((5, 120, 160)),
            _full((1, 160)),
        ],
        out_specs=(pl.BlockSpec((tb * 8, 160), lambda i: (i, 0)),
                   pl.BlockSpec((1, 2, 160), lambda i: (i, 0, 0))),
        scratch_shapes=[pltpu.VMEM((tb, 16, 120), jnp.float32)],
        compiler_params=pltpu.CompilerParams(
            dimension_semantics=("parallel",),
            vmem_limit_bytes=32 * 1024 * 1024,
        ),
    )(xe, xo, prep["B1e"], prep["B1o"], prep["B2"], prep["b2row"])

    bn2 = _bn2_affine(stats, prep["bn2_gamma"], prep["bn2_beta"], n)

    d1 = pl.pallas_call(
        _head_kernel,
        out_shape=jax.ShapeDtypeStruct((n, 50), jnp.float32),
        grid=(steps,),
        in_specs=[
            pl.BlockSpec((tb * 8, 160), lambda i: (i, 0)),
            _full((2, 160)),
            _full((4, tb, tb * 8)),
            _full((4, tb, tb * 8)),
            _full((4, 80, 50)),
            _full((1, 50)),
        ],
        out_specs=pl.BlockSpec((tb, 50), lambda i: (i, 0)),
        compiler_params=pltpu.CompilerParams(
            dimension_semantics=("parallel",),
            vmem_limit_bytes=32 * 1024 * 1024,
        ),
    )(act, bn2, prep["sel_e"], prep["sel_o"], prep["Wd1"], prep["bd1"])

    out = pl.pallas_call(
        _tail_kernel,
        out_shape=jax.ShapeDtypeStruct((n, 10), jnp.float32),
        grid=(1,),
        in_specs=[
            _full((n, 50)),
            _full((1, 50)),
            _full((1, 50)),
            _full((50, 10)),
            _full((1, 10)),
        ],
        out_specs=pl.BlockSpec((n, 10), lambda i: (0, 0)),
        compiler_params=pltpu.CompilerParams(
            dimension_semantics=("arbitrary",),
            vmem_limit_bytes=32 * 1024 * 1024,
        ),
    )(d1, prep["g1"], prep["be1"], prep["Wd2"], prep["bd2"])
    return out


def init_params(key):
    ks = jax.random.split(key, 6)
    return {
        "w_conv1": jax.random.normal(ks[0], (10, 1, 5, 5), jnp.float32) * 0.2,
        "w_conv2": jax.random.normal(ks[1], (20, 10, 5, 5), jnp.float32) * 0.06,
        "b_conv2": jax.random.normal(ks[2], (20,), jnp.float32) * 0.1,
        "bn2_gamma": jnp.ones((20,), jnp.float32),
        "bn2_beta": jnp.zeros((20,), jnp.float32),
        "w_d1": jax.random.normal(ks[3], (50, 320), jnp.float32) * 0.05,
        "b_d1": jax.random.normal(ks[4], (50,), jnp.float32) * 0.05,
        "bn1_gamma": jnp.ones((50,), jnp.float32),
        "bn1_beta": jnp.zeros((50,), jnp.float32),
        "w_d2": jax.random.normal(ks[5], (10, 50), jnp.float32) * 0.1,
        "b_d2": jax.random.normal(jax.random.fold_in(key, 7), (10,), jnp.float32) * 0.05,
    }


if __name__ == "__main__":
    key = jax.random.PRNGKey(0)
    k_params, k_x = jax.random.split(key)
    params = init_params(k_params)

    # Input implied by the module: 1-channel 28x28 (so the flatten hits 320). batch=2.
    x = jax.random.normal(k_x, (2, 1, 28, 28), jnp.float32)

    tb = _pick_tile(x.shape[0])
    prep = prepare_params(params, tb)
    out = jax.jit(forward)(prep, x)
    out = jax.block_until_ready(out)
    assert out.shape == (2, 10) and out.dtype == jnp.float32
    print("KERNEL_OK")
</pallas_src>

<mosaic_0001>
module attributes {stable_mosaic.version = 11 : i64} {
  func.func @_encoder_kernel(%arg0: i32, %arg1: memref<2x24x28xf32, #tpu.memory_space<vmem>>, %arg2: memref<2x24x28xf32, #tpu.memory_space<vmem>>, %arg3: memref<5x28x120xf32, #tpu.memory_space<vmem>>, %arg4: memref<5x28x120xf32, #tpu.memory_space<vmem>>, %arg5: memref<5x120x160xf32, #tpu.memory_space<vmem>>, %arg6: memref<1x160xf32, #tpu.memory_space<vmem>>, %arg7: memref<16x160xf32, #tpu.memory_space<vmem>>, %arg8: memref<1x2x160xf32, #tpu.memory_space<vmem>>, %arg9: memref<2x16x120xf32, #tpu.memory_space<vmem>>) attributes {dimension_semantics = [#tpu.dimension_semantics<parallel>], iteration_bounds = array<i64: 1>, scalar_prefetch = 0 : i64, scratch_operands = 1 : i64, tpu.core_type = #tpu.core_type<tc>, window_params = [{transform_indices = @transform_0, window_bounds = array<i64: 2, 24, 28>}, {transform_indices = @transform_1, window_bounds = array<i64: 2, 24, 28>}, {pipeline_mode = #tpu.pipeline_mode<synchronous>, transform_indices = @transform_2, window_bounds = array<i64: 5, 28, 120>}, {pipeline_mode = #tpu.pipeline_mode<synchronous>, transform_indices = @transform_3, window_bounds = array<i64: 5, 28, 120>}, {pipeline_mode = #tpu.pipeline_mode<synchronous>, transform_indices = @transform_4, window_bounds = array<i64: 5, 120, 160>}, {pipeline_mode = #tpu.pipeline_mode<synchronous>, transform_indices = @transform_5, window_bounds = array<i64: 1, 160>}, {transform_indices = @transform_6, window_bounds = array<i64: 16, 160>}, {transform_indices = @transform_7, window_bounds = array<i64: 1, 2, 160>}]} {
    %cst = arith.constant 0.000000e+00 : f32
    %0 = vector.broadcast %cst : f32 to vector<32x120xf32>
    %c0 = arith.constant 0 : index
    %c0_0 = arith.constant 0 : index
    %c0_1 = arith.constant 0 : index
    %1 = vector.load %arg1[%c0, %c0_0, %c0_1] : memref<2x24x28xf32, #tpu.memory_space<vmem>>, vector<2x16x28xf32>
    %2 = vector.shape_cast %1 : vector<2x16x28xf32> to vector<32x28xf32>
    %c0_2 = arith.constant 0 : index
    %c0_3 = arith.constant 0 : index
    %c0_4 = arith.constant 0 : index
    %3 = vector.load %arg3[%c0_2, %c0_3, %c0_4] : memref<5x28x120xf32, #tpu.memory_space<vmem>>, vector<1x28x120xf32>
    %4 = vector.shape_cast %3 : vector<1x28x120xf32> to vector<28x120xf32>
    %cst_5 = arith.constant dense<0.000000e+00> : vector<32x120xf32>
    %5 = tpu.matmul %2, %4, %cst_5 {dimension_numbers = #tpu.dot_dimension_numbers<[1], [0], [0], [1], [0, 0, 1, 1], [], []>} : vector<32x28xf32>, vector<28x120xf32>, vector<32x120xf32> -> vector<32x120xf32>
    %6 = arith.addf %0, %5 : vector<32x120xf32>
    %c0_6 = arith.constant 0 : index
    %c0_7 = arith.constant 0 : index
    %c0_8 = arith.constant 0 : index
    %7 = vector.load %arg2[%c0_6, %c0_7, %c0_8] : memref<2x24x28xf32, #tpu.memory_space<vmem>>, vector<2x16x28xf32>
    %8 = vector.shape_cast %7 : vector<2x16x28xf32> to vector<32x28xf32>
    %c1 = arith.constant 1 : index
    %c0_9 = arith.constant 0 : index
    %c0_10 = arith.constant 0 : index
    %9 = vector.load %arg3[%c1, %c0_9, %c0_10] : memref<5x28x120xf32, #tpu.memory_space<vmem>>, vector<1x28x120xf32>
    %10 = vector.shape_cast %9 : vector<1x28x120xf32> to vector<28x120xf32>
    %cst_11 = arith.constant dense<0.000000e+00> : vector<32x120xf32>
    %11 = tpu.matmul %8, %10, %cst_11 {dimension_numbers = #tpu.dot_dimension_numbers<[1], [0], [0], [1], [0, 0, 1, 1], [], []>} : vector<32x28xf32>, vector<28x120xf32>, vector<32x120xf32> -> vector<32x120xf32>
    %12 = arith.addf %6, %11 : vector<32x120xf32>
    %c0_12 = arith.constant 0 : index
    %c1_13 = arith.constant 1 : index
    %c0_14 = arith.constant 0 : index
    %13 = vector.load %arg1[%c0_12, %c1_13, %c0_14] : memref<2x24x28xf32, #tpu.memory_space<vmem>>, vector<2x16x28xf32>
    %14 = vector.shape_cast %13 : vector<2x16x28xf32> to vector<32x28xf32>
    %c2 = arith.constant 2 : index
    %c0_15 = arith.constant 0 : index
    %c0_16 = arith.constant 0 : index
    %15 = vector.load %arg3[%c2, %c0_15, %c0_16] : memref<5x28x120xf32, #tpu.memory_space<vmem>>, vector<1x28x120xf32>
    %16 = vector.shape_cast %15 : vector<1x28x120xf32> to vector<28x120xf32>
    %cst_17 = arith.constant dense<0.000000e+00> : vector<32x120xf32>
    %17 = tpu.matmul %14, %16, %cst_17 {dimension_numbers = #tpu.dot_dimension_numbers<[1], [0], [0], [1], [0, 0, 1, 1], [], []>} : vector<32x28xf32>, vector<28x120xf32>, vector<32x120xf32> -> vector<32x120xf32>
    %18 = arith.addf %12, %17 : vector<32x120xf32>
    %c0_18 = arith.constant 0 : index
    %c1_19 = arith.constant 1 : index
    %c0_20 = arith.constant 0 : index
    %19 = vector.load %arg2[%c0_18, %c1_19, %c0_20] : memref<2x24x28xf32, #tpu.memory_space<vmem>>, vector<2x16x28xf32>
    %20 = vector.shape_cast %19 : vector<2x16x28xf32> to vector<32x28xf32>
    %c3 = arith.constant 3 : index
    %c0_21 = arith.constant 0 : index
    %c0_22 = arith.constant 0 : index
    %21 = vector.load %arg3[%c3, %c0_21, %c0_22] : memref<5x28x120xf32, #tpu.memory_space<vmem>>, vector<1x28x120xf32>
    %22 = vector.shape_cast %21 : vector<1x28x120xf32> to vector<28x120xf32>
    %cst_23 = arith.constant dense<0.000000e+00> : vector<32x120xf32>
    %23 = tpu.matmul %20, %22, %cst_23 {dimension_numbers = #tpu.dot_dimension_numbers<[1], [0], [0], [1], [0, 0, 1, 1], [], []>} : vector<32x28xf32>, vector<28x120xf32>, vector<32x120xf32> -> vector<32x120xf32>
    %24 = arith.addf %18, %23 : vector<32x120xf32>
    %c0_24 = arith.constant 0 : index
    %c2_25 = arith.constant 2 : index
    %c0_26 = arith.constant 0 : index
    %25 = vector.load %arg1[%c0_24, %c2_25, %c0_26] : memref<2x24x28xf32, #tpu.memory_space<vmem>>, vector<2x16x28xf32>
    %26 = vector.shape_cast %25 : vector<2x16x28xf32> to vector<32x28xf32>
    %c4 = arith.constant 4 : index
    %c0_27 = arith.constant 0 : index
    %c0_28 = arith.constant 0 : index
    %27 = vector.load %arg3[%c4, %c0_27, %c0_28] : memref<5x28x120xf32, #tpu.memory_space<vmem>>, vector<1x28x120xf32>
    %28 = vector.shape_cast %27 : vector<1x28x120xf32> to vector<28x120xf32>
    %cst_29 = arith.constant dense<0.000000e+00> : vector<32x120xf32>
    %29 = tpu.matmul %26, %28, %cst_29 {dimension_numbers = #tpu.dot_dimension_numbers<[1], [0], [0], [1], [0, 0, 1, 1], [], []>} : vector<32x28xf32>, vector<28x120xf32>, vector<32x120xf32> -> vector<32x120xf32>
    %30 = arith.addf %24, %29 : vector<32x120xf32>
    %cst_30 = arith.constant 0.000000e+00 : f32
    %31 = vector.broadcast %cst_30 : f32 to vector<32x120xf32>
    %c0_31 = arith.constant 0 : index
    %c0_32 = arith.constant 0 : index
    %c0_33 = arith.constant 0 : index
    %32 = vector.load %arg1[%c0_31, %c0_32, %c0_33] : memref<2x24x28xf32, #tpu.memory_space<vmem>>, vector<2x16x28xf32>
    %33 = vector.shape_cast %32 : vector<2x16x28xf32> to vector<32x28xf32>
    %c0_34 = arith.constant 0 : index
    %c0_35 = arith.constant 0 : index
    %c0_36 = arith.constant 0 : index
    %34 = vector.load %arg4[%c0_34, %c0_35, %c0_36] : memref<5x28x120xf32, #tpu.memory_space<vmem>>, vector<1x28x120xf32>
    %35 = vector.shape_cast %34 : vector<1x28x120xf32> to vector<28x120xf32>
    %cst_37 = arith.constant dense<0.000000e+00> : vector<32x120xf32>
    %36 = tpu.matmul %33, %35, %cst_37 {dimension_numbers = #tpu.dot_dimension_numbers<[1], [0], [0], [1], [0, 0, 1, 1], [], []>} : vector<32x28xf32>, vector<28x120xf32>, vector<32x120xf32> -> vector<32x120xf32>
    %37 = arith.addf %31, %36 : vector<32x120xf32>
    %c0_38 = arith.constant 0 : index
    %c0_39 = arith.constant 0 : index
    %c0_40 = arith.constant 0 : index
    %38 = vector.load %arg2[%c0_38, %c0_39, %c0_40] : memref<2x24x28xf32, #tpu.memory_space<vmem>>, vector<2x16x28xf32>
    %39 = vector.shape_cast %38 : vector<2x16x28xf32> to vector<32x28xf32>
    %c1_41 = arith.constant 1 : index
    %c0_42 = arith.constant 0 : index
    %c0_43 = arith.constant 0 : index
    %40 = vector.load %arg4[%c1_41, %c0_42, %c0_43] : memref<5x28x120xf32, #tpu.memory_space<vmem>>, vector<1x28x120xf32>
    %41 = vector.shape_cast %40 : vector<1x28x120xf32> to vector<28x120xf32>
    %cst_44 = arith.constant dense<0.000000e+00> : vector<32x120xf32>
    %42 = tpu.matmul %39, %41, %cst_44 {dimension_numbers = #tpu.dot_dimension_numbers<[1], [0], [0], [1], [0, 0, 1, 1], [], []>} : vector<32x28xf32>, vector<28x120xf32>, vector<32x120xf32> -> vector<32x120xf32>
    %43 = arith.addf %37, %42 : vector<32x120xf32>
    %c0_45 = arith.constant 0 : index
    %c1_46 = arith.constant 1 : index
    %c0_47 = arith.constant 0 : index
    %44 = vector.load %arg1[%c0_45, %c1_46, %c0_47] : memref<2x24x28xf32, #tpu.memory_space<vmem>>, vector<2x16x28xf32>
    %45 = vector.shape_cast %44 : vector<2x16x28xf32> to vector<32x28xf32>
    %c2_48 = arith.constant 2 : index
    %c0_49 = arith.constant 0 : index
    %c0_50 = arith.constant 0 : index
    %46 = vector.load %arg4[%c2_48, %c0_49, %c0_50] : memref<5x28x120xf32, #tpu.memory_space<vmem>>, vector<1x28x120xf32>
    %47 = vector.shape_cast %46 : vector<1x28x120xf32> to vector<28x120xf32>
    %cst_51 = arith.constant dense<0.000000e+00> : vector<32x120xf32>
    %48 = tpu.matmul %45, %47, %cst_51 {dimension_numbers = #tpu.dot_dimension_numbers<[1], [0], [0], [1], [0, 0, 1, 1], [], []>} : vector<32x28xf32>, vector<28x120xf32>, vector<32x120xf32> -> vector<32x120xf32>
    %49 = arith.addf %43, %48 : vector<32x120xf32>
    %c0_52 = arith.constant 0 : index
    %c1_53 = arith.constant 1 : index
    %c0_54 = arith.constant 0 : index
    %50 = vector.load %arg2[%c0_52, %c1_53, %c0_54] : memref<2x24x28xf32, #tpu.memory_space<vmem>>, vector<2x16x28xf32>
    %51 = vector.shape_cast %50 : vector<2x16x28xf32> to vector<32x28xf32>
    %c3_55 = arith.constant 3 : index
    %c0_56 = arith.constant 0 : index
    %c0_57 = arith.constant 0 : index
    %52 = vector.load %arg4[%c3_55, %c0_56, %c0_57] : memref<5x28x120xf32, #tpu.memory_space<vmem>>, vector<1x28x120xf32>
    %53 = vector.shape_cast %52 : vector<1x28x120xf32> to vector<28x120xf32>
    %cst_58 = arith.constant dense<0.000000e+00> : vector<32x120xf32>
    %54 = tpu.matmul %51, %53, %cst_58 {dimension_numbers = #tpu.dot_dimension_numbers<[1], [0], [0], [1], [0, 0, 1, 1], [], []>} : vector<32x28xf32>, vector<28x120xf32>, vector<32x120xf32> -> vector<32x120xf32>
    %55 = arith.addf %49, %54 : vector<32x120xf32>
    %c0_59 = arith.constant 0 : index
    %c2_60 = arith.constant 2 : index
    %c0_61 = arith.constant 0 : index
    %56 = vector.load %arg1[%c0_59, %c2_60, %c0_61] : memref<2x24x28xf32, #tpu.memory_space<vmem>>, vector<2x16x28xf32>
    %57 = vector.shape_cast %56 : vector<2x16x28xf32> to vector<32x28xf32>
    %c4_62 = arith.constant 4 : index
    %c0_63 = arith.constant 0 : index
    %c0_64 = arith.constant 0 : index
    %58 = vector.load %arg4[%c4_62, %c0_63, %c0_64] : memref<5x28x120xf32, #tpu.memory_space<vmem>>, vector<1x28x120xf32>
    %59 = vector.shape_cast %58 : vector<1x28x120xf32> to vector<28x120xf32>
    %cst_65 = arith.constant dense<0.000000e+00> : vector<32x120xf32>
    %60 = tpu.matmul %57, %59, %cst_65 {dimension_numbers = #tpu.dot_dimension_numbers<[1], [0], [0], [1], [0, 0, 1, 1], [], []>} : vector<32x28xf32>, vector<28x120xf32>, vector<32x120xf32> -> vector<32x120xf32>
    %61 = arith.addf %55, %60 : vector<32x120xf32>
    %62 = arith.maximumf %30, %61 : vector<32x120xf32>
    %cst_66 = arith.constant 0.000000e+00 : f32
    %63 = vector.broadcast %cst_66 : f32 to vector<32x120xf32>
    %c0_67 = arith.constant 0 : index
    %c0_68 = arith.constant 0 : index
    %c0_69 = arith.constant 0 : index
    %64 = vector.load %arg2[%c0_67, %c0_68, %c0_69] : memref<2x24x28xf32, #tpu.memory_space<vmem>>, vector<2x16x28xf32>
    %65 = vector.shape_cast %64 : vector<2x16x28xf32> to vector<32x28xf32>
    %c0_70 = arith.constant 0 : index
    %c0_71 = arith.constant 0 : index
    %c0_72 = arith.constant 0 : index
    %66 = vector.load %arg3[%c0_70, %c0_71, %c0_72] : memref<5x28x120xf32, #tpu.memory_space<vmem>>, vector<1x28x120xf32>
    %67 = vector.shape_cast %66 : vector<1x28x120xf32> to vector<28x120xf32>
    %cst_73 = arith.constant dense<0.000000e+00> : vector<32x120xf32>
    %68 = tpu.matmul %65, %67, %cst_73 {dimension_numbers = #tpu.dot_dimension_numbers<[1], [0], [0], [1], [0, 0, 1, 1], [], []>} : vector<32x28xf32>, vector<28x120xf32>, vector<32x120xf32> -> vector<32x120xf32>
    %69 = arith.addf %63, %68 : vector<32x120xf32>
    %c0_74 = arith.constant 0 : index
    %c1_75 = arith.constant 1 : index
    %c0_76 = arith.constant 0 : index
    %70 = vector.load %arg1[%c0_74, %c1_75, %c0_76] : memref<2x24x28xf32, #tpu.memory_space<vmem>>, vector<2x16x28xf32>
    %71 = vector.shape_cast %70 : vector<2x16x28xf32> to vector<32x28xf32>
    %c1_77 = arith.constant 1 : index
    %c0_78 = arith.constant 0 : index
    %c0_79 = arith.constant 0 : index
    %72 = vector.load %arg3[%c1_77, %c0_78, %c0_79] : memref<5x28x120xf32, #tpu.memory_space<vmem>>, vector<1x28x120xf32>
    %73 = vector.shape_cast %72 : vector<1x28x120xf32> to vector<28x120xf32>
    %cst_80 = arith.constant dense<0.000000e+00> : vector<32x120xf32>
    %74 = tpu.matmul %71, %73, %cst_80 {dimension_numbers = #tpu.dot_dimension_numbers<[1], [0], [0], [1], [0, 0, 1, 1], [], []>} : vector<32x28xf32>, vector<28x120xf32>, vector<32x120xf32> -> vector<32x120xf32>
    %75 = arith.addf %69, %74 : vector<32x120xf32>
    %c0_81 = arith.constant 0 : index
    %c1_82 = arith.constant 1 : index
    %c0_83 = arith.constant 0 : index
    %76 = vector.load %arg2[%c0_81, %c1_82, %c0_83] : memref<2x24x28xf32, #tpu.memory_space<vmem>>, vector<2x16x28xf32>
    %77 = vector.shape_cast %76 : vector<2x16x28xf32> to vector<32x28xf32>
    %c2_84 = arith.constant 2 : index
    %c0_85 = arith.constant 0 : index
    %c0_86 = arith.constant 0 : index
    %78 = vector.load %arg3[%c2_84, %c0_85, %c0_86] : memref<5x28x120xf32, #tpu.memory_space<vmem>>, vector<1x28x120xf32>
    %79 = vector.shape_cast %78 : vector<1x28x120xf32> to vector<28x120xf32>
    %cst_87 = arith.constant dense<0.000000e+00> : vector<32x120xf32>
    %80 = tpu.matmul %77, %79, %cst_87 {dimension_numbers = #tpu.dot_dimension_numbers<[1], [0], [0], [1], [0, 0, 1, 1], [], []>} : vector<32x28xf32>, vector<28x120xf32>, vector<32x120xf32> -> vector<32x120xf32>
    %81 = arith.addf %75, %80 : vector<32x120xf32>
    %c0_88 = arith.constant 0 : index
    %c2_89 = arith.constant 2 : index
    %c0_90 = arith.constant 0 : index
    %82 = vector.load %arg1[%c0_88, %c2_89, %c0_90] : memref<2x24x28xf32, #tpu.memory_space<vmem>>, vector<2x16x28xf32>
    %83 = vector.shape_cast %82 : vector<2x16x28xf32> to vector<32x28xf32>
    %c3_91 = arith.constant 3 : index
    %c0_92 = arith.constant 0 : index
    %c0_93 = arith.constant 0 : index
    %84 = vector.load %arg3[%c3_91, %c0_92, %c0_93] : memref<5x28x120xf32, #tpu.memory_space<vmem>>, vector<1x28x120xf32>
    %85 = vector.shape_cast %84 : vector<1x28x120xf32> to vector<28x120xf32>
    %cst_94 = arith.constant dense<0.000000e+00> : vector<32x120xf32>
    %86 = tpu.matmul %83, %85, %cst_94 {dimension_numbers = #tpu.dot_dimension_numbers<[1], [0], [0], [1], [0, 0, 1, 1], [], []>} : vector<32x28xf32>, vector<28x120xf32>, vector<32x120xf32> -> vector<32x120xf32>
    %87 = arith.addf %81, %86 : vector<32x120xf32>
    %c0_95 = arith.constant 0 : index
    %c2_96 = arith.constant 2 : index
    %c0_97 = arith.constant 0 : index
    %88 = vector.load %arg2[%c0_95, %c2_96, %c0_97] : memref<2x24x28xf32, #tpu.memory_space<vmem>>, vector<2x16x28xf32>
    %89 = vector.shape_cast %88 : vector<2x16x28xf32> to vector<32x28xf32>
    %c4_98 = arith.constant 4 : index
    %c0_99 = arith.constant 0 : index
    %c0_100 = arith.constant 0 : index
    %90 = vector.load %arg3[%c4_98, %c0_99, %c0_100] : memref<5x28x120xf32, #tpu.memory_space<vmem>>, vector<1x28x120xf32>
    %91 = vector.shape_cast %90 : vector<1x28x120xf32> to vector<28x120xf32>
    %cst_101 = arith.constant dense<0.000000e+00> : vector<32x120xf32>
    %92 = tpu.matmul %89, %91, %cst_101 {dimension_numbers = #tpu.dot_dimension_numbers<[1], [0], [0], [1], [0, 0, 1, 1], [], []>} : vector<32x28xf32>, vector<28x120xf32>, vector<32x120xf32> -> vector<32x120xf32>
    %93 = arith.addf %87, %92 : vector<32x120xf32>
    %cst_102 = arith.constant 0.000000e+00 : f32
    %94 = vector.broadcast %cst_102 : f32 to vector<32x120xf32>
    %c0_103 = arith.constant 0 : index
    %c0_104 = arith.constant 0 : index
    %c0_105 = arith.constant 0 : index
    %95 = vector.load %arg2[%c0_103, %c0_104, %c0_105] : memref<2x24x28xf32, #tpu.memory_space<vmem>>, vector<2x16x28xf32>
    %96 = vector.shape_cast %95 : vector<2x16x28xf32> to vector<32x28xf32>
    %c0_106 = arith.constant 0 : index
    %c0_107 = arith.constant 0 : index
    %c0_108 = arith.constant 0 : index
    %97 = vector.load %arg4[%c0_106, %c0_107, %c0_108] : memref<5x28x120xf32, #tpu.memory_space<vmem>>, vector<1x28x120xf32>
    %98 = vector.shape_cast %97 : vector<1x28x120xf32> to vector<28x120xf32>
    %cst_109 = arith.constant dense<0.000000e+00> : vector<32x120xf32>
    %99 = tpu.matmul %96, %98, %cst_109 {dimension_numbers = #tpu.dot_dimension_numbers<[1], [0], [0], [1], [0, 0, 1, 1], [], []>} : vector<32x28xf32>, vector<28x120xf32>, vector<32x120xf32> -> vector<32x120xf32>
    %100 = arith.addf %94, %99 : vector<32x120xf32>
    %c0_110 = arith.constant 0 : index
    %c1_111 = arith.constant 1 : index
    %c0_112 = arith.constant 0 : index
    %101 = vector.load %arg1[%c0_110, %c1_111, %c0_112] : memref<2x24x28xf32, #tpu.memory_space<vmem>>, vector<2x16x28xf32>
    %102 = vector.shape_cast %101 : vector<2x16x28xf32> to vector<32x28xf32>
    %c1_113 = arith.constant 1 : index
    %c0_114 = arith.constant 0 : index
    %c0_115 = arith.constant 0 : index
    %103 = vector.load %arg4[%c1_113, %c0_114, %c0_115] : memref<5x28x120xf32, #tpu.memory_space<vmem>>, vector<1x28x120xf32>
    %104 = vector.shape_cast %103 : vector<1x28x120xf32> to vector<28x120xf32>
    %cst_116 = arith.constant dense<0.000000e+00> : vector<32x120xf32>
    %105 = tpu.matmul %102, %104, %cst_116 {dimension_numbers = #tpu.dot_dimension_numbers<[1], [0], [0], [1], [0, 0, 1, 1], [], []>} : vector<32x28xf32>, vector<28x120xf32>, vector<32x120xf32> -> vector<32x120xf32>
    %106 = arith.addf %100, %105 : vector<32x120xf32>
    %c0_117 = arith.constant 0 : index
    %c1_118 = arith.constant 1 : index
    %c0_119 = arith.constant 0 : index
    %107 = vector.load %arg2[%c0_117, %c1_118, %c0_119] : memref<2x24x28xf32, #tpu.memory_space<vmem>>, vector<2x16x28xf32>
    %108 = vector.shape_cast %107 : vector<2x16x28xf32> to vector<32x28xf32>
    %c2_120 = arith.constant 2 : index
    %c0_121 = arith.constant 0 : index
    %c0_122 = arith.constant 0 : index
    %109 = vector.load %arg4[%c2_120, %c0_121, %c0_122] : memref<5x28x120xf32, #tpu.memory_space<vmem>>, vector<1x28x120xf32>
    %110 = vector.shape_cast %109 : vector<1x28x120xf32> to vector<28x120xf32>
    %cst_123 = arith.constant dense<0.000000e+00> : vector<32x120xf32>
    %111 = tpu.matmul %108, %110, %cst_123 {dimension_numbers = #tpu.dot_dimension_numbers<[1], [0], [0], [1], [0, 0, 1, 1], [], []>} : vector<32x28xf32>, vector<28x120xf32>, vector<32x120xf32> -> vector<32x120xf32>
    %112 = arith.addf %106, %111 : vector<32x120xf32>
    %c0_124 = arith.constant 0 : index
    %c2_125 = arith.constant 2 : index
    %c0_126 = arith.constant 0 : index
    %113 = vector.load %arg1[%c0_124, %c2_125, %c0_126] : memref<2x24x28xf32, #tpu.memory_space<vmem>>, vector<2x16x28xf32>
    %114 = vector.shape_cast %113 : vector<2x16x28xf32> to vector<32x28xf32>
    %c3_127 = arith.constant 3 : index
    %c0_128 = arith.constant 0 : index
    %c0_129 = arith.constant 0 : index
    %115 = vector.load %arg4[%c3_127, %c0_128, %c0_129] : memref<5x28x120xf32, #tpu.memory_space<vmem>>, vector<1x28x120xf32>
    %116 = vector.shape_cast %115 : vector<1x28x120xf32> to vector<28x120xf32>
    %cst_130 = arith.constant dense<0.000000e+00> : vector<32x120xf32>
    %117 = tpu.matmul %114, %116, %cst_130 {dimension_numbers = #tpu.dot_dimension_numbers<[1], [0], [0], [1], [0, 0, 1, 1], [], []>} : vector<32x28xf32>, vector<28x120xf32>, vector<32x120xf32> -> vector<32x120xf32>
    %118 = arith.addf %112, %117 : vector<32x120xf32>
    %c0_131 = arith.constant 0 : index
    %c2_132 = arith.constant 2 : index
    %c0_133 = arith.constant 0 : index
    %119 = vector.load %arg2[%c0_131, %c2_132, %c0_133] : memref<2x24x28xf32, #tpu.memory_space<vmem>>, vector<2x16x28xf32>
    %120 = vector.shape_cast %119 : vector<2x16x28xf32> to vector<32x28xf32>
    %c4_134 = arith.constant 4 : index
    %c0_135 = arith.constant 0 : index
    %c0_136 = arith.constant 0 : index
    %121 = vector.load %arg4[%c4_134, %c0_135, %c0_136] : memref<5x28x120xf32, #tpu.memory_space<vmem>>, vector<1x28x120xf32>
    %122 = vector.shape_cast %121 : vector<1x28x120xf32> to vector<28x120xf32>
    %cst_137 = arith.constant dense<0.000000e+00> : vector<32x120xf32>
    %123 = tpu.matmul %120, %122, %cst_137 {dimension_numbers = #tpu.dot_dimension_numbers<[1], [0], [0], [1], [0, 0, 1, 1], [], []>} : vector<32x28xf32>, vector<28x120xf32>, vector<32x120xf32> -> vector<32x120xf32>
    %124 = arith.addf %118, %123 : vector<32x120xf32>
    %125 = arith.maximumf %93, %124 : vector<32x120xf32>
    %126 = arith.maximumf %62, %125 : vector<32x120xf32>
    %cst_138 = arith.constant 0.000000e+00 : f32
    %127 = vector.broadcast %cst_138 : f32 to vector<32x120xf32>
    %128 = arith.maximumf %126, %127 : vector<32x120xf32>
    %129 = vector.extract_strided_slice %128 {offsets = [0, 0], sizes = [16, 120], strides = [1, 1]} : vector<32x120xf32> to vector<16x120xf32>
    %c0_139 = arith.constant 0 : index
    %c0_140 = arith.constant 0 : index
    %c0_141 = arith.constant 0 : index
    %130 = vector.load %arg9[%c0_139, %c0_140, %c0_141] : memref<2x16x120xf32, #tpu.memory_space<vmem>>, vector<1x16x120xf32>
    %131 = vector.shape_cast %130 : vector<1x16x120xf32> to vector<16x120xf32>
    %132 = vector.shape_cast %129 : vector<16x120xf32> to vector<1x16x120xf32>
    tpu.vector_store %arg9[%c0_139, %c0_140, %c0_141], %132 {strides = array<i32>} : memref<2x16x120xf32, #tpu.memory_space<vmem>>, vector<1x16x120xf32>,
    %133 = vector.extract_strided_slice %128 {offsets = [16, 0], sizes = [16, 120], strides = [1, 1]} : vector<32x120xf32> to vector<16x120xf32>
    %c1_142 = arith.constant 1 : index
    %c0_143 = arith.constant 0 : index
    %c0_144 = arith.constant 0 : index
    %134 = vector.load %arg9[%c1_142, %c0_143, %c0_144] : memref<2x16x120xf32, #tpu.memory_space<vmem>>, vector<1x16x120xf32>
    %135 = vector.shape_cast %134 : vector<1x16x120xf32> to vector<16x120xf32>
    %136 = vector.shape_cast %133 : vector<16x120xf32> to vector<1x16x120xf32>
    tpu.vector_store %arg9[%c1_142, %c0_143, %c0_144], %136 {strides = array<i32>} : memref<2x16x120xf32, #tpu.memory_space<vmem>>, vector<1x16x120xf32>,
    %cst_145 = arith.constant 0.000000e+00 : f32
    %137 = vector.broadcast %cst_145 : f32 to vector<16x160xf32>
    %c0_146 = arith.constant 0 : index
    %c0_147 = arith.constant 0 : index
    %c0_148 = arith.constant 0 : index
    %138 = vector.load %arg9[%c0_146, %c0_147, %c0_148] : memref<2x16x120xf32, #tpu.memory_space<vmem>>, vector<2x8x120xf32>
    %139 = vector.shape_cast %138 : vector<2x8x120xf32> to vector<16x120xf32>
    %c0_149 = arith.constant 0 : index
    %c0_150 = arith.constant 0 : index
    %c0_151 = arith.constant 0 : index
    %140 = vector.load %arg5[%c0_149, %c0_150, %c0_151] : memref<5x120x160xf32, #tpu.memory_space<vmem>>, vector<1x120x160xf32>
    %141 = vector.shape_cast %140 : vector<1x120x160xf32> to vector<120x160xf32>
    %cst_152 = arith.constant dense<0.000000e+00> : vector<16x160xf32>
    %142 = tpu.matmul %139, %141, %cst_152 {dimension_numbers = #tpu.dot_dimension_numbers<[1], [0], [0], [1], [0, 0, 1, 1], [], []>} : vector<16x120xf32>, vector<120x160xf32>, vector<16x160xf32> -> vector<16x160xf32>
    %143 = arith.addf %137, %142 : vector<16x160xf32>
    %c0_153 = arith.constant 0 : index
    %c1_154 = arith.constant 1 : index
    %c0_155 = arith.constant 0 : index
    %144 = vector.load %arg9[%c0_153, %c1_154, %c0_155] : memref<2x16x120xf32, #tpu.memory_space<vmem>>, vector<2x8x120xf32>
    %145 = vector.shape_cast %144 : vector<2x8x120xf32> to vector<16x120xf32>
    %c1_156 = arith.constant 1 : index
    %c0_157 = arith.constant 0 : index
    %c0_158 = arith.constant 0 : index
    %146 = vector.load %arg5[%c1_156, %c0_157, %c0_158] : memref<5x120x160xf32, #tpu.memory_space<vmem>>, vector<1x120x160xf32>
    %147 = vector.shape_cast %146 : vector<1x120x160xf32> to vector<120x160xf32>
    %cst_159 = arith.constant dense<0.000000e+00> : vector<16x160xf32>
    %148 = tpu.matmul %145, %147, %cst_159 {dimension_numbers = #tpu.dot_dimension_numbers<[1], [0], [0], [1], [0, 0, 1, 1], [], []>} : vector<16x120xf32>, vector<120x160xf32>, vector<16x160xf32> -> vector<16x160xf32>
    %149 = arith.addf %143, %148 : vector<16x160xf32>
    %c0_160 = arith.constant 0 : index
    %c2_161 = arith.constant 2 : index
    %c0_162 = arith.constant 0 : index
    %150 = vector.load %arg9[%c0_160, %c2_161, %c0_162] : memref<2x16x120xf32, #tpu.memory_space<vmem>>, vector<2x8x120xf32>
    %151 = vector.shape_cast %150 : vector<2x8x120xf32> to vector<16x120xf32>
    %c2_163 = arith.constant 2 : index
    %c0_164 = arith.constant 0 : index
    %c0_165 = arith.constant 0 : index
    %152 = vector.load %arg5[%c2_163, %c0_164, %c0_165] : memref<5x120x160xf32, #tpu.memory_space<vmem>>, vector<1x120x160xf32>
    %153 = vector.shape_cast %152 : vector<1x120x160xf32> to vector<120x160xf32>
    %cst_166 = arith.constant dense<0.000000e+00> : vector<16x160xf32>
    %154 = tpu.matmul %151, %153, %cst_166 {dimension_numbers = #tpu.dot_dimension_numbers<[1], [0], [0], [1], [0, 0, 1, 1], [], []>} : vector<16x120xf32>, vector<120x160xf32>, vector<16x160xf32> -> vector<16x160xf32>
    %155 = arith.addf %149, %154 : vector<16x160xf32>
    %c0_167 = arith.constant 0 : index
    %c3_168 = arith.constant 3 : index
    %c0_169 = arith.constant 0 : index
    %156 = vector.load %arg9[%c0_167, %c3_168, %c0_169] : memref<2x16x120xf32, #tpu.memory_space<vmem>>, vector<2x8x120xf32>
    %157 = vector.shape_cast %156 : vector<2x8x120xf32> to vector<16x120xf32>
    %c3_170 = arith.constant 3 : index
    %c0_171 = arith.constant 0 : index
    %c0_172 = arith.constant 0 : index
    %158 = vector.load %arg5[%c3_170, %c0_171, %c0_172] : memref<5x120x160xf32, #tpu.memory_space<vmem>>, vector<1x120x160xf32>
    %159 = vector.shape_cast %158 : vector<1x120x160xf32> to vector<120x160xf32>
    %cst_173 = arith.constant dense<0.000000e+00> : vector<16x160xf32>
    %160 = tpu.matmul %157, %159, %cst_173 {dimension_numbers = #tpu.dot_dimension_numbers<[1], [0], [0], [1], [0, 0, 1, 1], [], []>} : vector<16x120xf32>, vector<120x160xf32>, vector<16x160xf32> -> vector<16x160xf32>
    %161 = arith.addf %155, %160 : vector<16x160xf32>
    %c0_174 = arith.constant 0 : index
    %c4_175 = arith.constant 4 : index
    %c0_176 = arith.constant 0 : index
    %162 = vector.load %arg9[%c0_174, %c4_175, %c0_176] : memref<2x16x120xf32, #tpu.memory_space<vmem>>, vector<2x8x120xf32>
    %163 = vector.shape_cast %162 : vector<2x8x120xf32> to vector<16x120xf32>
    %c4_177 = arith.constant 4 : index
    %c0_178 = arith.constant 0 : index
    %c0_179 = arith.constant 0 : index
    %164 = vector.load %arg5[%c4_177, %c0_178, %c0_179] : memref<5x120x160xf32, #tpu.memory_space<vmem>>, vector<1x120x160xf32>
    %165 = vector.shape_cast %164 : vector<1x120x160xf32> to vector<120x160xf32>
    %cst_180 = arith.constant dense<0.000000e+00> : vector<16x160xf32>
    %166 = tpu.matmul %163, %165, %cst_180 {dimension_numbers = #tpu.dot_dimension_numbers<[1], [0], [0], [1], [0, 0, 1, 1], [], []>} : vector<16x120xf32>, vector<120x160xf32>, vector<16x160xf32> -> vector<16x160xf32>
    %167 = arith.addf %161, %166 : vector<16x160xf32>
    %c0_181 = arith.constant 0 : index
    %c0_182 = arith.constant 0 : index
    %168 = vector.load %arg6[%c0_181, %c0_182] : memref<1x160xf32, #tpu.memory_space<vmem>>, vector<1x160xf32>
    %169 = vector.broadcast %168 : vector<1x160xf32> to vector<16x160xf32>
    %170 = arith.addf %167, %169 : vector<16x160xf32>
    %c0_183 = arith.constant 0 : index
    %c0_184 = arith.constant 0 : index
    %171 = vector.load %arg7[%c0_183, %c0_184] : memref<16x160xf32, #tpu.memory_space<vmem>>, vector<16x160xf32>
    tpu.vector_store %arg7[%c0_183, %c0_184], %170 {strides = array<i32>} : memref<16x160xf32, #tpu.memory_space<vmem>>, vector<16x160xf32>,
    %cst_185 = arith.constant dense<0.000000e+00> : vector<160xf32>
    %172 = vector.multi_reduction <add>, %170, %cst_185 [0] : vector<16x160xf32> to vector<160xf32>
    %173 = vector.shape_cast %172 : vector<160xf32> to vector<1x160xf32>
    %c0_186 = arith.constant 0 : index
    %c0_187 = arith.constant 0 : index
    %c0_188 = arith.constant 0 : index
    %174 = vector.load %arg8[%c0_186, %c0_187, %c0_188] : memref<1x2x160xf32, #tpu.memory_space<vmem>>, vector<1x1x160xf32>
    %175 = vector.shape_cast %174 : vector<1x1x160xf32> to vector<1x160xf32>
    %176 = vector.shape_cast %173 : vector<1x160xf32> to vector<1x1x160xf32>
    tpu.vector_store %arg8[%c0_186, %c0_187, %c0_188], %176 {strides = array<i32>} : memref<1x2x160xf32, #tpu.memory_space<vmem>>, vector<1x1x160xf32>,
    %177 = arith.mulf %170, %170 : vector<16x160xf32>
    %cst_189 = arith.constant dense<0.000000e+00> : vector<160xf32>
    %178 = vector.multi_reduction <add>, %177, %cst_189 [0] : vector<16x160xf32> to vector<160xf32>
    %179 = vector.shape_cast %178 : vector<160xf32> to vector<1x160xf32>
    %c0_190 = arith.constant 0 : index
    %c1_191 = arith.constant 1 : index
    %c0_192 = arith.constant 0 : index
    %180 = vector.load %arg8[%c0_190, %c1_191, %c0_192] : memref<1x2x160xf32, #tpu.memory_space<vmem>>, vector<1x1x160xf32>
    %181 = vector.shape_cast %180 : vector<1x1x160xf32> to vector<1x160xf32>
    %182 = vector.shape_cast %179 : vector<1x160xf32> to vector<1x1x160xf32>
    tpu.vector_store %arg8[%c0_190, %c1_191, %c0_192], %182 {strides = array<i32>} : memref<1x2x160xf32, #tpu.memory_space<vmem>>, vector<1x1x160xf32>,
    return
  }
  func.func @transform_0(%arg0: i32) -> (i32, i32, i32) {
    %c0_i32 = arith.constant 0 : i32
    %c0_i32_0 = arith.constant 0 : i32
    %c0_i32_1 = arith.constant 0 : i32
    return %arg0, %c0_i32, %c0_i32_0 : i32, i32, i32
  }
  func.func @transform_1(%arg0: i32) -> (i32, i32, i32) {
    %c0_i32 = arith.constant 0 : i32
    %c0_i32_0 = arith.constant 0 : i32
    %c0_i32_1 = arith.constant 0 : i32
    return %arg0, %c0_i32, %c0_i32_0 : i32, i32, i32
  }
  func.func @transform_2(%arg0: i32) -> (i32, i32, i32) {
    %c0_i32 = arith.constant 0 : i32
    %c0_i32_0 = arith.constant 0 : i32
    %c0_i32_1 = arith.constant 0 : i32
    %c0_i32_2 = arith.constant 0 : i32
    return %c0_i32, %c0_i32_0, %c0_i32_1 : i32, i32, i32
  }
  func.func @transform_3(%arg0: i32) -> (i32, i32, i32) {
    %c0_i32 = arith.constant 0 : i32
    %c0_i32_0 = arith.constant 0 : i32
    %c0_i32_1 = arith.constant 0 : i32
    %c0_i32_2 = arith.constant 0 : i32
    return %c0_i32, %c0_i32_0, %c0_i32_1 : i32, i32, i32
  }
  func.func @transform_4(%arg0: i32) -> (i32, i32, i32) {
    %c0_i32 = arith.constant 0 : i32
    %c0_i32_0 = arith.constant 0 : i32
    %c0_i32_1 = arith.constant 0 : i32
    %c0_i32_2 = arith.constant 0 : i32
    return %c0_i32, %c0_i32_0, %c0_i32_1 : i32, i32, i32
  }
  func.func @transform_5(%arg0: i32) -> (i32, i32) {
    %c0_i32 = arith.constant 0 : i32
    %c0_i32_0 = arith.constant 0 : i32
    %c0_i32_1 = arith.constant 0 : i32
    return %c0_i32, %c0_i32_0 : i32, i32
  }
  func.func @transform_6(%arg0: i32) -> (i32, i32) {
    %c0_i32 = arith.constant 0 : i32
    %c0_i32_0 = arith.constant 0 : i32
    return %arg0, %c0_i32 : i32, i32
  }
  func.func @transform_7(%arg0: i32) -> (i32, i32, i32) {
    %c0_i32 = arith.constant 0 : i32
    %c0_i32_0 = arith.constant 0 : i32
    %c0_i32_1 = arith.constant 0 : i32
    return %arg0, %c0_i32, %c0_i32_0 : i32, i32, i32
  }
}

module attributes {stable_mosaic.version = 11 : i64} {
  func.func @_head_kernel(%arg0: i32, %arg1: memref<16x160xf32, #tpu.memory_space<vmem>>, %arg2: memref<2x160xf32, #tpu.memory_space<vmem>>, %arg3: memref<4x2x16xf32, #tpu.memory_space<vmem>>, %arg4: memref<4x2x16xf32, #tpu.memory_space<vmem>>, %arg5: memref<4x80x50xf32, #tpu.memory_space<vmem>>, %arg6: memref<1x50xf32, #tpu.memory_space<vmem>>, %arg7: memref<2x50xf32, #tpu.memory_space<vmem>>) attributes {dimension_semantics = [#tpu.dimension_semantics<parallel>], iteration_bounds = array<i64: 1>, scalar_prefetch = 0 : i64, scratch_operands = 0 : i64, tpu.core_type = #tpu.core_type<tc>, window_params = [{transform_indices = @transform_0, window_bounds = array<i64: 16, 160>}, {pipeline_mode = #tpu.pipeline_mode<synchronous>, transform_indices = @transform_1, window_bounds = array<i64: 2, 160>}, {pipeline_mode = #tpu.pipeline_mode<synchronous>, transform_indices = @transform_2, window_bounds = array<i64: 4, 2, 16>}, {pipeline_mode = #tpu.pipeline_mode<synchronous>, transform_indices = @transform_3, window_bounds = array<i64: 4, 2, 16>}, {pipeline_mode = #tpu.pipeline_mode<synchronous>, transform_indices = @transform_4, window_bounds = array<i64: 4, 80, 50>}, {pipeline_mode = #tpu.pipeline_mode<synchronous>, transform_indices = @transform_5, window_bounds = array<i64: 1, 50>}, {transform_indices = @transform_6, window_bounds = array<i64: 2, 50>}]} {
    %c0 = arith.constant 0 : index
    %c0_0 = arith.constant 0 : index
    %0 = vector.load %arg1[%c0, %c0_0] : memref<16x160xf32, #tpu.memory_space<vmem>>, vector<16x160xf32>
    %c0_1 = arith.constant 0 : index
    %c0_2 = arith.constant 0 : index
    %1 = vector.load %arg2[%c0_1, %c0_2] : memref<2x160xf32, #tpu.memory_space<vmem>>, vector<1x160xf32>
    %2 = vector.broadcast %1 : vector<1x160xf32> to vector<16x160xf32>
    %3 = arith.mulf %0, %2 : vector<16x160xf32>
    %c1 = arith.constant 1 : index
    %c0_3 = arith.constant 0 : index
    %4 = vector.load %arg2[%c1, %c0_3] : memref<2x160xf32, #tpu.memory_space<vmem>>, vector<1x160xf32>
    %5 = vector.broadcast %4 : vector<1x160xf32> to vector<16x160xf32>
    %6 = arith.addf %3, %5 : vector<16x160xf32>
    %7 = vector.extract_strided_slice %6 {offsets = [0, 0], sizes = [16, 80], strides = [1, 1]} : vector<16x160xf32> to vector<16x80xf32>
    %8 = vector.extract_strided_slice %6 {offsets = [0, 80], sizes = [16, 80], strides = [1, 1]} : vector<16x160xf32> to vector<16x80xf32>
    %9 = arith.maximumf %7, %8 : vector<16x80xf32>
    %cst = arith.constant 0.000000e+00 : f32
    %10 = vector.broadcast %cst : f32 to vector<2x50xf32>
    %c0_4 = arith.constant 0 : index
    %c0_5 = arith.constant 0 : index
    %c0_6 = arith.constant 0 : index
    %11 = vector.load %arg3[%c0_4, %c0_5, %c0_6] : memref<4x2x16xf32, #tpu.memory_space<vmem>>, vector<1x2x16xf32>
    %12 = vector.shape_cast %11 : vector<1x2x16xf32> to vector<2x16xf32>
    %cst_7 = arith.constant dense<0.000000e+00> : vector<2x80xf32>
    %13 = tpu.matmul %12, %9, %cst_7 {dimension_numbers = #tpu.dot_dimension_numbers<[1], [0], [0], [1], [0, 0, 1, 1], [], []>} : vector<2x16xf32>, vector<16x80xf32>, vector<2x80xf32> -> vector<2x80xf32>
    %c0_8 = arith.constant 0 : index
    %c0_9 = arith.constant 0 : index
    %c0_10 = arith.constant 0 : index
    %14 = vector.load %arg4[%c0_8, %c0_9, %c0_10] : memref<4x2x16xf32, #tpu.memory_space<vmem>>, vector<1x2x16xf32>
    %15 = vector.shape_cast %14 : vector<1x2x16xf32> to vector<2x16xf32>
    %cst_11 = arith.constant dense<0.000000e+00> : vector<2x80xf32>
    %16 = tpu.matmul %15, %9, %cst_11 {dimension_numbers = #tpu.dot_dimension_numbers<[1], [0], [0], [1], [0, 0, 1, 1], [], []>} : vector<2x16xf32>, vector<16x80xf32>, vector<2x80xf32> -> vector<2x80xf32>
    %17 = arith.maximumf %13, %16 : vector<2x80xf32>
    %cst_12 = arith.constant 0.000000e+00 : f32
    %18 = vector.broadcast %cst_12 : f32 to vector<2x80xf32>
    %19 = arith.maximumf %17, %18 : vector<2x80xf32>
    %c0_13 = arith.constant 0 : index
    %c0_14 = arith.constant 0 : index
    %c0_15 = arith.constant 0 : index
    %20 = vector.load %arg5[%c0_13, %c0_14, %c0_15] : memref<4x80x50xf32, #tpu.memory_space<vmem>>, vector<1x80x50xf32>
    %21 = vector.shape_cast %20 : vector<1x80x50xf32> to vector<80x50xf32>
    %cst_16 = arith.constant dense<0.000000e+00> : vector<2x50xf32>
    %22 = tpu.matmul %19, %21, %cst_16 {dimension_numbers = #tpu.dot_dimension_numbers<[1], [0], [0], [1], [0, 0, 1, 1], [], []>} : vector<2x80xf32>, vector<80x50xf32>, vector<2x50xf32> -> vector<2x50xf32>
    %23 = arith.addf %10, %22 : vector<2x50xf32>
    %c1_17 = arith.constant 1 : index
    %c0_18 = arith.constant 0 : index
    %c0_19 = arith.constant 0 : index
    %24 = vector.load %arg3[%c1_17, %c0_18, %c0_19] : memref<4x2x16xf32, #tpu.memory_space<vmem>>, vector<1x2x16xf32>
    %25 = vector.shape_cast %24 : vector<1x2x16xf32> to vector<2x16xf32>
    %cst_20 = arith.constant dense<0.000000e+00> : vector<2x80xf32>
    %26 = tpu.matmul %25, %9, %cst_20 {dimension_numbers = #tpu.dot_dimension_numbers<[1], [0], [0], [1], [0, 0, 1, 1], [], []>} : vector<2x16xf32>, vector<16x80xf32>, vector<2x80xf32> -> vector<2x80xf32>
    %c1_21 = arith.constant 1 : index
    %c0_22 = arith.constant 0 : index
    %c0_23 = arith.constant 0 : index
    %27 = vector.load %arg4[%c1_21, %c0_22, %c0_23] : memref<4x2x16xf32, #tpu.memory_space<vmem>>, vector<1x2x16xf32>
    %28 = vector.shape_cast %27 : vector<1x2x16xf32> to vector<2x16xf32>
    %cst_24 = arith.constant dense<0.000000e+00> : vector<2x80xf32>
    %29 = tpu.matmul %28, %9, %cst_24 {dimension_numbers = #tpu.dot_dimension_numbers<[1], [0], [0], [1], [0, 0, 1, 1], [], []>} : vector<2x16xf32>, vector<16x80xf32>, vector<2x80xf32> -> vector<2x80xf32>
    %30 = arith.maximumf %26, %29 : vector<2x80xf32>
    %cst_25 = arith.constant 0.000000e+00 : f32
    %31 = vector.broadcast %cst_25 : f32 to vector<2x80xf32>
    %32 = arith.maximumf %30, %31 : vector<2x80xf32>
    %c1_26 = arith.constant 1 : index
    %c0_27 = arith.constant 0 : index
    %c0_28 = arith.constant 0 : index
    %33 = vector.load %arg5[%c1_26, %c0_27, %c0_28] : memref<4x80x50xf32, #tpu.memory_space<vmem>>, vector<1x80x50xf32>
    %34 = vector.shape_cast %33 : vector<1x80x50xf32> to vector<80x50xf32>
    %cst_29 = arith.constant dense<0.000000e+00> : vector<2x50xf32>
    %35 = tpu.matmul %32, %34, %cst_29 {dimension_numbers = #tpu.dot_dimension_numbers<[1], [0], [0], [1], [0, 0, 1, 1], [], []>} : vector<2x80xf32>, vector<80x50xf32>, vector<2x50xf32> -> vector<2x50xf32>
    %36 = arith.addf %23, %35 : vector<2x50xf32>
    %c2 = arith.constant 2 : index
    %c0_30 = arith.constant 0 : index
    %c0_31 = arith.constant 0 : index
    %37 = vector.load %arg3[%c2, %c0_30, %c0_31] : memref<4x2x16xf32, #tpu.memory_space<vmem>>, vector<1x2x16xf32>
    %38 = vector.shape_cast %37 : vector<1x2x16xf32> to vector<2x16xf32>
    %cst_32 = arith.constant dense<0.000000e+00> : vector<2x80xf32>
    %39 = tpu.matmul %38, %9, %cst_32 {dimension_numbers = #tpu.dot_dimension_numbers<[1], [0], [0], [1], [0, 0, 1, 1], [], []>} : vector<2x16xf32>, vector<16x80xf32>, vector<2x80xf32> -> vector<2x80xf32>
    %c2_33 = arith.constant 2 : index
    %c0_34 = arith.constant 0 : index
    %c0_35 = arith.constant 0 : index
    %40 = vector.load %arg4[%c2_33, %c0_34, %c0_35] : memref<4x2x16xf32, #tpu.memory_space<vmem>>, vector<1x2x16xf32>
    %41 = vector.shape_cast %40 : vector<1x2x16xf32> to vector<2x16xf32>
    %cst_36 = arith.constant dense<0.000000e+00> : vector<2x80xf32>
    %42 = tpu.matmul %41, %9, %cst_36 {dimension_numbers = #tpu.dot_dimension_numbers<[1], [0], [0], [1], [0, 0, 1, 1], [], []>} : vector<2x16xf32>, vector<16x80xf32>, vector<2x80xf32> -> vector<2x80xf32>
    %43 = arith.maximumf %39, %42 : vector<2x80xf32>
    %cst_37 = arith.constant 0.000000e+00 : f32
    %44 = vector.broadcast %cst_37 : f32 to vector<2x80xf32>
    %45 = arith.maximumf %43, %44 : vector<2x80xf32>
    %c2_38 = arith.constant 2 : index
    %c0_39 = arith.constant 0 : index
    %c0_40 = arith.constant 0 : index
    %46 = vector.load %arg5[%c2_38, %c0_39, %c0_40] : memref<4x80x50xf32, #tpu.memory_space<vmem>>, vector<1x80x50xf32>
    %47 = vector.shape_cast %46 : vector<1x80x50xf32> to vector<80x50xf32>
    %cst_41 = arith.constant dense<0.000000e+00> : vector<2x50xf32>
    %48 = tpu.matmul %45, %47, %cst_41 {dimension_numbers = #tpu.dot_dimension_numbers<[1], [0], [0], [1], [0, 0, 1, 1], [], []>} : vector<2x80xf32>, vector<80x50xf32>, vector<2x50xf32> -> vector<2x50xf32>
    %49 = arith.addf %36, %48 : vector<2x50xf32>
    %c3 = arith.constant 3 : index
    %c0_42 = arith.constant 0 : index
    %c0_43 = arith.constant 0 : index
    %50 = vector.load %arg3[%c3, %c0_42, %c0_43] : memref<4x2x16xf32, #tpu.memory_space<vmem>>, vector<1x2x16xf32>
    %51 = vector.shape_cast %50 : vector<1x2x16xf32> to vector<2x16xf32>
    %cst_44 = arith.constant dense<0.000000e+00> : vector<2x80xf32>
    %52 = tpu.matmul %51, %9, %cst_44 {dimension_numbers = #tpu.dot_dimension_numbers<[1], [0], [0], [1], [0, 0, 1, 1], [], []>} : vector<2x16xf32>, vector<16x80xf32>, vector<2x80xf32> -> vector<2x80xf32>
    %c3_45 = arith.constant 3 : index
    %c0_46 = arith.constant 0 : index
    %c0_47 = arith.constant 0 : index
    %53 = vector.load %arg4[%c3_45, %c0_46, %c0_47] : memref<4x2x16xf32, #tpu.memory_space<vmem>>, vector<1x2x16xf32>
    %54 = vector.shape_cast %53 : vector<1x2x16xf32> to vector<2x16xf32>
    %cst_48 = arith.constant dense<0.000000e+00> : vector<2x80xf32>
    %55 = tpu.matmul %54, %9, %cst_48 {dimension_numbers = #tpu.dot_dimension_numbers<[1], [0], [0], [1], [0, 0, 1, 1], [], []>} : vector<2x16xf32>, vector<16x80xf32>, vector<2x80xf32> -> vector<2x80xf32>
    %56 = arith.maximumf %52, %55 : vector<2x80xf32>
    %cst_49 = arith.constant 0.000000e+00 : f32
    %57 = vector.broadcast %cst_49 : f32 to vector<2x80xf32>
    %58 = arith.maximumf %56, %57 : vector<2x80xf32>
    %c3_50 = arith.constant 3 : index
    %c0_51 = arith.constant 0 : index
    %c0_52 = arith.constant 0 : index
    %59 = vector.load %arg5[%c3_50, %c0_51, %c0_52] : memref<4x80x50xf32, #tpu.memory_space<vmem>>, vector<1x80x50xf32>
    %60 = vector.shape_cast %59 : vector<1x80x50xf32> to vector<80x50xf32>
    %cst_53 = arith.constant dense<0.000000e+00> : vector<2x50xf32>
    %61 = tpu.matmul %58, %60, %cst_53 {dimension_numbers = #tpu.dot_dimension_numbers<[1], [0], [0], [1], [0, 0, 1, 1], [], []>} : vector<2x80xf32>, vector<80x50xf32>, vector<2x50xf32> -> vector<2x50xf32>
    %62 = arith.addf %49, %61 : vector<2x50xf32>
    %c0_54 = arith.constant 0 : index
    %c0_55 = arith.constant 0 : index
    %63 = vector.load %arg6[%c0_54, %c0_55] : memref<1x50xf32, #tpu.memory_space<vmem>>, vector<1x50xf32>
    %64 = vector.broadcast %63 : vector<1x50xf32> to vector<2x50xf32>
    %65 = arith.addf %62, %64 : vector<2x50xf32>
    %c0_56 = arith.constant 0 : index
    %c0_57 = arith.constant 0 : index
    %66 = vector.load %arg7[%c0_56, %c0_57] : memref<2x50xf32, #tpu.memory_space<vmem>>, vector<2x50xf32>
    tpu.vector_store %arg7[%c0_56, %c0_57], %65 {strides = array<i32>} : memref<2x50xf32, #tpu.memory_space<vmem>>, vector<2x50xf32>,
    return
  }
  func.func @transform_0(%arg0: i32) -> (i32, i32) {
    %c0_i32 = arith.constant 0 : i32
    %c0_i32_0 = arith.constant 0 : i32
    return %arg0, %c0_i32 : i32, i32
  }
  func.func @transform_1(%arg0: i32) -> (i32, i32) {
    %c0_i32 = arith.constant 0 : i32
    %c0_i32_0 = arith.constant 0 : i32
    %c0_i32_1 = arith.constant 0 : i32
    return %c0_i32, %c0_i32_0 : i32, i32
  }
  func.func @transform_2(%arg0: i32) -> (i32, i32, i32) {
    %c0_i32 = arith.constant 0 : i32
    %c0_i32_0 = arith.constant 0 : i32
    %c0_i32_1 = arith.constant 0 : i32
    %c0_i32_2 = arith.constant 0 : i32
    return %c0_i32, %c0_i32_0, %c0_i32_1 : i32, i32, i32
  }
  func.func @transform_3(%arg0: i32) -> (i32, i32, i32) {
    %c0_i32 = arith.constant 0 : i32
    %c0_i32_0 = arith.constant 0 : i32
    %c0_i32_1 = arith.constant 0 : i32
    %c0_i32_2 = arith.constant 0 : i32
    return %c0_i32, %c0_i32_0, %c0_i32_1 : i32, i32, i32
  }
  func.func @transform_4(%arg0: i32) -> (i32, i32, i32) {
    %c0_i32 = arith.constant 0 : i32
    %c0_i32_0 = arith.constant 0 : i32
    %c0_i32_1 = arith.constant 0 : i32
    %c0_i32_2 = arith.constant 0 : i32
    return %c0_i32, %c0_i32_0, %c0_i32_1 : i32, i32, i32
  }
  func.func @transform_5(%arg0: i32) -> (i32, i32) {
    %c0_i32 = arith.constant 0 : i32
    %c0_i32_0 = arith.constant 0 : i32
    %c0_i32_1 = arith.constant 0 : i32
    return %c0_i32, %c0_i32_0 : i32, i32
  }
  func.func @transform_6(%arg0: i32) -> (i32, i32) {
    %c0_i32 = arith.constant 0 : i32
    %c0_i32_0 = arith.constant 0 : i32
    return %arg0, %c0_i32 : i32, i32
  }
}

module attributes {stable_mosaic.version = 11 : i64} {
  func.func @_tail_kernel(%arg0: i32, %arg1: memref<2x50xf32, #tpu.memory_space<vmem>>, %arg2: memref<1x50xf32, #tpu.memory_space<vmem>>, %arg3: memref<1x50xf32, #tpu.memory_space<vmem>>, %arg4: memref<50x10xf32, #tpu.memory_space<vmem>>, %arg5: memref<1x10xf32, #tpu.memory_space<vmem>>, %arg6: memref<2x10xf32, #tpu.memory_space<vmem>>) attributes {dimension_semantics = [#tpu.dimension_semantics<arbitrary>], iteration_bounds = array<i64: 1>, scalar_prefetch = 0 : i64, scratch_operands = 0 : i64, tpu.core_type = #tpu.core_type<tc>, window_params = [{pipeline_mode = #tpu.pipeline_mode<synchronous>, transform_indices = @transform_0, window_bounds = array<i64: 2, 50>}, {pipeline_mode = #tpu.pipeline_mode<synchronous>, transform_indices = @transform_1, window_bounds = array<i64: 1, 50>}, {pipeline_mode = #tpu.pipeline_mode<synchronous>, transform_indices = @transform_2, window_bounds = array<i64: 1, 50>}, {pipeline_mode = #tpu.pipeline_mode<synchronous>, transform_indices = @transform_3, window_bounds = array<i64: 50, 10>}, {pipeline_mode = #tpu.pipeline_mode<synchronous>, transform_indices = @transform_4, window_bounds = array<i64: 1, 10>}, {pipeline_mode = #tpu.pipeline_mode<synchronous>, transform_indices = @transform_5, window_bounds = array<i64: 2, 10>}]} {
    %c0 = arith.constant 0 : index
    %c0_0 = arith.constant 0 : index
    %0 = vector.load %arg1[%c0, %c0_0] : memref<2x50xf32, #tpu.memory_space<vmem>>, vector<2x50xf32>
    %cst = arith.constant dense<0.000000e+00> : vector<50xf32>
    %1 = vector.multi_reduction <add>, %0, %cst [0] : vector<2x50xf32> to vector<50xf32>
    %2 = vector.shape_cast %1 : vector<50xf32> to vector<1x50xf32>
    %cst_1 = arith.constant 2.000000e+00 : f32
    %3 = vector.broadcast %cst_1 : f32 to vector<1x50xf32>
    %4 = arith.divf %2, %3 : vector<1x50xf32>
    %5 = arith.mulf %0, %0 : vector<2x50xf32>
    %cst_2 = arith.constant dense<0.000000e+00> : vector<50xf32>
    %6 = vector.multi_reduction <add>, %5, %cst_2 [0] : vector<2x50xf32> to vector<50xf32>
    %7 = vector.shape_cast %6 : vector<50xf32> to vector<1x50xf32>
    %cst_3 = arith.constant 2.000000e+00 : f32
    %8 = vector.broadcast %cst_3 : f32 to vector<1x50xf32>
    %9 = arith.divf %7, %8 : vector<1x50xf32>
    %10 = arith.mulf %4, %4 : vector<1x50xf32>
    %11 = arith.subf %9, %10 : vector<1x50xf32>
    %12 = vector.broadcast %4 : vector<1x50xf32> to vector<2x50xf32>
    %13 = arith.subf %0, %12 : vector<2x50xf32>
    %cst_4 = arith.constant 9.99999974E-6 : f32
    %14 = vector.broadcast %cst_4 : f32 to vector<1x50xf32>
    %15 = arith.addf %11, %14 : vector<1x50xf32>
    %16 = math.rsqrt %15 : vector<1x50xf32>
    %17 = vector.broadcast %16 : vector<1x50xf32> to vector<2x50xf32>
    %18 = arith.mulf %13, %17 : vector<2x50xf32>
    %c0_5 = arith.constant 0 : index
    %c0_6 = arith.constant 0 : index
    %19 = vector.load %arg2[%c0_5, %c0_6] : memref<1x50xf32, #tpu.memory_space<vmem>>, vector<1x50xf32>
    %20 = vector.broadcast %19 : vector<1x50xf32> to vector<2x50xf32>
    %21 = arith.mulf %18, %20 : vector<2x50xf32>
    %c0_7 = arith.constant 0 : index
    %c0_8 = arith.constant 0 : index
    %22 = vector.load %arg3[%c0_7, %c0_8] : memref<1x50xf32, #tpu.memory_space<vmem>>, vector<1x50xf32>
    %23 = vector.broadcast %22 : vector<1x50xf32> to vector<2x50xf32>
    %24 = arith.addf %21, %23 : vector<2x50xf32>
    %cst_9 = arith.constant 0.000000e+00 : f32
    %25 = vector.broadcast %cst_9 : f32 to vector<2x50xf32>
    %26 = arith.maximumf %24, %25 : vector<2x50xf32>
    %c0_10 = arith.constant 0 : index
    %c0_11 = arith.constant 0 : index
    %27 = vector.load %arg4[%c0_10, %c0_11] : memref<50x10xf32, #tpu.memory_space<vmem>>, vector<50x10xf32>
    %cst_12 = arith.constant dense<0.000000e+00> : vector<2x10xf32>
    %28 = tpu.matmul %26, %27, %cst_12 {dimension_numbers = #tpu.dot_dimension_numbers<[1], [0], [0], [1], [0, 0, 1, 1], [], []>} : vector<2x50xf32>, vector<50x10xf32>, vector<2x10xf32> -> vector<2x10xf32>
    %c0_13 = arith.constant 0 : index
    %c0_14 = arith.constant 0 : index
    %29 = vector.load %arg5[%c0_13, %c0_14] : memref<1x10xf32, #tpu.memory_space<vmem>>, vector<1x10xf32>
    %30 = vector.broadcast %29 : vector<1x10xf32> to vector<2x10xf32>
    %31 = arith.addf %28, %30 : vector<2x10xf32>
    %cst_15 = arith.constant 0.000000e+00 : f32
    %32 = vector.broadcast %cst_15 : f32 to vector<2x10xf32>
    %33 = arith.maximumf %31, %32 : vector<2x10xf32>
    %c0_16 = arith.constant 0 : index
    %c0_17 = arith.constant 0 : index
    %34 = vector.load %arg6[%c0_16, %c0_17] : memref<2x10xf32, #tpu.memory_space<vmem>>, vector<2x10xf32>
    tpu.vector_store %arg6[%c0_16, %c0_17], %33 {strides = array<i32>} : memref<2x10xf32, #tpu.memory_space<vmem>>, vector<2x10xf32>,
    return
  }
  func.func @transform_0(%arg0: i32) -> (i32, i32) {
    %c0_i32 = arith.constant 0 : i32
    %c0_i32_0 = arith.constant 0 : i32
    %c0_i32_1 = arith.constant 0 : i32
    return %c0_i32, %c0_i32_0 : i32, i32
  }
  func.func @transform_1(%arg0: i32) -> (i32, i32) {
    %c0_i32 = arith.constant 0 : i32
    %c0_i32_0 = arith.constant 0 : i32
    %c0_i32_1 = arith.constant 0 : i32
    return %c0_i32, %c0_i32_0 : i32, i32
  }
  func.func @transform_2(%arg0: i32) -> (i32, i32) {
    %c0_i32 = arith.constant 0 : i32
    %c0_i32_0 = arith.constant 0 : i32
    %c0_i32_1 = arith.constant 0 : i32
    return %c0_i32, %c0_i32_0 : i32, i32
  }
  func.func @transform_3(%arg0: i32) -> (i32, i32) {
    %c0_i32 = arith.constant 0 : i32
    %c0_i32_0 = arith.constant 0 : i32
    %c0_i32_1 = arith.constant 0 : i32
    return %c0_i32, %c0_i32_0 : i32, i32
  }
  func.func @transform_4(%arg0: i32) -> (i32, i32) {
    %c0_i32 = arith.constant 0 : i32
    %c0_i32_0 = arith.constant 0 : i32
    %c0_i32_1 = arith.constant 0 : i32
    return %c0_i32, %c0_i32_0 : i32, i32
  }
  func.func @transform_5(%arg0: i32) -> (i32, i32) {
    %c0_i32 = arith.constant 0 : i32
    %c0_i32_0 = arith.constant 0 : i32
    %c0_i32_1 = arith.constant 0 : i32
    return %c0_i32, %c0_i32_0 : i32, i32
  }
}

</mosaic_0001>

<llo_original>
// kernel: tile.9
$region0: #{tile.9}
  %s0 = inlined_call_operand.vmem [shape: f32[20,4], index: 0, kind: input, shape index: {}]
  %s1 = inlined_call_operand.vmem [shape: f32[80], index: 1, kind: output, shape index: {}]
  $region1: #{tile.9} parent=0
    #allocation0 [shape = 'u8[4096]{0}', space=vmem, size = 0x1000, scoped, tag = 'scoped mem for output reshape']
    %v2 = vld [vmem:[%s0] sm:$0x1]
    %vm3 = vcmask 31744
    %4 = vst.msk [vmem:[#allocation0] sm:$0x1] %vm3, %v2
    %s5 = scalar_lea.vmem %s0, 19
    %v6 = vld [vmem:[%s5] sm:$0x1]
    %7 = vrot.lane.b32.xlu0 %v6, 76
    %v8 = vpop.permute.xlu0 %7
    %vm9 = vcmask 654944
    %10 = vst.msk [vmem:[#allocation0] sm:$0x1] %vm9, %v8
    %s11 = scalar_lea.vmem %s0, 18
    %v12 = vld [vmem:[%s11] sm:$0x1]
    %13 = vrot.lane.b32.xlu0 %v12, 72
    %v14 = vpop.permute.xlu0 %13
    %vm15 = vcmask 622144
    %16 = vst.msk [vmem:[#allocation0] sm:$0x1] %vm15, %v14
    %s17 = scalar_lea.vmem %s0, 17
    %v18 = vld [vmem:[%s17] sm:$0x1]
    %19 = vrot.lane.b32.xlu0 %v18, 68
    %v20 = vpop.permute.xlu0 %19
    %vm21 = vcmask 589344
    %22 = vst.msk [vmem:[#allocation0] sm:$0x1] %vm21, %v20
    %s23 = scalar_lea.vmem %s0, 16
    %v24 = vld [vmem:[%s23] sm:$0x1]
    %25 = vrot.lane.b32.xlu0 %v24, 64
    %v26 = vpop.permute.xlu0 %25
    %vm27 = vcmask 556544
    %28 = vst.msk [vmem:[#allocation0] sm:$0x1] %vm27, %v26
    %s29 = scalar_lea.vmem %s0, 15
    %v30 = vld [vmem:[%s29] sm:$0x1]
    %31 = vrot.lane.b32.xlu0 %v30, 60
    %v32 = vpop.permute.xlu0 %31
    %vm33 = vcmask 523744
    %34 = vst.msk [vmem:[#allocation0] sm:$0x1] %vm33, %v32
    %s35 = scalar_lea.vmem %s0, 14
    %v36 = vld [vmem:[%s35] sm:$0x1]
    %37 = vrot.lane.b32.xlu0 %v36, 56
    %v38 = vpop.permute.xlu0 %37
    %vm39 = vcmask 490944
    %40 = vst.msk [vmem:[#allocation0] sm:$0x1] %vm39, %v38
    %s41 = scalar_lea.vmem %s0, 13
    %v42 = vld [vmem:[%s41] sm:$0x1]
    %43 = vrot.lane.b32.xlu0 %v42, 52
    %v44 = vpop.permute.xlu0 %43
    %vm45 = vcmask 458144
    %46 = vst.msk [vmem:[#allocation0] sm:$0x1] %vm45, %v44
    %s47 = scalar_lea.vmem %s0, 12
    %v48 = vld [vmem:[%s47] sm:$0x1]
    %49 = vrot.lane.b32.xlu0 %v48, 48
    %v50 = vpop.permute.xlu0 %49
    %vm51 = vcmask 425344
    %52 = vst.msk [vmem:[#allocation0] sm:$0x1] %vm51, %v50
    %s53 = scalar_lea.vmem %s0, 11
    %v54 = vld [vmem:[%s53] sm:$0x1]
    %55 = vrot.lane.b32.xlu0 %v54, 44
    %v56 = vpop.permute.xlu0 %55
    %vm57 = vcmask 392544
    %58 = vst.msk [vmem:[#allocation0] sm:$0x1] %vm57, %v56
    %s59 = scalar_lea.vmem %s0, 10
    %v60 = vld [vmem:[%s59] sm:$0x1]
    %61 = vrot.lane.b32.xlu0 %v60, 40
    %v62 = vpop.permute.xlu0 %61
    %vm63 = vcmask 359744
    %64 = vst.msk [vmem:[#allocation0] sm:$0x1] %vm63, %v62
    %s65 = scalar_lea.vmem %s0, 9
    %v66 = vld [vmem:[%s65] sm:$0x1]
    %67 = vrot.lane.b32.xlu0 %v66, 36
    %v68 = vpop.permute.xlu0 %67
    %vm69 = vcmask 326944
    %70 = vst.msk [vmem:[#allocation0] sm:$0x1] %vm69, %v68
    %s71 = scalar_lea.vmem %s0, 8
    %v72 = vld [vmem:[%s71] sm:$0x1]
    %73 = vrot.lane.b32.xlu0 %v72, 32
    %v74 = vpop.permute.xlu0 %73
    %vm75 = vcmask 294144
    %76 = vst.msk [vmem:[#allocation0] sm:$0x1] %vm75, %v74
    %s77 = scalar_lea.vmem %s0, 7
    %v78 = vld [vmem:[%s77] sm:$0x1]
    %79 = vrot.lane.b32.xlu0 %v78, 28
    %v80 = vpop.permute.xlu0 %79
    %vm81 = vcmask 261344
    %82 = vst.msk [vmem:[#allocation0] sm:$0x1] %vm81, %v80
    %s83 = scalar_lea.vmem %s0, 6
    %v84 = vld [vmem:[%s83] sm:$0x1]
    %85 = vrot.lane.b32.xlu0 %v84, 24
    %v86 = vpop.permute.xlu0 %85
    %vm87 = vcmask 228544
    %88 = vst.msk [vmem:[#allocation0] sm:$0x1] %vm87, %v86
    %s89 = scalar_lea.vmem %s0, 5
    %v90 = vld [vmem:[%s89] sm:$0x1]
    %91 = vrot.lane.b32.xlu0 %v90, 20
    %v92 = vpop.permute.xlu0 %91
    %vm93 = vcmask 195744
    %94 = vst.msk [vmem:[#allocation0] sm:$0x1] %vm93, %v92
    %s95 = scalar_lea.vmem %s0, 4
    %v96 = vld [vmem:[%s95] sm:$0x1]
    %97 = vrot.lane.b32.xlu0 %v96, 16
    %v98 = vpop.permute.xlu0 %97
    %vm99 = vcmask 162944
    %100 = vst.msk [vmem:[#allocation0] sm:$0x1] %vm99, %v98
    %s101 = scalar_lea.vmem %s0, 3
    %v102 = vld [vmem:[%s101] sm:$0x1]
    %103 = vrot.lane.b32.xlu0 %v102, 12
    %v104 = vpop.permute.xlu0 %103
    %vm105 = vcmask 130144
    %106 = vst.msk [vmem:[#allocation0] sm:$0x1] %vm105, %v104
    %s107 = scalar_lea.vmem %s0, 2
    %v108 = vld [vmem:[%s107] sm:$0x1]
    %109 = vrot.lane.b32.xlu0 %v108, 8
    %v110 = vpop.permute.xlu0 %109
    %vm111 = vcmask 97344
    %112 = vst.msk [vmem:[#allocation0] sm:$0x1] %vm111, %v110
    %s113 = scalar_lea.vmem %s0, 1
    %v114 = vld [vmem:[%s113] sm:$0x1]
    %115 = vrot.lane.b32.xlu0 %v114, 4
    %v116 = vpop.permute.xlu0 %115
    %vm117 = vcmask 64544
    %118 = vst.msk [vmem:[#allocation0] sm:$0x1] %vm117, %v116
    %s120 = ssub.s32 2, 1
    %v121 = vld [vmem:[#allocation0] sm:%s120]
    %s123 = ssub.s32 2, 1
    %124 = vst [vmem:[%s1] sm:%s123] %v121

// kernel: tile.10
$region0: #{tile.10}
  #allocation0 [shape = 's32[1]{0}', space=sflag, size = 0x4, scoped, tag = 'scoped memory for tile.10']
  %s0 = inlined_call_operand.vmem [shape: f32[80], index: 0, kind: input, shape index: {}]
  %s1 = inlined_call_operand.vmem [shape: f32[2,80], index: 1, kind: output, shape index: {}]
  // Predicated region
  $region2: #{tile.10} parent=0 // pred_check
    _
  $region3: #{tile.10} parent=0 // pred_check_branch
    %3 = sbr.rel (0) target = $region5
  $region4: #{tile.10} parent=0 // pred_region
    _
  $region5: #{tile.10} parent=0 // pred_fallthru
    _
  %v4 = vld [vmem:[%s0] ss:$0 sm:$0xff]
  %5 = vst [vmem:[%s1] sm:$0x3] %v4

// kernel: tile.14
$region0: #{tile.14}
  %s0 = inlined_call_operand.vmem [shape: f32[2,80], index: 0, kind: input, shape index: {}]
  %s1 = inlined_call_operand.vmem [shape: f32[1,160], index: 1, kind: output, shape index: {}]
  $region1: #{tile.14} parent=0
    #allocation0 [shape = 'u8[8192]{0}', space=vmem, size = 0x2000, scoped, tag = 'scoped mem for output reshape']
    #allocation1 [shape = 'u8[4096]{0}', space=vmem, size = 0x1000, scoped, tag = 'scoped mem for input reshape']
    %s3 = ssub.s32 4, 1
    %v4 = vld [vmem:[%s0] sm:%s3]
    %5 = vst [vmem:[#allocation1] sm:%s3] %v4
    %v6 = vld [vmem:[#allocation1] sm:$0x1]
    %vm7 = vcmask 654336
    %8 = vst.msk [vmem:[#allocation0] sm:$0x1] %vm7, %v6
    %s9 = scalar_lea.vmem [#allocation1], 1
    %v10 = vld [vmem:[%s9] sm:$0x1]
    %s11 = scalar_lea.vmem [#allocation1], 1
    %v12 = vld [vmem:[%s11] sm:$0x1]
    %vm13 = vcmask 392192
    %v14 = vsel %vm13, %v12, %v10
    %15 = vrot.lane.b32.xlu0 %v14, 80
    %v16 = vpop.permute.xlu0 %15
    %vm17 = vcmask 261120
    %s18 = scalar_lea.vmem [#allocation0], 8
    %19 = vst.msk [vmem:[%s18] sm:$0x1] %vm17, %v16
    %vm20 = vcmask 1048192
    %21 = vst.msk [vmem:[#allocation0] sm:$0x1] %vm20, %v16
    %s23 = ssub.s32 2, 1
    %v24 = vld [vmem:[#allocation0] sm:%s23]
    %s26 = ssub.s32 2, 1
    %27 = vst [vmem:[%s1] sm:%s26] %v24
    %s28 = scalar_lea.vmem [#allocation0], 8
    %v29 = vld [vmem:[%s28] sm:%s23]
    %s31 = ssub.s32 2, 1
    %s32 = scalar_lea.vmem %s1, 1
    %33 = vst [vmem:[%s32] sm:%s31] %v29

// kernel: forward.5
$region0: #{forward.5}
  #allocation0 [shape = 'u32[]', space=smem, size = 0x4, offset = 0x4, fixed_abs, tag = 'smem constant byte address 0x4 - core index']
  #allocation1 [shape = 'u32[72,128]{1,0:T(1,128)}', space=vmem, size = 0x9000, scoped, tag = 'internal scratch']
  %s0 = inlined_call_operand.vmem [shape: f32[2,50], index: 0, kind: input, shape index: {}]
  %s1 = inlined_call_operand.vmem [shape: f32[1,50], index: 1, kind: input, shape index: {}]
  %s2 = inlined_call_operand.vmem [shape: f32[1,50], index: 2, kind: input, shape index: {}]
  %s3 = inlined_call_operand.vmem [shape: f32[50,10], index: 3, kind: input, shape index: {}]
  %s4 = inlined_call_operand.vmem [shape: f32[1,10], index: 4, kind: input, shape index: {}]
  %s5 = inlined_call_operand.hbm [shape: f32[2,10], index: 5, kind: output, shape index: {}]
  %s6 = sld [smem:[#allocation0]]
  $region30: #{forward.5} parent=0
    _
  %s8 = ssub.s32 1, %s6
  %s9 = scalar_select 0, %s8, %s6
  $region1: #{forward.5} parent=0
    #allocation2 [shape = 'u8[1024]{0}', space=vmem, size = 0x400, scoped, tag = 'output window, operand 0, single buffered']
    #allocation3 [shape = 's32[1]{0}', space=sflag, size = 0x4, scoped, tag = 'scoped memory for forward.5']
    %10 = vsyncpa [#allocation3], 0
    // Predicated region
    $region2: #{forward.5} parent=1 // pred_check
      _
    $region3: #{forward.5} parent=1 // pred_check_branch
      %12 = sbr.rel (0) target = $region5
    $region4: #{forward.5} parent=1 // pred_region
      _
    $region5: #{forward.5} parent=1 // pred_fallthru
      _
    // Predicated region
    $region6: #{forward.5} parent=1 // pred_check
      _
    $region7: #{forward.5} parent=1 // pred_check_branch
      %14 = sbr.rel (0) target = $region9
    $region8: #{forward.5} parent=1 // pred_region
      _
    $region9: #{forward.5} parent=1 // pred_fallthru
      _
    // Predicated region
    $region10: #{forward.5} parent=1 // pred_check
      _
    $region11: #{forward.5} parent=1 // pred_check_branch
      %16 = sbr.rel (0) target = $region13
    $region12: #{forward.5} parent=1 // pred_region
      _
    $region13: #{forward.5} parent=1 // pred_fallthru
      _
    // Predicated region
    $region14: #{forward.5} parent=1 // pred_check
      _
    $region15: #{forward.5} parent=1 // pred_check_branch
      %18 = sbr.rel (0) target = $region17
    $region16: #{forward.5} parent=1 // pred_region
      _
    $region17: #{forward.5} parent=1 // pred_fallthru
      _
    // Predicated region
    $region18: #{forward.5} parent=1 // pred_check
      _
    $region19: #{forward.5} parent=1 // pred_check_branch
      %20 = sbr.rel (0) target = $region21
    $region20: #{forward.5} parent=1 // pred_region
      _
    $region21: #{forward.5} parent=1 // pred_fallthru
      _
    %v21 = vld [vmem:[%s0] sm:$0x3]
    %vm22 = vcmask 402432
    %v23 = vsel %vm22, %v21, 0.0
    %v24 = vrot.slane %v23, 4
    %v25 = vadd.f32 %v23, %v24
    %v26 = vrot.slane %v25, 2
    %v27 = vadd.f32 %v25, %v26
    %v28 = vrot.slane %v27, 1
    %v29 = vadd.f32 %v27, %v28
    %v30 = vrcp.pop 2.0
    %v31 = vmul.f32 2.0, %v30
    %v32 = vsub.f32 1.0, %v31
    %v33 = vmul.f32 %v30, %v32
    %v34 = vadd.f32 %v30, %v33
    %vm35 = vweird.f32 %v30
    %v36 = vsel %vm35, %v30, %v34
    %v37 = vmul.f32 %v29, %v36
    %v38 = vmul.f32 %v21, %v21
    %v39 = vsel %vm22, %v38, 0.0
    %v40 = vrot.slane %v39, 4
    %v41 = vadd.f32 %v39, %v40
    %v42 = vrot.slane %v41, 2
    %v43 = vadd.f32 %v41, %v42
    %v44 = vrot.slane %v43, 1
    %v45 = vadd.f32 %v43, %v44
    %v46 = vmul.f32 %v45, %v36
    %v47 = vmul.f32 %v37, %v37
    %v48 = vsub.f32 %v46, %v47
    %v49 = vsub.f32 %v21, %v37
    %v50 = vadd.f32 %v48, 1e-05
    %v51 = vrsqrt.pop %v50
    %v52 = vmul.f32 %v51, %v50
    %v53 = vmul.f32 %v52, %v51
    %v54 = vmul.f32 0.5, %v53
    %v55 = vsub.f32 1.5, %v54
    %v56 = vmul.f32 %v51, %v55
    %vm57 = vweird.f32 %v50
    %vm58 = vweird.f32 %v51
    %vm59 = vmor %vm57, %vm58
    %v60 = vsel %vm59, %v51, %v56
    %v61 = vmul.f32 %v49, %v60
    %v62 = vld [vmem:[%s1] sm:$0x1]
    %v64 = vperm.slane %v62, 0
    %v66 = vmul.f32 %v61, %v64
    %v67 = vld [vmem:[%s2] sm:$0x1]
    %v69 = vperm.slane %v67, 0
    %v71 = vadd.f32 %v66, %v69
    %v72 = vmax.f32 %v71, 0.0
    %v73 = vld [vmem:[%s3] sm:$0xff]
    %v74 = vld [vmem:[%s3 + $0x8] sm:$0xff]
    %v75 = vld [vmem:[%s3 + $0x10] sm:$0xff]
    %v76 = vld [vmem:[%s3 + $0x18] sm:$0xff]
    %v77 = vld [vmem:[%s3 + $0x20] sm:$0xff]
    %v78 = vld [vmem:[%s3 + $0x28] sm:$0xff]
    %v79 = vld [vmem:[%s3 + $0x30] sm:$0x3]
    %v80 = vld [vmem:[%s4] sm:$0x1]
    %v82 = vperm.slane %v80, 0
    %vm84 = vcmask 408576
    %v86 = vsel %vm84, %v72, 0
    %vm88 = vcmask 1041408
    %v90 = vsel %vm88, %v79, 0
    %92 = vmatpush.msra.mxu0 0.0
    %93 = vmatpush.msra.mxu0 0.0
    %94 = vmatpush.msra.mxu0 0.0
    %95 = vmatpush.msra.mxu0 0.0
    %96 = vmatpush.msra.mxu0 0.0
    %97 = vmatpush.msra.mxu0 0.0
    %98 = vmatpush.msra.mxu0 0.0
    %99 = vmatpush.msra.mxu0 0.0
    %100 = vmatpush.msra.mxu0 0.0
    %101 = vmatpush.msra.mxu0 %v90
    %102 = vmatpush.msra.mxu0 %v78
    %103 = vmatpush.msra.mxu0 %v77
    %104 = vmatpush.msra.mxu0 %v76
    %105 = vmatpush.msra.mxu0 %v75
    %106 = vmatpush.msra.mxu0 %v74
    %107 = vmatpush.msra.mxu0 %v73
    %108 = vmatmul.f32.gmra.mxu0 %v86
    %v109 = vpop.f32.mrf.mxu0
    %v110 = vadd.f32 %v82, %v109
    %111 = vdwg.mxu0
    %v112 = vmax.f32 %v110, 0.0
    %vm113 = vcmask 74752
    %114 = vst.msk [vmem:[#allocation2] sm:$0x3] %vm113, %v112
    // Predicated region
    $region22: #{forward.5} parent=1 // pred_check
      _
    $region23: #{forward.5} parent=1 // pred_check_branch
      %116 = sbr.rel (0) target = $region25
    $region24: #{forward.5} parent=1 // pred_region
      %118 = vsyncadd [#allocation3], 0
      %s120 = sshll.u32 [#allocation2], 4
      %s121 = int_to_ptr.vmem [resolvable:$true] %s120
      %s122 = sshll.u32 %s5, 4
      %s123 = int_to_ptr.hbm [resolvable:$true] %s122
      %125 = dma.vmem_to_hbm [thread:$0]  %s121, 32, %s123, [#allocation3]
    $region25: #{forward.5} parent=1 // pred_fallthru
      _
    // Predicated region
    $region26: #{forward.5} parent=1 // pred_check
      _
    $region27: #{forward.5} parent=1 // pred_check_branch
      %127 = sbr.rel (0) target = $region29
    $region28: #{forward.5} parent=1 // pred_region
      %129 = dma.done [#allocation3], 32
    $region29: #{forward.5} parent=1 // pred_fallthru
      _
    %130 = vsyncpa [#allocation3], 1

// kernel: forward.4
$region0: #{forward.4}
  #allocation0 [shape = 'u32[]', space=smem, size = 0x4, offset = 0x4, fixed_abs, tag = 'smem constant byte address 0x4 - core index']
  #allocation1 [shape = 'u32[72,128]{1,0:T(1,128)}', space=vmem, size = 0x9000, scoped, tag = 'internal scratch']
  %s0 = inlined_call_operand.vmem [shape: f32[16,160], index: 0, kind: input, shape index: {}]
  %s1 = inlined_call_operand.vmem [shape: f32[2,160], index: 1, kind: input, shape index: {}]
  %s2 = inlined_call_operand.vmem [shape: f32[4,2,16], index: 2, kind: input, shape index: {}]
  %s3 = inlined_call_operand.vmem [shape: f32[4,2,16], index: 3, kind: input, shape index: {}]
  %s4 = inlined_call_operand.vmem [shape: f32[4,80,50], index: 4, kind: input, shape index: {}]
  %s5 = inlined_call_operand.vmem [shape: f32[1,50], index: 5, kind: input, shape index: {}]
  %s6 = inlined_call_operand.vmem [shape: f32[2,50], index: 6, kind: output, shape index: {}]
  %s7 = sld [smem:[#allocation0]]
  $region34: #{forward.4} parent=0
    _
  %s9 = ssub.s32 1, %s7
  %s10 = scalar_select 0, %s9, %s7
  // Predicated region
  $region2: #{forward.4} parent=0 // pred_check
    _
  $region3: #{forward.4} parent=0 // pred_check_branch
    %12 = sbr.rel (0) target = $region5
  $region4: #{forward.4} parent=0 // pred_region
    _
  $region5: #{forward.4} parent=0 // pred_fallthru
    _
  // Predicated region
  $region6: #{forward.4} parent=0 // pred_check
    _
  $region7: #{forward.4} parent=0 // pred_check_branch
    %14 = sbr.rel (0) target = $region9
  $region8: #{forward.4} parent=0 // pred_region
    _
  $region9: #{forward.4} parent=0 // pred_fallthru
    _
  // Predicated region
  $region10: #{forward.4} parent=0 // pred_check
    _
  $region11: #{forward.4} parent=0 // pred_check_branch
    %16 = sbr.rel (0) target = $region13
  $region12: #{forward.4} parent=0 // pred_region
    _
  $region13: #{forward.4} parent=0 // pred_fallthru
    _
  // Predicated region
  $region14: #{forward.4} parent=0 // pred_check
    _
  $region15: #{forward.4} parent=0 // pred_check_branch
    %18 = sbr.rel (0) target = $region17
  $region16: #{forward.4} parent=0 // pred_region
    _
  $region17: #{forward.4} parent=0 // pred_fallthru
    _
  // Predicated region
  $region18: #{forward.4} parent=0 // pred_check
    _
  $region19: #{forward.4} parent=0 // pred_check_branch
    %20 = sbr.rel (0) target = $region21
  $region20: #{forward.4} parent=0 // pred_region
    _
  $region21: #{forward.4} parent=0 // pred_fallthru
    _
  // Predicated region
  $region22: #{forward.4} parent=0 // pred_check
    _
  $region23: #{forward.4} parent=0 // pred_check_branch
    %22 = sbr.rel (0) target = $region25
  $region24: #{forward.4} parent=0 // pred_region
    _
  $region25: #{forward.4} parent=0 // pred_fallthru
    _
  %v23 = vld [vmem:[%s0] sm:$0xff]
  %v24 = vld [vmem:[%s0 + $0x8] sm:$0xff]
  %v25 = vld [vmem:[%s0 + $0x10] sm:$0xff]
  %v26 = vld [vmem:[%s0 + $0x18] sm:$0xff]
  %v27 = vld [vmem:[%s1] ss:$2 sm:$0x3]
  %v29 = vperm.slane %v27, 0
  %v30 = vperm.slane %v27, 1
  %v33 = vmul.f32 %v23, %v29
  %v34 = vmul.f32 %v24, %v30
  %v35 = vmul.f32 %v25, %v29
  %v36 = vmul.f32 %v26, %v30
  %s37 = scalar_lea.vmem %s1, 1
  %v38 = vld [vmem:[%s37] ss:$2 sm:$0x3]
  %v40 = vperm.slane %v38, 0
  %v41 = vperm.slane %v38, 1
  %v44 = vadd.f32 %v33, %v40
  %v45 = vadd.f32 %v34, %v41
  %v46 = vadd.f32 %v35, %v40
  %v47 = vadd.f32 %v36, %v41
  %52 = vrot.lane.b32.xlu0 %v44, 48
  %v53 = vpop.permute.xlu0 %52
  %54 = vrot.lane.b32.xlu0 %v45, 48
  %v55 = vpop.permute.xlu0 %54
  %56 = vrot.lane.b32.xlu0 %v46, 48
  %v57 = vpop.permute.xlu0 %56
  %58 = vrot.lane.b32.xlu0 %v47, 48
  %v59 = vpop.permute.xlu0 %58
  %vm60 = vcmask 392192
  %v61 = vsel %vm60, %v53, %v55
  %v62 = vsel %vm60, %v57, %v59
  %v65 = vmax.f32 %v44, %v61
  %v66 = vmax.f32 %v46, %v62
  %v67 = vld [vmem:[%s2] sm:$0x3]
  %vm68 = vcmask 130048
  %v70 = vsel %vm68, %v67, 0
  %72 = vmatpush.msra.mxu0 0.0
  %73 = vmatpush.msra.mxu0 0.0
  %74 = vmatpush.msra.mxu0 0.0
  %75 = vmatpush.msra.mxu0 0.0
  %76 = vmatpush.msra.mxu0 0.0
  %77 = vmatpush.msra.mxu0 0.0
  %78 = vmatpush.msra.mxu0 0.0
  %79 = vmatpush.msra.mxu0 0.0
  %80 = vmatpush.msra.mxu0 0.0
  %81 = vmatpush.msra.mxu0 0.0
  %82 = vmatpush.msra.mxu0 0.0
  %83 = vmatpush.msra.mxu0 0.0
  %84 = vmatpush.msra.mxu0 0.0
  %85 = vmatpush.msra.mxu0 0.0
  %86 = vmatpush.msra.mxu0 %v66
  %87 = vmatpush.msra.mxu0 %v65
  %88 = vmatmul.f32.gmra.mxu0 %v70
  %v89 = vpop.f32.mrf.mxu0
  %v90 = vadd.f32 0.0, %v89
  %91 = vdwg.mxu0
  %v92 = vld [vmem:[%s3] sm:$0x3]
  %v94 = vsel %vm68, %v92, 0
  %96 = vmatpush.msra.mxu0 0.0
  %97 = vmatpush.msra.mxu0 0.0
  %98 = vmatpush.msra.mxu0 0.0
  %99 = vmatpush.msra.mxu0 0.0
  %100 = vmatpush.msra.mxu0 0.0
  %101 = vmatpush.msra.mxu0 0.0
  %102 = vmatpush.msra.mxu0 0.0
  %103 = vmatpush.msra.mxu0 0.0
  %104 = vmatpush.msra.mxu0 0.0
  %105 = vmatpush.msra.mxu0 0.0
  %106 = vmatpush.msra.mxu0 0.0
  %107 = vmatpush.msra.mxu0 0.0
  %108 = vmatpush.msra.mxu0 0.0
  %109 = vmatpush.msra.mxu0 0.0
  %110 = vmatpush.msra.mxu0 %v66
  %111 = vmatpush.msra.mxu0 %v65
  %112 = vmatmul.f32.gmra.mxu0 %v94
  %v113 = vpop.f32.mrf.mxu0
  %v114 = vadd.f32 0.0, %v113
  %115 = vdwg.mxu0
  %v116 = vmax.f32 %v90, %v114
  %v117 = vmax.f32 %v116, 0.0
  %v118 = vld [vmem:[%s4] sm:$0xff]
  %v119 = vld [vmem:[%s4 + $0x8] sm:$0xff]
  %v120 = vld [vmem:[%s4 + $0x10] sm:$0xff]
  %v121 = vld [vmem:[%s4 + $0x18] sm:$0xff]
  %v122 = vld [vmem:[%s4 + $0x20] sm:$0xff]
  %v123 = vld [vmem:[%s4 + $0x28] sm:$0xff]
  %v124 = vld [vmem:[%s4 + $0x30] sm:$0xff]
  %v125 = vld [vmem:[%s4 + $0x38] sm:$0xff]
  %v126 = vld [vmem:[%s4 + $0x40] sm:$0xff]
  %v127 = vld [vmem:[%s4 + $0x48] sm:$0xff]
  %s128 = scalar_lea.vmem %s2, 2
  %v129 = vld [vmem:[%s128] sm:$0x3]
  %v131 = vsel %vm68, %v129, 0
  %133 = vmatpush.msra.mxu0 0.0
  %134 = vmatpush.msra.mxu0 0.0
  %135 = vmatpush.msra.mxu0 0.0
  %136 = vmatpush.msra.mxu0 0.0
  %137 = vmatpush.msra.mxu0 0.0
  %138 = vmatpush.msra.mxu0 0.0
  %139 = vmatpush.msra.mxu0 0.0
  %140 = vmatpush.msra.mxu0 0.0
  %141 = vmatpush.msra.mxu0 0.0
  %142 = vmatpush.msra.mxu0 0.0
  %143 = vmatpush.msra.mxu0 0.0
  %144 = vmatpush.msra.mxu0 0.0
  %145 = vmatpush.msra.mxu0 0.0
  %146 = vmatpush.msra.mxu0 0.0
  %147 = vmatpush.msra.mxu0 %v66
  %148 = vmatpush.msra.mxu0 %v65
  %149 = vmatmul.f32.gmra.mxu0 %v131
  %v150 = vpop.f32.mrf.mxu0
  %v151 = vadd.f32 0.0, %v150
  %152 = vdwg.mxu0
  %s153 = scalar_lea.vmem %s3, 2
  %v154 = vld [vmem:[%s153] sm:$0x3]
  %v156 = vsel %vm68, %v154, 0
  %158 = vmatpush.msra.mxu0 0.0
  %159 = vmatpush.msra.mxu0 0.0
  %160 = vmatpush.msra.mxu0 0.0
  %161 = vmatpush.msra.mxu0 0.0
  %162 = vmatpush.msra.mxu0 0.0
  %163 = vmatpush.msra.mxu0 0.0
  %164 = vmatpush.msra.mxu0 0.0
  %165 = vmatpush.msra.mxu0 0.0
  %166 = vmatpush.msra.mxu0 0.0
  %167 = vmatpush.msra.mxu0 0.0
  %168 = vmatpush.msra.mxu0 0.0
  %169 = vmatpush.msra.mxu0 0.0
  %170 = vmatpush.msra.mxu0 0.0
  %171 = vmatpush.msra.mxu0 0.0
  %172 = vmatpush.msra.mxu0 %v66
  %173 = vmatpush.msra.mxu0 %v65
  %174 = vmatmul.f32.gmra.mxu0 %v156
  %v175 = vpop.f32.mrf.mxu0
  %v176 = vadd.f32 0.0, %v175
  %177 = vdwg.mxu0
  %v178 = vmax.f32 %v151, %v176
  %v179 = vmax.f32 %v178, 0.0
  %s180 = scalar_lea.vmem %s4, 80
  %v181 = vld [vmem:[%s180] sm:$0xff]
  %v182 = vld [vmem:[%s180 + $0x8] sm:$0xff]
  %v183 = vld [vmem:[%s180 + $0x10] sm:$0xff]
  %v184 = vld [vmem:[%s180 + $0x18] sm:$0xff]
  %v185 = vld [vmem:[%s180 + $0x20] sm:$0xff]
  %v186 = vld [vmem:[%s180 + $0x28] sm:$0xff]
  %v187 = vld [vmem:[%s180 + $0x30] sm:$0xff]
  %v188 = vld [vmem:[%s180 + $0x38] sm:$0xff]
  %v189 = vld [vmem:[%s180 + $0x40] sm:$0xff]
  %v190 = vld [vmem:[%s180 + $0x48] sm:$0xff]
  %vm191 = vcmask 654336
  %v193 = vsel %vm191, %v179, 0
  %195 = vmatpush.msra.mxu0 0.0
  %196 = vmatpush.msra.mxu0 0.0
  %197 = vmatpush.msra.mxu0 0.0
  %198 = vmatpush.msra.mxu0 0.0
  %199 = vmatpush.msra.mxu0 0.0
  %200 = vmatpush.msra.mxu0 0.0
  %201 = vmatpush.msra.mxu0 %v190
  %202 = vmatpush.msra.mxu0 %v189
  %203 = vmatpush.msra.mxu0 %v188
  %204 = vmatpush.msra.mxu0 %v187
  %205 = vmatpush.msra.mxu0 %v186
  %206 = vmatpush.msra.mxu0 %v185
  %207 = vmatpush.msra.mxu0 %v184
  %208 = vmatpush.msra.mxu0 %v183
  %209 = vmatpush.msra.mxu0 %v182
  %210 = vmatpush.msra.mxu0 %v181
  %211 = vmatmul.f32.gmra.mxu0 %v193
  %v212 = vpop.f32.mrf.mxu0
  %v213 = vadd.f32 0.0, %v212
  %214 = vdwg.mxu0
  %v216 = vsel %vm191, %v117, 0
  %218 = vmatpush.msra.mxu0 0.0
  %219 = vmatpush.msra.mxu0 0.0
  %220 = vmatpush.msra.mxu0 0.0
  %221 = vmatpush.msra.mxu0 0.0
  %222 = vmatpush.msra.mxu0 0.0
  %223 = vmatpush.msra.mxu0 0.0
  %224 = vmatpush.msra.mxu0 %v127
  %225 = vmatpush.msra.mxu0 %v126
  %226 = vmatpush.msra.mxu0 %v125
  %227 = vmatpush.msra.mxu0 %v124
  %228 = vmatpush.msra.mxu0 %v123
  %229 = vmatpush.msra.mxu0 %v122
  %230 = vmatpush.msra.mxu0 %v121
  %231 = vmatpush.msra.mxu0 %v120
  %232 = vmatpush.msra.mxu0 %v119
  %233 = vmatpush.msra.mxu0 %v118
  %234 = vmatmul.f32.gmra.mxu0 %v216
  %v235 = vpop.f32.mrf.mxu0
  %v236 = vadd.f32 %v213, %v235
  %237 = vdwg.mxu0
  %s238 = scalar_lea.vmem %s2, 4
  %v239 = vld [vmem:[%s238] sm:$0x3]
  %v241 = vsel %vm68, %v239, 0
  %243 = vmatpush.msra.mxu0 0.0
  %244 = vmatpush.msra.mxu0 0.0
  %245 = vmatpush.msra.mxu0 0.0
  %246 = vmatpush.msra.mxu0 0.0
  %247 = vmatpush.msra.mxu0 0.0
  %248 = vmatpush.msra.mxu0 0.0
  %249 = vmatpush.msra.mxu0 0.0
  %250 = vmatpush.msra.mxu0 0.0
  %251 = vmatpush.msra.mxu0 0.0
  %252 = vmatpush.msra.mxu0 0.0
  %253 = vmatpush.msra.mxu0 0.0
  %254 = vmatpush.msra.mxu0 0.0
  %255 = vmatpush.msra.mxu0 0.0
  %256 = vmatpush.msra.mxu0 0.0
  %257 = vmatpush.msra.mxu0 %v66
  %258 = vmatpush.msra.mxu0 %v65
  %259 = vmatmul.f32.gmra.mxu0 %v241
  %v260 = vpop.f32.mrf.mxu0
  %v261 = vadd.f32 0.0, %v260
  %262 = vdwg.mxu0
  %s263 = scalar_lea.vmem %s3, 4
  %v264 = vld [vmem:[%s263] sm:$0x3]
  %v266 = vsel %vm68, %v264, 0
  %268 = vmatpush.msra.mxu0 0.0
  %269 = vmatpush.msra.mxu0 0.0
  %270 = vmatpush.msra.mxu0 0.0
  %271 = vmatpush.msra.mxu0 0.0
  %272 = vmatpush.msra.mxu0 0.0
  %273 = vmatpush.msra.mxu0 0.0
  %274 = vmatpush.msra.mxu0 0.0
  %275 = vmatpush.msra.mxu0 0.0
  %276 = vmatpush.msra.mxu0 0.0
  %277 = vmatpush.msra.mxu0 0.0
  %278 = vmatpush.msra.mxu0 0.0
  %279 = vmatpush.msra.mxu0 0.0
  %280 = vmatpush.msra.mxu0 0.0
  %281 = vmatpush.msra.mxu0 0.0
  %282 = vmatpush.msra.mxu0 %v66
  %283 = vmatpush.msra.mxu0 %v65
  %284 = vmatmul.f32.gmra.mxu0 %v266
  %v285 = vpop.f32.mrf.mxu0
  %v286 = vadd.f32 0.0, %v285
  %287 = vdwg.mxu0
  %v288 = vmax.f32 %v261, %v286
  %v289 = vmax.f32 %v288, 0.0
  %s290 = scalar_lea.vmem %s4, 160
  %v291 = vld [vmem:[%s290] sm:$0xff]
  %v292 = vld [vmem:[%s290 + $0x8] sm:$0xff]
  %v293 = vld [vmem:[%s290 + $0x10] sm:$0xff]
  %v294 = vld [vmem:[%s290 + $0x18] sm:$0xff]
  %v295 = vld [vmem:[%s290 + $0x20] sm:$0xff]
  %v296 = vld [vmem:[%s290 + $0x28] sm:$0xff]
  %v297 = vld [vmem:[%s290 + $0x30] sm:$0xff]
  %v298 = vld [vmem:[%s290 + $0x38] sm:$0xff]
  %v299 = vld [vmem:[%s290 + $0x40] sm:$0xff]
  %v300 = vld [vmem:[%s290 + $0x48] sm:$0xff]
  %v302 = vsel %vm191, %v289, 0
  %304 = vmatpush.msra.mxu0 0.0
  %305 = vmatpush.msra.mxu0 0.0
  %306 = vmatpush.msra.mxu0 0.0
  %307 = vmatpush.msra.mxu0 0.0
  %308 = vmatpush.msra.mxu0 0.0
  %309 = vmatpush.msra.mxu0 0.0
  %310 = vmatpush.msra.mxu0 %v300
  %311 = vmatpush.msra.mxu0 %v299
  %312 = vmatpush.msra.mxu0 %v298
  %313 = vmatpush.msra.mxu0 %v297
  %314 = vmatpush.msra.mxu0 %v296
  %315 = vmatpush.msra.mxu0 %v295
  %316 = vmatpush.msra.mxu0 %v294
  %317 = vmatpush.msra.mxu0 %v293
  %318 = vmatpush.msra.mxu0 %v292
  %319 = vmatpush.msra.mxu0 %v291
  %320 = vmatmul.f32.gmra.mxu0 %v302
  %v321 = vpop.f32.mrf.mxu0
  %v322 = vadd.f32 0.0, %v321
  %323 = vdwg.mxu0
  %v324 = vadd.f32 %v236, %v322
  %s325 = scalar_lea.vmem %s2, 6
  %v326 = vld [vmem:[%s325] sm:$0x3]
  %v328 = vsel %vm68, %v326, 0
  %330 = vmatpush.msra.mxu0 0.0
  %331 = vmatpush.msra.mxu0 0.0
  %332 = vmatpush.msra.mxu0 0.0
  %333 = vmatpush.msra.mxu0 0.0
  %334 = vmatpush.msra.mxu0 0.0
  %335 = vmatpush.msra.mxu0 0.0
  %336 = vmatpush.msra.mxu0 0.0
  %337 = vmatpush.msra.mxu0 0.0
  %338 = vmatpush.msra.mxu0 0.0
  %339 = vmatpush.msra.mxu0 0.0
  %340 = vmatpush.msra.mxu0 0.0
  %341 = vmatpush.msra.mxu0 0.0
  %342 = vmatpush.msra.mxu0 0.0
  %343 = vmatpush.msra.mxu0 0.0
  %344 = vmatpush.msra.mxu0 %v66
  %345 = vmatpush.msra.mxu0 %v65
  %346 = vmatmul.f32.gmra.mxu0 %v328
  %v347 = vpop.f32.mrf.mxu0
  %v348 = vadd.f32 0.0, %v347
  %349 = vdwg.mxu0
  %s350 = scalar_lea.vmem %s3, 6
  %v351 = vld [vmem:[%s350] sm:$0x3]
  %v353 = vsel %vm68, %v351, 0
  %355 = vmatpush.msra.mxu0 0.0
  %356 = vmatpush.msra.mxu0 0.0
  %357 = vmatpush.msra.mxu0 0.0
  %358 = vmatpush.msra.mxu0 0.0
  %359 = vmatpush.msra.mxu0 0.0
  %360 = vmatpush.msra.mxu0 0.0
  %361 = vmatpush.msra.mxu0 0.0
  %362 = vmatpush.msra.mxu0 0.0
  %363 = vmatpush.msra.mxu0 0.0
  %364 = vmatpush.msra.mxu0 0.0
  %365 = vmatpush.msra.mxu0 0.0
  %366 = vmatpush.msra.mxu0 0.0
  %367 = vmatpush.msra.mxu0 0.0
  %368 = vmatpush.msra.mxu0 0.0
  %369 = vmatpush.msra.mxu0 %v66
  %370 = vmatpush.msra.mxu0 %v65
  %371 = vmatmul.f32.gmra.mxu0 %v353
  %v372 = vpop.f32.mrf.mxu0
  %v373 = vadd.f32 0.0, %v372
  %374 = vdwg.mxu0
  %v375 = vmax.f32 %v348, %v373
  %v376 = vmax.f32 %v375, 0.0
  %s377 = scalar_lea.vmem %s4, 240
  %v378 = vld [vmem:[%s377] sm:$0xff]
  %v379 = vld [vmem:[%s377 + $0x8] sm:$0xff]
  %v380 = vld [vmem:[%s377 + $0x10] sm:$0xff]
  %v381 = vld [vmem:[%s377 + $0x18] sm:$0xff]
  %v382 = vld [vmem:[%s377 + $0x20] sm:$0xff]
  %v383 = vld [vmem:[%s377 + $0x28] sm:$0xff]
  %v384 = vld [vmem:[%s377 + $0x30] sm:$0xff]
  %v385 = vld [vmem:[%s377 + $0x38] sm:$0xff]
  %v386 = vld [vmem:[%s377 + $0x40] sm:$0xff]
  %v387 = vld [vmem:[%s377 + $0x48] sm:$0xff]
  %v389 = vsel %vm191, %v376, 0
  %391 = vmatpush.msra.mxu0 0.0
  %392 = vmatpush.msra.mxu0 0.0
  %393 = vmatpush.msra.mxu0 0.0
  %394 = vmatpush.msra.mxu0 0.0
  %395 = vmatpush.msra.mxu0 0.0
  %396 = vmatpush.msra.mxu0 0.0
  %397 = vmatpush.msra.mxu0 %v387
  %398 = vmatpush.msra.mxu0 %v386
  %399 = vmatpush.msra.mxu0 %v385
  %400 = vmatpush.msra.mxu0 %v384
  %401 = vmatpush.msra.mxu0 %v383
  %402 = vmatpush.msra.mxu0 %v382
  %403 = vmatpush.msra.mxu0 %v381
  %404 = vmatpush.msra.mxu0 %v380
  %405 = vmatpush.msra.mxu0 %v379
  %406 = vmatpush.msra.mxu0 %v378
  %407 = vmatmul.f32.gmra.mxu0 %v389
  %v408 = vpop.f32.mrf.mxu0
  %v409 = vadd.f32 0.0, %v408
  %410 = vdwg.mxu0
  %v411 = vadd.f32 %v324, %v409
  %v412 = vld [vmem:[%s5] sm:$0x1]
  %v414 = vperm.slane %v412, 0
  %v416 = vadd.f32 %v411, %v414
  %vm417 = vcmask 402432
  %418 = vst.msk [vmem:[%s6] sm:$0x3] %vm417, %v416
  // Predicated region
  $region26: #{forward.4} parent=0 // pred_check
    _
  $region27: #{forward.4} parent=0 // pred_check_branch
    %420 = sbr.rel (0) target = $region29
  $region28: #{forward.4} parent=0 // pred_region
    _
  $region29: #{forward.4} parent=0 // pred_fallthru
    _
  // Predicated region
  $region30: #{forward.4} parent=0 // pred_check
    _
  $region31: #{forward.4} parent=0 // pred_check_branch
    %422 = sbr.rel (0) target = $region33
  $region32: #{forward.4} parent=0 // pred_region
    _
  $region33: #{forward.4} parent=0 // pred_fallthru
    _

// kernel: forward.3
$region0: #{forward.3}
  #allocation0 [shape = 'u32[]', space=smem, size = 0x4, offset = 0x4, fixed_abs, tag = 'smem constant byte address 0x4 - core index']
  #allocation1 [shape = 'u32[72,128]{1,0:T(1,128)}', space=vmem, size = 0x9000, scoped, tag = 'internal scratch']
  #allocation2 [shape = 'f32[2,16,120]{2,1,0:T(8,128)}', space=vmem, size = 0x4000, scoped, tag = 'scratch operand']
  %s0 = inlined_call_operand.vmem [shape: f32[2,24,28], index: 0, kind: input, shape index: {}]
  %s1 = inlined_call_operand.vmem [shape: f32[2,24,28], index: 1, kind: input, shape index: {}]
  %s2 = inlined_call_operand.vmem [shape: f32[5,28,120], index: 2, kind: input, shape index: {}]
  %s3 = inlined_call_operand.vmem [shape: f32[5,28,120], index: 3, kind: input, shape index: {}]
  %s4 = inlined_call_operand.vmem [shape: f32[5,120,160], index: 4, kind: input, shape index: {}]
  %s5 = inlined_call_operand.vmem [shape: f32[1,160], index: 5, kind: input, shape index: {}]
  %s6 = inlined_call_operand.vmem [shape: f32[16,160], index: 6, kind: output, shape index: {0}]
  %s7 = inlined_call_operand.vmem [shape: f32[1,2,160], index: 7, kind: output, shape index: {1}]
  %8 = xla_tuple %s6, %s7
  %s9 = sld [smem:[#allocation0]]
  $region42: #{forward.3} parent=0
    _
  %s11 = ssub.s32 1, %s9
  %s12 = scalar_select 0, %s11, %s9
  // Predicated region
  $region2: #{forward.3} parent=0 // pred_check
    _
  $region3: #{forward.3} parent=0 // pred_check_branch
    %14 = sbr.rel (0) target = $region5
  $region4: #{forward.3} parent=0 // pred_region
    _
  $region5: #{forward.3} parent=0 // pred_fallthru
    _
  // Predicated region
  $region6: #{forward.3} parent=0 // pred_check
    _
  $region7: #{forward.3} parent=0 // pred_check_branch
    %16 = sbr.rel (0) target = $region9
  $region8: #{forward.3} parent=0 // pred_region
    _
  $region9: #{forward.3} parent=0 // pred_fallthru
    _
  // Predicated region
  $region10: #{forward.3} parent=0 // pred_check
    _
  $region11: #{forward.3} parent=0 // pred_check_branch
    %18 = sbr.rel (0) target = $region13
  $region12: #{forward.3} parent=0 // pred_region
    _
  $region13: #{forward.3} parent=0 // pred_fallthru
    _
  // Predicated region
  $region14: #{forward.3} parent=0 // pred_check
    _
  $region15: #{forward.3} parent=0 // pred_check_branch
    %20 = sbr.rel (0) target = $region17
  $region16: #{forward.3} parent=0 // pred_region
    _
  $region17: #{forward.3} parent=0 // pred_fallthru
    _
  // Predicated region
  $region18: #{forward.3} parent=0 // pred_check
    _
  $region19: #{forward.3} parent=0 // pred_check_branch
    %22 = sbr.rel (0) target = $region21
  $region20: #{forward.3} parent=0 // pred_region
    _
  $region21: #{forward.3} parent=0 // pred_fallthru
    _
  // Predicated region
  $region22: #{forward.3} parent=0 // pred_check
    _
  $region23: #{forward.3} parent=0 // pred_check_branch
    %24 = sbr.rel (0) target = $region25
  $region24: #{forward.3} parent=0 // pred_region
    _
  $region25: #{forward.3} parent=0 // pred_fallthru
    _
  %v25 = vld [vmem:[%s0] sm:$0xff]
  %v26 = vld [vmem:[%s0 + $0x8] sm:$0xff]
  %v27 = vld [vmem:[%s0 + $0x18] sm:$0xff]
  %v28 = vld [vmem:[%s0 + $0x20] sm:$0xff]
  %v29 = vld [vmem:[%s2] sm:$0xff]
  %v30 = vld [vmem:[%s2 + $0x8] sm:$0xff]
  %v31 = vld [vmem:[%s2 + $0x10] sm:$0xff]
  %v32 = vld [vmem:[%s2 + $0x18] sm:$0xf]
  %v33 = vld [vmem:[%s1] sm:$0xff]
  %v34 = vld [vmem:[%s1 + $0x8] sm:$0xff]
  %v35 = vld [vmem:[%s1 + $0x18] sm:$0xff]
  %v36 = vld [vmem:[%s1 + $0x20] sm:$0xff]
  %s37 = scalar_lea.vmem %s2, 32
  %v38 = vld [vmem:[%s37] sm:$0xff]
  %v39 = vld [vmem:[%s37 + $0x8] sm:$0xff]
  %v40 = vld [vmem:[%s37 + $0x10] sm:$0xff]
  %v41 = vld [vmem:[%s37 + $0x18] sm:$0xf]
  %vm42 = vcmask 228352
  %v44 = vsel %vm42, %v33, 0
  %v47 = vsel %vm42, %v34, 0
  %v50 = vsel %vm42, %v35, 0
  %v53 = vsel %vm42, %v36, 0
  %vm55 = vcmask 1043456
  %v57 = vsel %vm55, %v41, 0
  %59 = vmatpush.msra.mxu0 0.0
  %60 = vmatpush.msra.mxu0 0.0
  %61 = vmatpush.msra.mxu0 0.0
  %62 = vmatpush.msra.mxu0 0.0
  %63 = vmatpush.msra.mxu0 0.0
  %64 = vmatpush.msra.mxu0 0.0
  %65 = vmatpush.msra.mxu0 0.0
  %66 = vmatpush.msra.mxu0 0.0
  %67 = vmatpush.msra.mxu0 0.0
  %68 = vmatpush.msra.mxu0 0.0
  %69 = vmatpush.msra.mxu0 0.0
  %70 = vmatpush.msra.mxu0 0.0
  %71 = vmatpush.msra.mxu0 %v57
  %72 = vmatpush.msra.mxu0 %v40
  %73 = vmatpush.msra.mxu0 %v39
  %74 = vmatpush.msra.mxu0 %v38
  %75 = vmatmul.f32.gmra.mxu0 %v44
  %v76 = vpop.f32.mrf.mxu0
  %v77 = vadd.f32 0.0, %v76
  %78 = vmatmul.f32.gmra.mxu0 %v47
  %v79 = vpop.f32.mrf.mxu0
  %v80 = vadd.f32 0.0, %v79
  %81 = vmatmul.f32.gmra.mxu0 %v50
  %v82 = vpop.f32.mrf.mxu0
  %v83 = vadd.f32 0.0, %v82
  %84 = vmatmul.f32.gmra.mxu0 %v53
  %v85 = vpop.f32.mrf.mxu0
  %v86 = vadd.f32 0.0, %v85
  %87 = vdwg.mxu0
  %v89 = vsel %vm42, %v25, 0
  %v92 = vsel %vm42, %v26, 0
  %v95 = vsel %vm42, %v27, 0
  %v98 = vsel %vm42, %v28, 0
  %v101 = vsel %vm55, %v32, 0
  %103 = vmatpush.msra.mxu0 0.0
  %104 = vmatpush.msra.mxu0 0.0
  %105 = vmatpush.msra.mxu0 0.0
  %106 = vmatpush.msra.mxu0 0.0
  %107 = vmatpush.msra.mxu0 0.0
  %108 = vmatpush.msra.mxu0 0.0
  %109 = vmatpush.msra.mxu0 0.0
  %110 = vmatpush.msra.mxu0 0.0
  %111 = vmatpush.msra.mxu0 0.0
  %112 = vmatpush.msra.mxu0 0.0
  %113 = vmatpush.msra.mxu0 0.0
  %114 = vmatpush.msra.mxu0 0.0
  %115 = vmatpush.msra.mxu0 %v101
  %116 = vmatpush.msra.mxu0 %v31
  %117 = vmatpush.msra.mxu0 %v30
  %118 = vmatpush.msra.mxu0 %v29
  %119 = vmatmul.f32.gmra.mxu0 %v89
  %v120 = vpop.f32.mrf.mxu0
  %v121 = vadd.f32 %v77, %v120
  %122 = vmatmul.f32.gmra.mxu0 %v92
  %v123 = vpop.f32.mrf.mxu0
  %v124 = vadd.f32 %v80, %v123
  %125 = vmatmul.f32.gmra.mxu0 %v95
  %v126 = vpop.f32.mrf.mxu0
  %v127 = vadd.f32 %v83, %v126
  %128 = vmatmul.f32.gmra.mxu0 %v98
  %v129 = vpop.f32.mrf.mxu0
  %v130 = vadd.f32 %v86, %v129
  %131 = vdwg.mxu0
  %v132 = vld [vmem:[%s0 + $0x1] sm:$0xff]
  %v133 = vld [vmem:[%s0 + $0x9] sm:$0xff]
  %v134 = vld [vmem:[%s0 + $0x19] sm:$0xff]
  %v135 = vld [vmem:[%s0 + $0x21] sm:$0xff]
  %s136 = scalar_lea.vmem %s2, 64
  %v137 = vld [vmem:[%s136] sm:$0xff]
  %v138 = vld [vmem:[%s136 + $0x8] sm:$0xff]
  %v139 = vld [vmem:[%s136 + $0x10] sm:$0xff]
  %v140 = vld [vmem:[%s136 + $0x18] sm:$0xf]
  %v142 = vsel %vm42, %v132, 0
  %v145 = vsel %vm42, %v133, 0
  %v148 = vsel %vm42, %v134, 0
  %v151 = vsel %vm42, %v135, 0
  %v154 = vsel %vm55, %v140, 0
  %156 = vmatpush.msra.mxu0 0.0
  %157 = vmatpush.msra.mxu0 0.0
  %158 = vmatpush.msra.mxu0 0.0
  %159 = vmatpush.msra.mxu0 0.0
  %160 = vmatpush.msra.mxu0 0.0
  %161 = vmatpush.msra.mxu0 0.0
  %162 = vmatpush.msra.mxu0 0.0
  %163 = vmatpush.msra.mxu0 0.0
  %164 = vmatpush.msra.mxu0 0.0
  %165 = vmatpush.msra.mxu0 0.0
  %166 = vmatpush.msra.mxu0 0.0
  %167 = vmatpush.msra.mxu0 0.0
  %168 = vmatpush.msra.mxu0 %v154
  %169 = vmatpush.msra.mxu0 %v139
  %170 = vmatpush.msra.mxu0 %v138
  %171 = vmatpush.msra.mxu0 %v137
  %172 = vmatmul.f32.gmra.mxu0 %v142
  %v173 = vpop.f32.mrf.mxu0
  %v174 = vadd.f32 0.0, %v173
  %175 = vmatmul.f32.gmra.mxu0 %v145
  %v176 = vpop.f32.mrf.mxu0
  %v177 = vadd.f32 0.0, %v176
  %178 = vmatmul.f32.gmra.mxu0 %v148
  %v179 = vpop.f32.mrf.mxu0
  %v180 = vadd.f32 0.0, %v179
  %181 = vmatmul.f32.gmra.mxu0 %v151
  %v182 = vpop.f32.mrf.mxu0
  %v183 = vadd.f32 0.0, %v182
  %184 = vdwg.mxu0
  %v185 = vadd.f32 %v121, %v174
  %v186 = vadd.f32 %v124, %v177
  %v187 = vadd.f32 %v127, %v180
  %v188 = vadd.f32 %v130, %v183
  %v189 = vld [vmem:[%s1 + $0x1] sm:$0xff]
  %v190 = vld [vmem:[%s1 + $0x9] sm:$0xff]
  %v191 = vld [vmem:[%s1 + $0x19] sm:$0xff]
  %v192 = vld [vmem:[%s1 + $0x21] sm:$0xff]
  %s193 = scalar_lea.vmem %s2, 96
  %v194 = vld [vmem:[%s193] sm:$0xff]
  %v195 = vld [vmem:[%s193 + $0x8] sm:$0xff]
  %v196 = vld [vmem:[%s193 + $0x10] sm:$0xff]
  %v197 = vld [vmem:[%s193 + $0x18] sm:$0xf]
  %v199 = vsel %vm42, %v189, 0
  %v202 = vsel %vm42, %v190, 0
  %v205 = vsel %vm42, %v191, 0
  %v208 = vsel %vm42, %v192, 0
  %v211 = vsel %vm55, %v197, 0
  %213 = vmatpush.msra.mxu0 0.0
  %214 = vmatpush.msra.mxu0 0.0
  %215 = vmatpush.msra.mxu0 0.0
  %216 = vmatpush.msra.mxu0 0.0
  %217 = vmatpush.msra.mxu0 0.0
  %218 = vmatpush.msra.mxu0 0.0
  %219 = vmatpush.msra.mxu0 0.0
  %220 = vmatpush.msra.mxu0 0.0
  %221 = vmatpush.msra.mxu0 0.0
  %222 = vmatpush.msra.mxu0 0.0
  %223 = vmatpush.msra.mxu0 0.0
  %224 = vmatpush.msra.mxu0 0.0
  %225 = vmatpush.msra.mxu0 %v211
  %226 = vmatpush.msra.mxu0 %v196
  %227 = vmatpush.msra.mxu0 %v195
  %228 = vmatpush.msra.mxu0 %v194
  %229 = vmatmul.f32.gmra.mxu0 %v199
  %v230 = vpop.f32.mrf.mxu0
  %v231 = vadd.f32 0.0, %v230
  %232 = vmatmul.f32.gmra.mxu0 %v202
  %v233 = vpop.f32.mrf.mxu0
  %v234 = vadd.f32 0.0, %v233
  %235 = vmatmul.f32.gmra.mxu0 %v205
  %v236 = vpop.f32.mrf.mxu0
  %v237 = vadd.f32 0.0, %v236
  %238 = vmatmul.f32.gmra.mxu0 %v208
  %v239 = vpop.f32.mrf.mxu0
  %v240 = vadd.f32 0.0, %v239
  %241 = vdwg.mxu0
  %v242 = vadd.f32 %v185, %v231
  %v243 = vadd.f32 %v186, %v234
  %v244 = vadd.f32 %v187, %v237
  %v245 = vadd.f32 %v188, %v240
  %v246 = vld [vmem:[%s0 + $0x2] sm:$0xff]
  %v247 = vld [vmem:[%s0 + $0xa] sm:$0xff]
  %v248 = vld [vmem:[%s0 + $0x1a] sm:$0xff]
  %v249 = vld [vmem:[%s0 + $0x22] sm:$0xff]
  %s250 = scalar_lea.vmem %s2, 128
  %v251 = vld [vmem:[%s250] sm:$0xff]
  %v252 = vld [vmem:[%s250 + $0x8] sm:$0xff]
  %v253 = vld [vmem:[%s250 + $0x10] sm:$0xff]
  %v254 = vld [vmem:[%s250 + $0x18] sm:$0xf]
  %v256 = vsel %vm42, %v246, 0
  %v259 = vsel %vm42, %v247, 0
  %v262 = vsel %vm42, %v248, 0
  %v265 = vsel %vm42, %v249, 0
  %v268 = vsel %vm55, %v254, 0
  %270 = vmatpush.msra.mxu0 0.0
  %271 = vmatpush.msra.mxu0 0.0
  %272 = vmatpush.msra.mxu0 0.0
  %273 = vmatpush.msra.mxu0 0.0
  %274 = vmatpush.msra.mxu0 0.0
  %275 = vmatpush.msra.mxu0 0.0
  %276 = vmatpush.msra.mxu0 0.0
  %277 = vmatpush.msra.mxu0 0.0
  %278 = vmatpush.msra.mxu0 0.0
  %279 = vmatpush.msra.mxu0 0.0
  %280 = vmatpush.msra.mxu0 0.0
  %281 = vmatpush.msra.mxu0 0.0
  %282 = vmatpush.msra.mxu0 %v268
  %283 = vmatpush.msra.mxu0 %v253
  %284 = vmatpush.msra.mxu0 %v252
  %285 = vmatpush.msra.mxu0 %v251
  %286 = vmatmul.f32.gmra.mxu0 %v256
  %v287 = vpop.f32.mrf.mxu0
  %v288 = vadd.f32 0.0, %v287
  %289 = vmatmul.f32.gmra.mxu0 %v259
  %v290 = vpop.f32.mrf.mxu0
  %v291 = vadd.f32 0.0, %v290
  %292 = vmatmul.f32.gmra.mxu0 %v262
  %v293 = vpop.f32.mrf.mxu0
  %v294 = vadd.f32 0.0, %v293
  %295 = vmatmul.f32.gmra.mxu0 %v265
  %v296 = vpop.f32.mrf.mxu0
  %v297 = vadd.f32 0.0, %v296
  %298 = vdwg.mxu0
  %v299 = vadd.f32 %v242, %v288
  %v300 = vadd.f32 %v243, %v291
  %v301 = vadd.f32 %v244, %v294
  %v302 = vadd.f32 %v245, %v297
  %v303 = vld [vmem:[%s3] sm:$0xff]
  %v304 = vld [vmem:[%s3 + $0x8] sm:$0xff]
  %v305 = vld [vmem:[%s3 + $0x10] sm:$0xff]
  %v306 = vld [vmem:[%s3 + $0x18] sm:$0xf]
  %s307 = scalar_lea.vmem %s3, 32
  %v308 = vld [vmem:[%s307] sm:$0xff]
  %v309 = vld [vmem:[%s307 + $0x8] sm:$0xff]
  %v310 = vld [vmem:[%s307 + $0x10] sm:$0xff]
  %v311 = vld [vmem:[%s307 + $0x18] sm:$0xf]
  %v313 = vsel %vm55, %v311, 0
  %315 = vmatpush.msra.mxu0 0.0
  %316 = vmatpush.msra.mxu0 0.0
  %317 = vmatpush.msra.mxu0 0.0
  %318 = vmatpush.msra.mxu0 0.0
  %319 = vmatpush.msra.mxu0 0.0
  %320 = vmatpush.msra.mxu0 0.0
  %321 = vmatpush.msra.mxu0 0.0
  %322 = vmatpush.msra.mxu0 0.0
  %323 = vmatpush.msra.mxu0 0.0
  %324 = vmatpush.msra.mxu0 0.0
  %325 = vmatpush.msra.mxu0 0.0
  %326 = vmatpush.msra.mxu0 0.0
  %327 = vmatpush.msra.mxu0 %v313
  %328 = vmatpush.msra.mxu0 %v310
  %329 = vmatpush.msra.mxu0 %v309
  %330 = vmatpush.msra.mxu0 %v308
  %331 = vmatmul.f32.gmra.mxu0 %v44
  %v332 = vpop.f32.mrf.mxu0
  %v333 = vadd.f32 0.0, %v332
  %334 = vmatmul.f32.gmra.mxu0 %v47
  %v335 = vpop.f32.mrf.mxu0
  %v336 = vadd.f32 0.0, %v335
  %337 = vmatmul.f32.gmra.mxu0 %v50
  %v338 = vpop.f32.mrf.mxu0
  %v339 = vadd.f32 0.0, %v338
  %340 = vmatmul.f32.gmra.mxu0 %v53
  %v341 = vpop.f32.mrf.mxu0
  %v342 = vadd.f32 0.0, %v341
  %343 = vdwg.mxu0
  %v345 = vsel %vm55, %v306, 0
  %347 = vmatpush.msra.mxu0 0.0
  %348 = vmatpush.msra.mxu0 0.0
  %349 = vmatpush.msra.mxu0 0.0
  %350 = vmatpush.msra.mxu0 0.0
  %351 = vmatpush.msra.mxu0 0.0
  %352 = vmatpush.msra.mxu0 0.0
  %353 = vmatpush.msra.mxu0 0.0
  %354 = vmatpush.msra.mxu0 0.0
  %355 = vmatpush.msra.mxu0 0.0
  %356 = vmatpush.msra.mxu0 0.0
  %357 = vmatpush.msra.mxu0 0.0
  %358 = vmatpush.msra.mxu0 0.0
  %359 = vmatpush.msra.mxu0 %v345
  %360 = vmatpush.msra.mxu0 %v305
  %361 = vmatpush.msra.mxu0 %v304
  %362 = vmatpush.msra.mxu0 %v303
  %363 = vmatmul.f32.gmra.mxu0 %v89
  %v364 = vpop.f32.mrf.mxu0
  %v365 = vadd.f32 %v333, %v364
  %366 = vmatmul.f32.gmra.mxu0 %v92
  %v367 = vpop.f32.mrf.mxu0
  %v368 = vadd.f32 %v336, %v367
  %369 = vmatmul.f32.gmra.mxu0 %v95
  %v370 = vpop.f32.mrf.mxu0
  %v371 = vadd.f32 %v339, %v370
  %372 = vmatmul.f32.gmra.mxu0 %v98
  %v373 = vpop.f32.mrf.mxu0
  %v374 = vadd.f32 %v342, %v373
  %375 = vdwg.mxu0
  %s376 = scalar_lea.vmem %s3, 64
  %v377 = vld [vmem:[%s376] sm:$0xff]
  %v378 = vld [vmem:[%s376 + $0x8] sm:$0xff]
  %v379 = vld [vmem:[%s376 + $0x10] sm:$0xff]
  %v380 = vld [vmem:[%s376 + $0x18] sm:$0xf]
  %v382 = vsel %vm55, %v380, 0
  %384 = vmatpush.msra.mxu0 0.0
  %385 = vmatpush.msra.mxu0 0.0
  %386 = vmatpush.msra.mxu0 0.0
  %387 = vmatpush.msra.mxu0 0.0
  %388 = vmatpush.msra.mxu0 0.0
  %389 = vmatpush.msra.mxu0 0.0
  %390 = vmatpush.msra.mxu0 0.0
  %391 = vmatpush.msra.mxu0 0.0
  %392 = vmatpush.msra.mxu0 0.0
  %393 = vmatpush.msra.mxu0 0.0
  %394 = vmatpush.msra.mxu0 0.0
  %395 = vmatpush.msra.mxu0 0.0
  %396 = vmatpush.msra.mxu0 %v382
  %397 = vmatpush.msra.mxu0 %v379
  %398 = vmatpush.msra.mxu0 %v378
  %399 = vmatpush.msra.mxu0 %v377
  %400 = vmatmul.f32.gmra.mxu0 %v142
  %v401 = vpop.f32.mrf.mxu0
  %v402 = vadd.f32 0.0, %v401
  %403 = vmatmul.f32.gmra.mxu0 %v145
  %v404 = vpop.f32.mrf.mxu0
  %v405 = vadd.f32 0.0, %v404
  %406 = vmatmul.f32.gmra.mxu0 %v148
  %v407 = vpop.f32.mrf.mxu0
  %v408 = vadd.f32 0.0, %v407
  %409 = vmatmul.f32.gmra.mxu0 %v151
  %v410 = vpop.f32.mrf.mxu0
  %v411 = vadd.f32 0.0, %v410
  %412 = vdwg.mxu0
  %v413 = vadd.f32 %v365, %v402
  %v414 = vadd.f32 %v368, %v405
  %v415 = vadd.f32 %v371, %v408
  %v416 = vadd.f32 %v374, %v411
  %s417 = scalar_lea.vmem %s3, 96
  %v418 = vld [vmem:[%s417] sm:$0xff]
  %v419 = vld [vmem:[%s417 + $0x8] sm:$0xff]
  %v420 = vld [vmem:[%s417 + $0x10] sm:$0xff]
  %v421 = vld [vmem:[%s417 + $0x18] sm:$0xf]
  %v423 = vsel %vm55, %v421, 0
  %425 = vmatpush.msra.mxu0 0.0
  %426 = vmatpush.msra.mxu0 0.0
  %427 = vmatpush.msra.mxu0 0.0
  %428 = vmatpush.msra.mxu0 0.0
  %429 = vmatpush.msra.mxu0 0.0
  %430 = vmatpush.msra.mxu0 0.0
  %431 = vmatpush.msra.mxu0 0.0
  %432 = vmatpush.msra.mxu0 0.0
  %433 = vmatpush.msra.mxu0 0.0
  %434 = vmatpush.msra.mxu0 0.0
  %435 = vmatpush.msra.mxu0 0.0
  %436 = vmatpush.msra.mxu0 0.0
  %437 = vmatpush.msra.mxu0 %v423
  %438 = vmatpush.msra.mxu0 %v420
  %439 = vmatpush.msra.mxu0 %v419
  %440 = vmatpush.msra.mxu0 %v418
  %441 = vmatmul.f32.gmra.mxu0 %v199
  %v442 = vpop.f32.mrf.mxu0
  %v443 = vadd.f32 0.0, %v442
  %444 = vmatmul.f32.gmra.mxu0 %v202
  %v445 = vpop.f32.mrf.mxu0
  %v446 = vadd.f32 0.0, %v445
  %447 = vmatmul.f32.gmra.mxu0 %v205
  %v448 = vpop.f32.mrf.mxu0
  %v449 = vadd.f32 0.0, %v448
  %450 = vmatmul.f32.gmra.mxu0 %v208
  %v451 = vpop.f32.mrf.mxu0
  %v452 = vadd.f32 0.0, %v451
  %453 = vdwg.mxu0
  %v454 = vadd.f32 %v413, %v443
  %v455 = vadd.f32 %v414, %v446
  %v456 = vadd.f32 %v415, %v449
  %v457 = vadd.f32 %v416, %v452
  %s458 = scalar_lea.vmem %s3, 128
  %v459 = vld [vmem:[%s458] sm:$0xff]
  %v460 = vld [vmem:[%s458 + $0x8] sm:$0xff]
  %v461 = vld [vmem:[%s458 + $0x10] sm:$0xff]
  %v462 = vld [vmem:[%s458 + $0x18] sm:$0xf]
  %v464 = vsel %vm55, %v462, 0
  %466 = vmatpush.msra.mxu0 0.0
  %467 = vmatpush.msra.mxu0 0.0
  %468 = vmatpush.msra.mxu0 0.0
  %469 = vmatpush.msra.mxu0 0.0
  %470 = vmatpush.msra.mxu0 0.0
  %471 = vmatpush.msra.mxu0 0.0
  %472 = vmatpush.msra.mxu0 0.0
  %473 = vmatpush.msra.mxu0 0.0
  %474 = vmatpush.msra.mxu0 0.0
  %475 = vmatpush.msra.mxu0 0.0
  %476 = vmatpush.msra.mxu0 0.0
  %477 = vmatpush.msra.mxu0 0.0
  %478 = vmatpush.msra.mxu0 %v464
  %479 = vmatpush.msra.mxu0 %v461
  %480 = vmatpush.msra.mxu0 %v460
  %481 = vmatpush.msra.mxu0 %v459
  %482 = vmatmul.f32.gmra.mxu0 %v256
  %v483 = vpop.f32.mrf.mxu0
  %v484 = vadd.f32 0.0, %v483
  %485 = vmatmul.f32.gmra.mxu0 %v259
  %v486 = vpop.f32.mrf.mxu0
  %v487 = vadd.f32 0.0, %v486
  %488 = vmatmul.f32.gmra.mxu0 %v262
  %v489 = vpop.f32.mrf.mxu0
  %v490 = vadd.f32 0.0, %v489
  %491 = vmatmul.f32.gmra.mxu0 %v265
  %v492 = vpop.f32.mrf.mxu0
  %v493 = vadd.f32 0.0, %v492
  %494 = vdwg.mxu0
  %v495 = vadd.f32 %v454, %v484
  %v496 = vadd.f32 %v455, %v487
  %v497 = vadd.f32 %v456, %v490
  %v498 = vadd.f32 %v457, %v493
  %v499 = vmax.f32 %v299, %v495
  %v500 = vmax.f32 %v300, %v496
  %v501 = vmax.f32 %v301, %v497
  %v502 = vmax.f32 %v302, %v498
  %503 = vmatpush.msra.mxu0 0.0
  %504 = vmatpush.msra.mxu0 0.0
  %505 = vmatpush.msra.mxu0 0.0
  %506 = vmatpush.msra.mxu0 0.0
  %507 = vmatpush.msra.mxu0 0.0
  %508 = vmatpush.msra.mxu0 0.0
  %509 = vmatpush.msra.mxu0 0.0
  %510 = vmatpush.msra.mxu0 0.0
  %511 = vmatpush.msra.mxu0 0.0
  %512 = vmatpush.msra.mxu0 0.0
  %513 = vmatpush.msra.mxu0 0.0
  %514 = vmatpush.msra.mxu0 0.0
  %515 = vmatpush.msra.mxu0 %v57
  %516 = vmatpush.msra.mxu0 %v40
  %517 = vmatpush.msra.mxu0 %v39
  %518 = vmatpush.msra.mxu0 %v38
  %519 = vmatmul.f32.gmra.mxu0 %v142
  %v520 = vpop.f32.mrf.mxu0
  %v521 = vadd.f32 0.0, %v520
  %522 = vmatmul.f32.gmra.mxu0 %v145
  %v523 = vpop.f32.mrf.mxu0
  %v524 = vadd.f32 0.0, %v523
  %525 = vmatmul.f32.gmra.mxu0 %v148
  %v526 = vpop.f32.mrf.mxu0
  %v527 = vadd.f32 0.0, %v526
  %528 = vmatmul.f32.gmra.mxu0 %v151
  %v529 = vpop.f32.mrf.mxu0
  %v530 = vadd.f32 0.0, %v529
  %531 = vdwg.mxu0
  %532 = vmatpush.msra.mxu0 0.0
  %533 = vmatpush.msra.mxu0 0.0
  %534 = vmatpush.msra.mxu0 0.0
  %535 = vmatpush.msra.mxu0 0.0
  %536 = vmatpush.msra.mxu0 0.0
  %537 = vmatpush.msra.mxu0 0.0
  %538 = vmatpush.msra.mxu0 0.0
  %539 = vmatpush.msra.mxu0 0.0
  %540 = vmatpush.msra.mxu0 0.0
  %541 = vmatpush.msra.mxu0 0.0
  %542 = vmatpush.msra.mxu0 0.0
  %543 = vmatpush.msra.mxu0 0.0
  %544 = vmatpush.msra.mxu0 %v101
  %545 = vmatpush.msra.mxu0 %v31
  %546 = vmatpush.msra.mxu0 %v30
  %547 = vmatpush.msra.mxu0 %v29
  %548 = vmatmul.f32.gmra.mxu0 %v44
  %v549 = vpop.f32.mrf.mxu0
  %v550 = vadd.f32 %v521, %v549
  %551 = vmatmul.f32.gmra.mxu0 %v47
  %v552 = vpop.f32.mrf.mxu0
  %v553 = vadd.f32 %v524, %v552
  %554 = vmatmul.f32.gmra.mxu0 %v50
  %v555 = vpop.f32.mrf.mxu0
  %v556 = vadd.f32 %v527, %v555
  %557 = vmatmul.f32.gmra.mxu0 %v53
  %v558 = vpop.f32.mrf.mxu0
  %v559 = vadd.f32 %v530, %v558
  %560 = vdwg.mxu0
  %561 = vmatpush.msra.mxu0 0.0
  %562 = vmatpush.msra.mxu0 0.0
  %563 = vmatpush.msra.mxu0 0.0
  %564 = vmatpush.msra.mxu0 0.0
  %565 = vmatpush.msra.mxu0 0.0
  %566 = vmatpush.msra.mxu0 0.0
  %567 = vmatpush.msra.mxu0 0.0
  %568 = vmatpush.msra.mxu0 0.0
  %569 = vmatpush.msra.mxu0 0.0
  %570 = vmatpush.msra.mxu0 0.0
  %571 = vmatpush.msra.mxu0 0.0
  %572 = vmatpush.msra.mxu0 0.0
  %573 = vmatpush.msra.mxu0 %v154
  %574 = vmatpush.msra.mxu0 %v139
  %575 = vmatpush.msra.mxu0 %v138
  %576 = vmatpush.msra.mxu0 %v137
  %577 = vmatmul.f32.gmra.mxu0 %v199
  %v578 = vpop.f32.mrf.mxu0
  %v579 = vadd.f32 0.0, %v578
  %580 = vmatmul.f32.gmra.mxu0 %v202
  %v581 = vpop.f32.mrf.mxu0
  %v582 = vadd.f32 0.0, %v581
  %583 = vmatmul.f32.gmra.mxu0 %v205
  %v584 = vpop.f32.mrf.mxu0
  %v585 = vadd.f32 0.0, %v584
  %586 = vmatmul.f32.gmra.mxu0 %v208
  %v587 = vpop.f32.mrf.mxu0
  %v588 = vadd.f32 0.0, %v587
  %589 = vdwg.mxu0
  %v590 = vadd.f32 %v550, %v579
  %v591 = vadd.f32 %v553, %v582
  %v592 = vadd.f32 %v556, %v585
  %v593 = vadd.f32 %v559, %v588
  %594 = vmatpush.msra.mxu0 0.0
  %595 = vmatpush.msra.mxu0 0.0
  %596 = vmatpush.msra.mxu0 0.0
  %597 = vmatpush.msra.mxu0 0.0
  %598 = vmatpush.msra.mxu0 0.0
  %599 = vmatpush.msra.mxu0 0.0
  %600 = vmatpush.msra.mxu0 0.0
  %601 = vmatpush.msra.mxu0 0.0
  %602 = vmatpush.msra.mxu0 0.0
  %603 = vmatpush.msra.mxu0 0.0
  %604 = vmatpush.msra.mxu0 0.0
  %605 = vmatpush.msra.mxu0 0.0
  %606 = vmatpush.msra.mxu0 %v211
  %607 = vmatpush.msra.mxu0 %v196
  %608 = vmatpush.msra.mxu0 %v195
  %609 = vmatpush.msra.mxu0 %v194
  %610 = vmatmul.f32.gmra.mxu0 %v256
  %v611 = vpop.f32.mrf.mxu0
  %v612 = vadd.f32 0.0, %v611
  %613 = vmatmul.f32.gmra.mxu0 %v259
  %v614 = vpop.f32.mrf.mxu0
  %v615 = vadd.f32 0.0, %v614
  %616 = vmatmul.f32.gmra.mxu0 %v262
  %v617 = vpop.f32.mrf.mxu0
  %v618 = vadd.f32 0.0, %v617
  %619 = vmatmul.f32.gmra.mxu0 %v265
  %v620 = vpop.f32.mrf.mxu0
  %v621 = vadd.f32 0.0, %v620
  %622 = vdwg.mxu0
  %v623 = vadd.f32 %v590, %v612
  %v624 = vadd.f32 %v591, %v615
  %v625 = vadd.f32 %v592, %v618
  %v626 = vadd.f32 %v593, %v621
  %v627 = vld [vmem:[%s1 + $0x2] sm:$0xff]
  %v628 = vld [vmem:[%s1 + $0xa] sm:$0xff]
  %v629 = vld [vmem:[%s1 + $0x1a] sm:$0xff]
  %v630 = vld [vmem:[%s1 + $0x22] sm:$0xff]
  %v632 = vsel %vm42, %v627, 0
  %v635 = vsel %vm42, %v628, 0
  %v638 = vsel %vm42, %v629, 0
  %v641 = vsel %vm42, %v630, 0
  %643 = vmatpush.msra.mxu0 0.0
  %644 = vmatpush.msra.mxu0 0.0
  %645 = vmatpush.msra.mxu0 0.0
  %646 = vmatpush.msra.mxu0 0.0
  %647 = vmatpush.msra.mxu0 0.0
  %648 = vmatpush.msra.mxu0 0.0
  %649 = vmatpush.msra.mxu0 0.0
  %650 = vmatpush.msra.mxu0 0.0
  %651 = vmatpush.msra.mxu0 0.0
  %652 = vmatpush.msra.mxu0 0.0
  %653 = vmatpush.msra.mxu0 0.0
  %654 = vmatpush.msra.mxu0 0.0
  %655 = vmatpush.msra.mxu0 %v268
  %656 = vmatpush.msra.mxu0 %v253
  %657 = vmatpush.msra.mxu0 %v252
  %658 = vmatpush.msra.mxu0 %v251
  %659 = vmatmul.f32.gmra.mxu0 %v632
  %v660 = vpop.f32.mrf.mxu0
  %v661 = vadd.f32 0.0, %v660
  %662 = vmatmul.f32.gmra.mxu0 %v635
  %v663 = vpop.f32.mrf.mxu0
  %v664 = vadd.f32 0.0, %v663
  %665 = vmatmul.f32.gmra.mxu0 %v638
  %v666 = vpop.f32.mrf.mxu0
  %v667 = vadd.f32 0.0, %v666
  %668 = vmatmul.f32.gmra.mxu0 %v641
  %v669 = vpop.f32.mrf.mxu0
  %v670 = vadd.f32 0.0, %v669
  %671 = vdwg.mxu0
  %v672 = vadd.f32 %v623, %v661
  %v673 = vadd.f32 %v624, %v664
  %v674 = vadd.f32 %v625, %v667
  %v675 = vadd.f32 %v626, %v670
  %676 = vmatpush.msra.mxu0 0.0
  %677 = vmatpush.msra.mxu0 0.0
  %678 = vmatpush.msra.mxu0 0.0
  %679 = vmatpush.msra.mxu0 0.0
  %680 = vmatpush.msra.mxu0 0.0
  %681 = vmatpush.msra.mxu0 0.0
  %682 = vmatpush.msra.mxu0 0.0
  %683 = vmatpush.msra.mxu0 0.0
  %684 = vmatpush.msra.mxu0 0.0
  %685 = vmatpush.msra.mxu0 0.0
  %686 = vmatpush.msra.mxu0 0.0
  %687 = vmatpush.msra.mxu0 0.0
  %688 = vmatpush.msra.mxu0 %v313
  %689 = vmatpush.msra.mxu0 %v310
  %690 = vmatpush.msra.mxu0 %v309
  %691 = vmatpush.msra.mxu0 %v308
  %692 = vmatmul.f32.gmra.mxu0 %v142
  %v693 = vpop.f32.mrf.mxu0
  %v694 = vadd.f32 0.0, %v693
  %695 = vmatmul.f32.gmra.mxu0 %v145
  %v696 = vpop.f32.mrf.mxu0
  %v697 = vadd.f32 0.0, %v696
  %698 = vmatmul.f32.gmra.mxu0 %v148
  %v699 = vpop.f32.mrf.mxu0
  %v700 = vadd.f32 0.0, %v699
  %701 = vmatmul.f32.gmra.mxu0 %v151
  %v702 = vpop.f32.mrf.mxu0
  %v703 = vadd.f32 0.0, %v702
  %704 = vdwg.mxu0
  %705 = vmatpush.msra.mxu0 0.0
  %706 = vmatpush.msra.mxu0 0.0
  %707 = vmatpush.msra.mxu0 0.0
  %708 = vmatpush.msra.mxu0 0.0
  %709 = vmatpush.msra.mxu0 0.0
  %710 = vmatpush.msra.mxu0 0.0
  %711 = vmatpush.msra.mxu0 0.0
  %712 = vmatpush.msra.mxu0 0.0
  %713 = vmatpush.msra.mxu0 0.0
  %714 = vmatpush.msra.mxu0 0.0
  %715 = vmatpush.msra.mxu0 0.0
  %716 = vmatpush.msra.mxu0 0.0
  %717 = vmatpush.msra.mxu0 %v345
  %718 = vmatpush.msra.mxu0 %v305
  %719 = vmatpush.msra.mxu0 %v304
  %720 = vmatpush.msra.mxu0 %v303
  %721 = vmatmul.f32.gmra.mxu0 %v44
  %v722 = vpop.f32.mrf.mxu0
  %v723 = vadd.f32 %v694, %v722
  %724 = vmatmul.f32.gmra.mxu0 %v47
  %v725 = vpop.f32.mrf.mxu0
  %v726 = vadd.f32 %v697, %v725
  %727 = vmatmul.f32.gmra.mxu0 %v50
  %v728 = vpop.f32.mrf.mxu0
  %v729 = vadd.f32 %v700, %v728
  %730 = vmatmul.f32.gmra.mxu0 %v53
  %v731 = vpop.f32.mrf.mxu0
  %v732 = vadd.f32 %v703, %v731
  %733 = vdwg.mxu0
  %734 = vmatpush.msra.mxu0 0.0
  %735 = vmatpush.msra.mxu0 0.0
  %736 = vmatpush.msra.mxu0 0.0
  %737 = vmatpush.msra.mxu0 0.0
  %738 = vmatpush.msra.mxu0 0.0
  %739 = vmatpush.msra.mxu0 0.0
  %740 = vmatpush.msra.mxu0 0.0
  %741 = vmatpush.msra.mxu0 0.0
  %742 = vmatpush.msra.mxu0 0.0
  %743 = vmatpush.msra.mxu0 0.0
  %744 = vmatpush.msra.mxu0 0.0
  %745 = vmatpush.msra.mxu0 0.0
  %746 = vmatpush.msra.mxu0 %v382
  %747 = vmatpush.msra.mxu0 %v379
  %748 = vmatpush.msra.mxu0 %v378
  %749 = vmatpush.msra.mxu0 %v377
  %750 = vmatmul.f32.gmra.mxu0 %v199
  %v751 = vpop.f32.mrf.mxu0
  %v752 = vadd.f32 0.0, %v751
  %753 = vmatmul.f32.gmra.mxu0 %v202
  %v754 = vpop.f32.mrf.mxu0
  %v755 = vadd.f32 0.0, %v754
  %756 = vmatmul.f32.gmra.mxu0 %v205
  %v757 = vpop.f32.mrf.mxu0
  %v758 = vadd.f32 0.0, %v757
  %759 = vmatmul.f32.gmra.mxu0 %v208
  %v760 = vpop.f32.mrf.mxu0
  %v761 = vadd.f32 0.0, %v760
  %762 = vdwg.mxu0
  %v763 = vadd.f32 %v723, %v752
  %v764 = vadd.f32 %v726, %v755
  %v765 = vadd.f32 %v729, %v758
  %v766 = vadd.f32 %v732, %v761
  %767 = vmatpush.msra.mxu0 0.0
  %768 = vmatpush.msra.mxu0 0.0
  %769 = vmatpush.msra.mxu0 0.0
  %770 = vmatpush.msra.mxu0 0.0
  %771 = vmatpush.msra.mxu0 0.0
  %772 = vmatpush.msra.mxu0 0.0
  %773 = vmatpush.msra.mxu0 0.0
  %774 = vmatpush.msra.mxu0 0.0
  %775 = vmatpush.msra.mxu0 0.0
  %776 = vmatpush.msra.mxu0 0.0
  %777 = vmatpush.msra.mxu0 0.0
  %778 = vmatpush.msra.mxu0 0.0
  %779 = vmatpush.msra.mxu0 %v423
  %780 = vmatpush.msra.mxu0 %v420
  %781 = vmatpush.msra.mxu0 %v419
  %782 = vmatpush.msra.mxu0 %v418
  %783 = vmatmul.f32.gmra.mxu0 %v256
  %v784 = vpop.f32.mrf.mxu0
  %v785 = vadd.f32 0.0, %v784
  %786 = vmatmul.f32.gmra.mxu0 %v259
  %v787 = vpop.f32.mrf.mxu0
  %v788 = vadd.f32 0.0, %v787
  %789 = vmatmul.f32.gmra.mxu0 %v262
  %v790 = vpop.f32.mrf.mxu0
  %v791 = vadd.f32 0.0, %v790
  %792 = vmatmul.f32.gmra.mxu0 %v265
  %v793 = vpop.f32.mrf.mxu0
  %v794 = vadd.f32 0.0, %v793
  %795 = vdwg.mxu0
  %v796 = vadd.f32 %v763, %v785
  %v797 = vadd.f32 %v764, %v788
  %v798 = vadd.f32 %v765, %v791
  %v799 = vadd.f32 %v766, %v794
  %800 = vmatpush.msra.mxu0 0.0
  %801 = vmatpush.msra.mxu0 0.0
  %802 = vmatpush.msra.mxu0 0.0
  %803 = vmatpush.msra.mxu0 0.0
  %804 = vmatpush.msra.mxu0 0.0
  %805 = vmatpush.msra.mxu0 0.0
  %806 = vmatpush.msra.mxu0 0.0
  %807 = vmatpush.msra.mxu0 0.0
  %808 = vmatpush.msra.mxu0 0.0
  %809 = vmatpush.msra.mxu0 0.0
  %810 = vmatpush.msra.mxu0 0.0
  %811 = vmatpush.msra.mxu0 0.0
  %812 = vmatpush.msra.mxu0 %v464
  %813 = vmatpush.msra.mxu0 %v461
  %814 = vmatpush.msra.mxu0 %v460
  %815 = vmatpush.msra.mxu0 %v459
  %816 = vmatmul.f32.gmra.mxu0 %v632
  %v817 = vpop.f32.mrf.mxu0
  %v818 = vadd.f32 0.0, %v817
  %819 = vmatmul.f32.gmra.mxu0 %v635
  %v820 = vpop.f32.mrf.mxu0
  %v821 = vadd.f32 0.0, %v820
  %822 = vmatmul.f32.gmra.mxu0 %v638
  %v823 = vpop.f32.mrf.mxu0
  %v824 = vadd.f32 0.0, %v823
  %825 = vmatmul.f32.gmra.mxu0 %v641
  %v826 = vpop.f32.mrf.mxu0
  %v827 = vadd.f32 0.0, %v826
  %828 = vdwg.mxu0
  %v829 = vadd.f32 %v796, %v818
  %v830 = vadd.f32 %v797, %v821
  %v831 = vadd.f32 %v798, %v824
  %v832 = vadd.f32 %v799, %v827
  %v833 = vmax.f32 %v672, %v829
  %v834 = vmax.f32 %v673, %v830
  %v835 = vmax.f32 %v674, %v831
  %v836 = vmax.f32 %v675, %v832
  %v837 = vmax.f32 %v499, %v833
  %v838 = vmax.f32 %v500, %v834
  %v839 = vmax.f32 %v501, %v835
  %v840 = vmax.f32 %v502, %v836
  %v841 = vmax.f32 %v837, 0.0
  %v842 = vmax.f32 %v838, 0.0
  %v843 = vmax.f32 %v839, 0.0
  %v844 = vmax.f32 %v840, 0.0
  %vm845 = vcmask 982016
  %846 = vst.msk [vmem:[#allocation2] sm:$0xff] %vm845, %v841
  %847 = vst.msk [vmem:[#allocation2 + $0x8] sm:$0xff] %vm845, %v842
  %s848 = scalar_lea.vmem [#allocation2], 16
  %849 = vst.msk [vmem:[%s848] sm:$0xff] %vm845, %v843
  %850 = vst.msk [vmem:[%s848 + $0x8] sm:$0xff] %vm845, %v844
  %v851 = vld [vmem:[#allocation2] sm:$0xff]
  %v852 = vld [vmem:[#allocation2 + $0x10] sm:$0xff]
  %v853 = vld [vmem:[%s4] sm:$0xff]
  %v854 = vld [vmem:[%s4 + $0x8] sm:$0xff]
  %v855 = vld [vmem:[%s4 + $0x10] sm:$0xff]
  %v856 = vld [vmem:[%s4 + $0x18] sm:$0xff]
  %v857 = vld [vmem:[%s4 + $0x20] sm:$0xff]
  %v858 = vld [vmem:[%s4 + $0x28] sm:$0xff]
  %v859 = vld [vmem:[%s4 + $0x30] sm:$0xff]
  %v860 = vld [vmem:[%s4 + $0x38] sm:$0xff]
  %v861 = vld [vmem:[%s4 + $0x40] sm:$0xff]
  %v862 = vld [vmem:[%s4 + $0x48] sm:$0xff]
  %v863 = vld [vmem:[%s4 + $0x50] sm:$0xff]
  %v864 = vld [vmem:[%s4 + $0x58] sm:$0xff]
  %v865 = vld [vmem:[%s4 + $0x60] sm:$0xff]
  %v866 = vld [vmem:[%s4 + $0x68] sm:$0xff]
  %v867 = vld [vmem:[%s4 + $0x70] sm:$0xff]
  %v868 = vld [vmem:[%s4 + $0x78] sm:$0xff]
  %v869 = vld [vmem:[%s4 + $0x80] sm:$0xff]
  %v870 = vld [vmem:[%s4 + $0x88] sm:$0xff]
  %v871 = vld [vmem:[%s4 + $0x90] sm:$0xff]
  %v872 = vld [vmem:[%s4 + $0x98] sm:$0xff]
  %v873 = vld [vmem:[%s4 + $0xa0] sm:$0xff]
  %v874 = vld [vmem:[%s4 + $0xa8] sm:$0xff]
  %v875 = vld [vmem:[%s4 + $0xb0] sm:$0xff]
  %v876 = vld [vmem:[%s4 + $0xb8] sm:$0xff]
  %v877 = vld [vmem:[%s4 + $0xc0] sm:$0xff]
  %v878 = vld [vmem:[%s4 + $0xc8] sm:$0xff]
  %v879 = vld [vmem:[%s4 + $0xd0] sm:$0xff]
  %v880 = vld [vmem:[%s4 + $0xd8] sm:$0xff]
  %v881 = vld [vmem:[%s4 + $0xe0] sm:$0xff]
  %v882 = vld [vmem:[%s4 + $0xe8] sm:$0xff]
  %v883 = vld [vmem:[#allocation2 + $0x1] sm:$0xff]
  %v884 = vld [vmem:[#allocation2 + $0x11] sm:$0xff]
  %s885 = scalar_lea.vmem %s4, 240
  %v886 = vld [vmem:[%s885] sm:$0xff]
  %v887 = vld [vmem:[%s885 + $0x8] sm:$0xff]
  %v888 = vld [vmem:[%s885 + $0x10] sm:$0xff]
  %v889 = vld [vmem:[%s885 + $0x18] sm:$0xff]
  %v890 = vld [vmem:[%s885 + $0x20] sm:$0xff]
  %v891 = vld [vmem:[%s885 + $0x28] sm:$0xff]
  %v892 = vld [vmem:[%s885 + $0x30] sm:$0xff]
  %v893 = vld [vmem:[%s885 + $0x38] sm:$0xff]
  %v894 = vld [vmem:[%s885 + $0x40] sm:$0xff]
  %v895 = vld [vmem:[%s885 + $0x48] sm:$0xff]
  %v896 = vld [vmem:[%s885 + $0x50] sm:$0xff]
  %v897 = vld [vmem:[%s885 + $0x58] sm:$0xff]
  %v898 = vld [vmem:[%s885 + $0x60] sm:$0xff]
  %v899 = vld [vmem:[%s885 + $0x68] sm:$0xff]
  %v900 = vld [vmem:[%s885 + $0x70] sm:$0xff]
  %v901 = vld [vmem:[%s885 + $0x78] sm:$0xff]
  %v902 = vld [vmem:[%s885 + $0x80] sm:$0xff]
  %v903 = vld [vmem:[%s885 + $0x88] sm:$0xff]
  %v904 = vld [vmem:[%s885 + $0x90] sm:$0xff]
  %v905 = vld [vmem:[%s885 + $0x98] sm:$0xff]
  %v906 = vld [vmem:[%s885 + $0xa0] sm:$0xff]
  %v907 = vld [vmem:[%s885 + $0xa8] sm:$0xff]
  %v908 = vld [vmem:[%s885 + $0xb0] sm:$0xff]
  %v909 = vld [vmem:[%s885 + $0xb8] sm:$0xff]
  %v910 = vld [vmem:[%s885 + $0xc0] sm:$0xff]
  %v911 = vld [vmem:[%s885 + $0xc8] sm:$0xff]
  %v912 = vld [vmem:[%s885 + $0xd0] sm:$0xff]
  %v913 = vld [vmem:[%s885 + $0xd8] sm:$0xff]
  %v914 = vld [vmem:[%s885 + $0xe0] sm:$0xff]
  %v915 = vld [vmem:[%s885 + $0xe8] sm:$0xff]
  %v917 = vsel %vm845, %v883, 0
  %v920 = vsel %vm845, %v884, 0
  %922 = vmatpush.msra.mxu0 0.0
  %923 = vmatpush.msra.mxu0 %v914
  %924 = vmatpush.msra.mxu0 %v912
  %925 = vmatpush.msra.mxu0 %v910
  %926 = vmatpush.msra.mxu0 %v908
  %927 = vmatpush.msra.mxu0 %v906
  %928 = vmatpush.msra.mxu0 %v904
  %929 = vmatpush.msra.mxu0 %v902
  %930 = vmatpush.msra.mxu0 %v900
  %931 = vmatpush.msra.mxu0 %v898
  %932 = vmatpush.msra.mxu0 %v896
  %933 = vmatpush.msra.mxu0 %v894
  %934 = vmatpush.msra.mxu0 %v892
  %935 = vmatpush.msra.mxu0 %v890
  %936 = vmatpush.msra.mxu0 %v888
  %937 = vmatpush.msra.mxu0 %v886
  %938 = vmatmul.f32.gmra.mxu0 %v917
  %v939 = vpop.f32.mrf.mxu0
  %v940 = vadd.f32 0.0, %v939
  %941 = vmatmul.f32.gmra.mxu0 %v920
  %v942 = vpop.f32.mrf.mxu0
  %v943 = vadd.f32 0.0, %v942
  %944 = vdwg.mxu0
  %945 = vmatpush.msra.mxu0 0.0
  %946 = vmatpush.msra.mxu0 %v915
  %947 = vmatpush.msra.mxu0 %v913
  %948 = vmatpush.msra.mxu0 %v911
  %949 = vmatpush.msra.mxu0 %v909
  %950 = vmatpush.msra.mxu0 %v907
  %951 = vmatpush.msra.mxu0 %v905
  %952 = vmatpush.msra.mxu0 %v903
  %953 = vmatpush.msra.mxu0 %v901
  %954 = vmatpush.msra.mxu0 %v899
  %955 = vmatpush.msra.mxu0 %v897
  %956 = vmatpush.msra.mxu0 %v895
  %957 = vmatpush.msra.mxu0 %v893
  %958 = vmatpush.msra.mxu0 %v891
  %959 = vmatpush.msra.mxu0 %v889
  %960 = vmatpush.msra.mxu0 %v887
  %961 = vmatmul.f32.gmra.mxu0 %v917
  %v962 = vpop.f32.mrf.mxu0
  %v963 = vadd.f32 0.0, %v962
  %964 = vmatmul.f32.gmra.mxu0 %v920
  %v965 = vpop.f32.mrf.mxu0
  %v966 = vadd.f32 0.0, %v965
  %967 = vdwg.mxu0
  %v969 = vsel %vm845, %v851, 0
  %v972 = vsel %vm845, %v852, 0
  %974 = vmatpush.msra.mxu0 0.0
  %975 = vmatpush.msra.mxu0 %v881
  %976 = vmatpush.msra.mxu0 %v879
  %977 = vmatpush.msra.mxu0 %v877
  %978 = vmatpush.msra.mxu0 %v875
  %979 = vmatpush.msra.mxu0 %v873
  %980 = vmatpush.msra.mxu0 %v871
  %981 = vmatpush.msra.mxu0 %v869
  %982 = vmatpush.msra.mxu0 %v867
  %983 = vmatpush.msra.mxu0 %v865
  %984 = vmatpush.msra.mxu0 %v863
  %985 = vmatpush.msra.mxu0 %v861
  %986 = vmatpush.msra.mxu0 %v859
  %987 = vmatpush.msra.mxu0 %v857
  %988 = vmatpush.msra.mxu0 %v855
  %989 = vmatpush.msra.mxu0 %v853
  %990 = vmatmul.f32.gmra.mxu0 %v969
  %v991 = vpop.f32.mrf.mxu0
  %v992 = vadd.f32 %v940, %v991
  %993 = vmatmul.f32.gmra.mxu0 %v972
  %v994 = vpop.f32.mrf.mxu0
  %v995 = vadd.f32 %v943, %v994
  %996 = vdwg.mxu0
  %997 = vmatpush.msra.mxu0 0.0
  %998 = vmatpush.msra.mxu0 %v882
  %999 = vmatpush.msra.mxu0 %v880
  %1000 = vmatpush.msra.mxu0 %v878
  %1001 = vmatpush.msra.mxu0 %v876
  %1002 = vmatpush.msra.mxu0 %v874
  %1003 = vmatpush.msra.mxu0 %v872
  %1004 = vmatpush.msra.mxu0 %v870
  %1005 = vmatpush.msra.mxu0 %v868
  %1006 = vmatpush.msra.mxu0 %v866
  %1007 = vmatpush.msra.mxu0 %v864
  %1008 = vmatpush.msra.mxu0 %v862
  %1009 = vmatpush.msra.mxu0 %v860
  %1010 = vmatpush.msra.mxu0 %v858
  %1011 = vmatpush.msra.mxu0 %v856
  %1012 = vmatpush.msra.mxu0 %v854
  %1013 = vmatmul.f32.gmra.mxu0 %v969
  %v1014 = vpop.f32.mrf.mxu0
  %v1015 = vadd.f32 %v963, %v1014
  %1016 = vmatmul.f32.gmra.mxu0 %v972
  %v1017 = vpop.f32.mrf.mxu0
  %v1018 = vadd.f32 %v966, %v1017
  %1019 = vdwg.mxu0
  %v1020 = vld [vmem:[#allocation2 + $0x2] sm:$0xff]
  %v1021 = vld [vmem:[#allocation2 + $0x12] sm:$0xff]
  %s1022 = scalar_lea.vmem %s4, 480
  %v1023 = vld [vmem:[%s1022] sm:$0xff]
  %v1024 = vld [vmem:[%s1022 + $0x8] sm:$0xff]
  %v1025 = vld [vmem:[%s1022 + $0x10] sm:$0xff]
  %v1026 = vld [vmem:[%s1022 + $0x18] sm:$0xff]
  %v1027 = vld [vmem:[%s1022 + $0x20] sm:$0xff]
  %v1028 = vld [vmem:[%s1022 + $0x28] sm:$0xff]
  %v1029 = vld [vmem:[%s1022 + $0x30] sm:$0xff]
  %v1030 = vld [vmem:[%s1022 + $0x38] sm:$0xff]
  %v1031 = vld [vmem:[%s1022 + $0x40] sm:$0xff]
  %v1032 = vld [vmem:[%s1022 + $0x48] sm:$0xff]
  %v1033 = vld [vmem:[%s1022 + $0x50] sm:$0xff]
  %v1034 = vld [vmem:[%s1022 + $0x58] sm:$0xff]
  %v1035 = vld [vmem:[%s1022 + $0x60] sm:$0xff]
  %v1036 = vld [vmem:[%s1022 + $0x68] sm:$0xff]
  %v1037 = vld [vmem:[%s1022 + $0x70] sm:$0xff]
  %v1038 = vld [vmem:[%s1022 + $0x78] sm:$0xff]
  %v1039 = vld [vmem:[%s1022 + $0x80] sm:$0xff]
  %v1040 = vld [vmem:[%s1022 + $0x88] sm:$0xff]
  %v1041 = vld [vmem:[%s1022 + $0x90] sm:$0xff]
  %v1042 = vld [vmem:[%s1022 + $0x98] sm:$0xff]
  %v1043 = vld [vmem:[%s1022 + $0xa0] sm:$0xff]
  %v1044 = vld [vmem:[%s1022 + $0xa8] sm:$0xff]
  %v1045 = vld [vmem:[%s1022 + $0xb0] sm:$0xff]
  %v1046 = vld [vmem:[%s1022 + $0xb8] sm:$0xff]
  %v1047 = vld [vmem:[%s1022 + $0xc0] sm:$0xff]
  %v1048 = vld [vmem:[%s1022 + $0xc8] sm:$0xff]
  %v1049 = vld [vmem:[%s1022 + $0xd0] sm:$0xff]
  %v1050 = vld [vmem:[%s1022 + $0xd8] sm:$0xff]
  %v1051 = vld [vmem:[%s1022 + $0xe0] sm:$0xff]
  %v1052 = vld [vmem:[%s1022 + $0xe8] sm:$0xff]
  %v1054 = vsel %vm845, %v1020, 0
  %v1057 = vsel %vm845, %v1021, 0
  %1059 = vmatpush.msra.mxu0 0.0
  %1060 = vmatpush.msra.mxu0 %v1051
  %1061 = vmatpush.msra.mxu0 %v1049
  %1062 = vmatpush.msra.mxu0 %v1047
  %1063 = vmatpush.msra.mxu0 %v1045
  %1064 = vmatpush.msra.mxu0 %v1043
  %1065 = vmatpush.msra.mxu0 %v1041
  %1066 = vmatpush.msra.mxu0 %v1039
  %1067 = vmatpush.msra.mxu0 %v1037
  %1068 = vmatpush.msra.mxu0 %v1035
  %1069 = vmatpush.msra.mxu0 %v1033
  %1070 = vmatpush.msra.mxu0 %v1031
  %1071 = vmatpush.msra.mxu0 %v1029
  %1072 = vmatpush.msra.mxu0 %v1027
  %1073 = vmatpush.msra.mxu0 %v1025
  %1074 = vmatpush.msra.mxu0 %v1023
  %1075 = vmatmul.f32.gmra.mxu0 %v1054
  %v1076 = vpop.f32.mrf.mxu0
  %v1077 = vadd.f32 0.0, %v1076
  %1078 = vmatmul.f32.gmra.mxu0 %v1057
  %v1079 = vpop.f32.mrf.mxu0
  %v1080 = vadd.f32 0.0, %v1079
  %1081 = vdwg.mxu0
  %1082 = vmatpush.msra.mxu0 0.0
  %1083 = vmatpush.msra.mxu0 %v1052
  %1084 = vmatpush.msra.mxu0 %v1050
  %1085 = vmatpush.msra.mxu0 %v1048
  %1086 = vmatpush.msra.mxu0 %v1046
  %1087 = vmatpush.msra.mxu0 %v1044
  %1088 = vmatpush.msra.mxu0 %v1042
  %1089 = vmatpush.msra.mxu0 %v1040
  %1090 = vmatpush.msra.mxu0 %v1038
  %1091 = vmatpush.msra.mxu0 %v1036
  %1092 = vmatpush.msra.mxu0 %v1034
  %1093 = vmatpush.msra.mxu0 %v1032
  %1094 = vmatpush.msra.mxu0 %v1030
  %1095 = vmatpush.msra.mxu0 %v1028
  %1096 = vmatpush.msra.mxu0 %v1026
  %1097 = vmatpush.msra.mxu0 %v1024
  %1098 = vmatmul.f32.gmra.mxu0 %v1054
  %v1099 = vpop.f32.mrf.mxu0
  %v1100 = vadd.f32 0.0, %v1099
  %1101 = vmatmul.f32.gmra.mxu0 %v1057
  %v1102 = vpop.f32.mrf.mxu0
  %v1103 = vadd.f32 0.0, %v1102
  %1104 = vdwg.mxu0
  %v1105 = vadd.f32 %v992, %v1077
  %v1106 = vadd.f32 %v1015, %v1100
  %v1107 = vadd.f32 %v995, %v1080
  %v1108 = vadd.f32 %v1018, %v1103
  %v1109 = vld [vmem:[#allocation2 + $0x3] sm:$0xff]
  %v1110 = vld [vmem:[#allocation2 + $0x13] sm:$0xff]
  %s1111 = scalar_lea.vmem %s4, 720
  %v1112 = vld [vmem:[%s1111] sm:$0xff]
  %v1113 = vld [vmem:[%s1111 + $0x8] sm:$0xff]
  %v1114 = vld [vmem:[%s1111 + $0x10] sm:$0xff]
  %v1115 = vld [vmem:[%s1111 + $0x18] sm:$0xff]
  %v1116 = vld [vmem:[%s1111 + $0x20] sm:$0xff]
  %v1117 = vld [vmem:[%s1111 + $0x28] sm:$0xff]
  %v1118 = vld [vmem:[%s1111 + $0x30] sm:$0xff]
  %v1119 = vld [vmem:[%s1111 + $0x38] sm:$0xff]
  %v1120 = vld [vmem:[%s1111 + $0x40] sm:$0xff]
  %v1121 = vld [vmem:[%s1111 + $0x48] sm:$0xff]
  %v1122 = vld [vmem:[%s1111 + $0x50] sm:$0xff]
  %v1123 = vld [vmem:[%s1111 + $0x58] sm:$0xff]
  %v1124 = vld [vmem:[%s1111 + $0x60] sm:$0xff]
  %v1125 = vld [vmem:[%s1111 + $0x68] sm:$0xff]
  %v1126 = vld [vmem:[%s1111 + $0x70] sm:$0xff]
  %v1127 = vld [vmem:[%s1111 + $0x78] sm:$0xff]
  %v1128 = vld [vmem:[%s1111 + $0x80] sm:$0xff]
  %v1129 = vld [vmem:[%s1111 + $0x88] sm:$0xff]
  %v1130 = vld [vmem:[%s1111 + $0x90] sm:$0xff]
  %v1131 = vld [vmem:[%s1111 + $0x98] sm:$0xff]
  %v1132 = vld [vmem:[%s1111 + $0xa0] sm:$0xff]
  %v1133 = vld [vmem:[%s1111 + $0xa8] sm:$0xff]
  %v1134 = vld [vmem:[%s1111 + $0xb0] sm:$0xff]
  %v1135 = vld [vmem:[%s1111 + $0xb8] sm:$0xff]
  %v1136 = vld [vmem:[%s1111 + $0xc0] sm:$0xff]
  %v1137 = vld [vmem:[%s1111 + $0xc8] sm:$0xff]
  %v1138 = vld [vmem:[%s1111 + $0xd0] sm:$0xff]
  %v1139 = vld [vmem:[%s1111 + $0xd8] sm:$0xff]
  %v1140 = vld [vmem:[%s1111 + $0xe0] sm:$0xff]
  %v1141 = vld [vmem:[%s1111 + $0xe8] sm:$0xff]
  %v1143 = vsel %vm845, %v1109, 0
  %v1146 = vsel %vm845, %v1110, 0
  %1148 = vmatpush.msra.mxu0 0.0
  %1149 = vmatpush.msra.mxu0 %v1140
  %1150 = vmatpush.msra.mxu0 %v1138
  %1151 = vmatpush.msra.mxu0 %v1136
  %1152 = vmatpush.msra.mxu0 %v1134
  %1153 = vmatpush.msra.mxu0 %v1132
  %1154 = vmatpush.msra.mxu0 %v1130
  %1155 = vmatpush.msra.mxu0 %v1128
  %1156 = vmatpush.msra.mxu0 %v1126
  %1157 = vmatpush.msra.mxu0 %v1124
  %1158 = vmatpush.msra.mxu0 %v1122
  %1159 = vmatpush.msra.mxu0 %v1120
  %1160 = vmatpush.msra.mxu0 %v1118
  %1161 = vmatpush.msra.mxu0 %v1116
  %1162 = vmatpush.msra.mxu0 %v1114
  %1163 = vmatpush.msra.mxu0 %v1112
  %1164 = vmatmul.f32.gmra.mxu0 %v1143
  %v1165 = vpop.f32.mrf.mxu0
  %v1166 = vadd.f32 0.0, %v1165
  %1167 = vmatmul.f32.gmra.mxu0 %v1146
  %v1168 = vpop.f32.mrf.mxu0
  %v1169 = vadd.f32 0.0, %v1168
  %1170 = vdwg.mxu0
  %1171 = vmatpush.msra.mxu0 0.0
  %1172 = vmatpush.msra.mxu0 %v1141
  %1173 = vmatpush.msra.mxu0 %v1139
  %1174 = vmatpush.msra.mxu0 %v1137
  %1175 = vmatpush.msra.mxu0 %v1135
  %1176 = vmatpush.msra.mxu0 %v1133
  %1177 = vmatpush.msra.mxu0 %v1131
  %1178 = vmatpush.msra.mxu0 %v1129
  %1179 = vmatpush.msra.mxu0 %v1127
  %1180 = vmatpush.msra.mxu0 %v1125
  %1181 = vmatpush.msra.mxu0 %v1123
  %1182 = vmatpush.msra.mxu0 %v1121
  %1183 = vmatpush.msra.mxu0 %v1119
  %1184 = vmatpush.msra.mxu0 %v1117
  %1185 = vmatpush.msra.mxu0 %v1115
  %1186 = vmatpush.msra.mxu0 %v1113
  %1187 = vmatmul.f32.gmra.mxu0 %v1143
  %v1188 = vpop.f32.mrf.mxu0
  %v1189 = vadd.f32 0.0, %v1188
  %1190 = vmatmul.f32.gmra.mxu0 %v1146
  %v1191 = vpop.f32.mrf.mxu0
  %v1192 = vadd.f32 0.0, %v1191
  %1193 = vdwg.mxu0
  %v1194 = vadd.f32 %v1105, %v1166
  %v1195 = vadd.f32 %v1106, %v1189
  %v1196 = vadd.f32 %v1107, %v1169
  %v1197 = vadd.f32 %v1108, %v1192
  %v1198 = vld [vmem:[#allocation2 + $0x4] sm:$0xff]
  %v1199 = vld [vmem:[#allocation2 + $0x14] sm:$0xff]
  %s1200 = scalar_lea.vmem %s4, 960
  %v1201 = vld [vmem:[%s1200] sm:$0xff]
  %v1202 = vld [vmem:[%s1200 + $0x8] sm:$0xff]
  %v1203 = vld [vmem:[%s1200 + $0x10] sm:$0xff]
  %v1204 = vld [vmem:[%s1200 + $0x18] sm:$0xff]
  %v1205 = vld [vmem:[%s1200 + $0x20] sm:$0xff]
  %v1206 = vld [vmem:[%s1200 + $0x28] sm:$0xff]
  %v1207 = vld [vmem:[%s1200 + $0x30] sm:$0xff]
  %v1208 = vld [vmem:[%s1200 + $0x38] sm:$0xff]
  %v1209 = vld [vmem:[%s1200 + $0x40] sm:$0xff]
  %v1210 = vld [vmem:[%s1200 + $0x48] sm:$0xff]
  %v1211 = vld [vmem:[%s1200 + $0x50] sm:$0xff]
  %v1212 = vld [vmem:[%s1200 + $0x58] sm:$0xff]
  %v1213 = vld [vmem:[%s1200 + $0x60] sm:$0xff]
  %v1214 = vld [vmem:[%s1200 + $0x68] sm:$0xff]
  %v1215 = vld [vmem:[%s1200 + $0x70] sm:$0xff]
  %v1216 = vld [vmem:[%s1200 + $0x78] sm:$0xff]
  %v1217 = vld [vmem:[%s1200 + $0x80] sm:$0xff]
  %v1218 = vld [vmem:[%s1200 + $0x88] sm:$0xff]
  %v1219 = vld [vmem:[%s1200 + $0x90] sm:$0xff]
  %v1220 = vld [vmem:[%s1200 + $0x98] sm:$0xff]
  %v1221 = vld [vmem:[%s1200 + $0xa0] sm:$0xff]
  %v1222 = vld [vmem:[%s1200 + $0xa8] sm:$0xff]
  %v1223 = vld [vmem:[%s1200 + $0xb0] sm:$0xff]
  %v1224 = vld [vmem:[%s1200 + $0xb8] sm:$0xff]
  %v1225 = vld [vmem:[%s1200 + $0xc0] sm:$0xff]
  %v1226 = vld [vmem:[%s1200 + $0xc8] sm:$0xff]
  %v1227 = vld [vmem:[%s1200 + $0xd0] sm:$0xff]
  %v1228 = vld [vmem:[%s1200 + $0xd8] sm:$0xff]
  %v1229 = vld [vmem:[%s1200 + $0xe0] sm:$0xff]
  %v1230 = vld [vmem:[%s1200 + $0xe8] sm:$0xff]
  %v1232 = vsel %vm845, %v1198, 0
  %v1235 = vsel %vm845, %v1199, 0
  %1237 = vmatpush.msra.mxu0 0.0
  %1238 = vmatpush.msra.mxu0 %v1229
  %1239 = vmatpush.msra.mxu0 %v1227
  %1240 = vmatpush.msra.mxu0 %v1225
  %1241 = vmatpush.msra.mxu0 %v1223
  %1242 = vmatpush.msra.mxu0 %v1221
  %1243 = vmatpush.msra.mxu0 %v1219
  %1244 = vmatpush.msra.mxu0 %v1217
  %1245 = vmatpush.msra.mxu0 %v1215
  %1246 = vmatpush.msra.mxu0 %v1213
  %1247 = vmatpush.msra.mxu0 %v1211
  %1248 = vmatpush.msra.mxu0 %v1209
  %1249 = vmatpush.msra.mxu0 %v1207
  %1250 = vmatpush.msra.mxu0 %v1205
  %1251 = vmatpush.msra.mxu0 %v1203
  %1252 = vmatpush.msra.mxu0 %v1201
  %1253 = vmatmul.f32.gmra.mxu0 %v1232
  %v1254 = vpop.f32.mrf.mxu0
  %v1255 = vadd.f32 0.0, %v1254
  %1256 = vmatmul.f32.gmra.mxu0 %v1235
  %v1257 = vpop.f32.mrf.mxu0
  %v1258 = vadd.f32 0.0, %v1257
  %1259 = vdwg.mxu0
  %1260 = vmatpush.msra.mxu0 0.0
  %1261 = vmatpush.msra.mxu0 %v1230
  %1262 = vmatpush.msra.mxu0 %v1228
  %1263 = vmatpush.msra.mxu0 %v1226
  %1264 = vmatpush.msra.mxu0 %v1224
  %1265 = vmatpush.msra.mxu0 %v1222
  %1266 = vmatpush.msra.mxu0 %v1220
  %1267 = vmatpush.msra.mxu0 %v1218
  %1268 = vmatpush.msra.mxu0 %v1216
  %1269 = vmatpush.msra.mxu0 %v1214
  %1270 = vmatpush.msra.mxu0 %v1212
  %1271 = vmatpush.msra.mxu0 %v1210
  %1272 = vmatpush.msra.mxu0 %v1208
  %1273 = vmatpush.msra.mxu0 %v1206
  %1274 = vmatpush.msra.mxu0 %v1204
  %1275 = vmatpush.msra.mxu0 %v1202
  %1276 = vmatmul.f32.gmra.mxu0 %v1232
  %v1277 = vpop.f32.mrf.mxu0
  %v1278 = vadd.f32 0.0, %v1277
  %1279 = vmatmul.f32.gmra.mxu0 %v1235
  %v1280 = vpop.f32.mrf.mxu0
  %v1281 = vadd.f32 0.0, %v1280
  %1282 = vdwg.mxu0
  %v1283 = vadd.f32 %v1194, %v1255
  %v1284 = vadd.f32 %v1195, %v1278
  %v1285 = vadd.f32 %v1196, %v1258
  %v1286 = vadd.f32 %v1197, %v1281
  %v1287 = vld [vmem:[%s5] sm:$0x3]
  %v1289 = vperm.slane %v1287, 0
  %v1290 = vperm.slane %v1287, 1
  %v1293 = vadd.f32 %v1283, %v1289
  %v1294 = vadd.f32 %v1284, %v1290
  %v1295 = vadd.f32 %v1285, %v1289
  %v1296 = vadd.f32 %v1286, %v1290
  %1297 = vst [vmem:[%s6] sm:$0xff] %v1293
  %vm1298 = vcmask 261120
  %1299 = vst.msk [vmem:[%s6 + $0x8] sm:$0xff] %vm1298, %v1294
  %1300 = vst [vmem:[%s6 + $0x10] sm:$0xff] %v1295
  %1301 = vst.msk [vmem:[%s6 + $0x18] sm:$0xff] %vm1298, %v1296
  %v1302 = vadd.f32 %v1293, %v1295
  %v1303 = vrot.slane %v1302, 4
  %v1304 = vadd.f32 %v1302, %v1303
  %v1305 = vrot.slane %v1304, 2
  %v1306 = vadd.f32 %v1304, %v1305
  %v1307 = vrot.slane %v1306, 1
  %v1308 = vadd.f32 %v1306, %v1307
  %v1309 = vsel %vm1298, %v1294, 0.0
  %v1310 = vsel %vm1298, %v1296, 0.0
  %v1311 = vadd.f32 %v1309, %v1310
  %v1312 = vrot.slane %v1311, 4
  %v1313 = vadd.f32 %v1311, %v1312
  %v1314 = vrot.slane %v1313, 2
  %v1315 = vadd.f32 %v1313, %v1314
  %v1316 = vrot.slane %v1315, 1
  %v1317 = vadd.f32 %v1315, %v1316
  %v1320 = vrot.slane %v1317, 7
  %vm1321 = vcmask 1040384
  %v1322 = vsel %vm1321, %v1308, %v1320
  %v1324 = vlaneseq
  %vm1325 = vcmp.ge.s32.totalorder %v1324, 0
  %vm1326 = vcmp.lt.s32.totalorder %v1324, 160
  %vm1327 = vmand %vm1325, %vm1326
  %1328 = vst.msk [vmem:[%s7] ss:$2 sm:$0x3] %vm1327, %v1322
  %v1329 = vmul.f32 %v1293, %v1293
  %v1330 = vmul.f32 %v1294, %v1294
  %v1331 = vmul.f32 %v1295, %v1295
  %v1332 = vmul.f32 %v1296, %v1296
  %v1333 = vadd.f32 %v1329, %v1331
  %v1334 = vrot.slane %v1333, 4
  %v1335 = vadd.f32 %v1333, %v1334
  %v1336 = vrot.slane %v1335, 2
  %v1337 = vadd.f32 %v1335, %v1336
  %v1338 = vrot.slane %v1337, 1
  %v1339 = vadd.f32 %v1337, %v1338
  %v1340 = vsel %vm1298, %v1330, 0.0
  %v1341 = vsel %vm1298, %v1332, 0.0
  %v1342 = vadd.f32 %v1340, %v1341
  %v1343 = vrot.slane %v1342, 4
  %v1344 = vadd.f32 %v1342, %v1343
  %v1345 = vrot.slane %v1344, 2
  %v1346 = vadd.f32 %v1344, %v1345
  %v1347 = vrot.slane %v1346, 1
  %v1348 = vadd.f32 %v1346, %v1347
  %v1351 = vrot.slane %v1348, 7
  %v1352 = vsel %vm1321, %v1339, %v1351
  %s1354 = scalar_lea.vmem %s7, 1
  %1355 = vst.msk [vmem:[%s1354] ss:$2 sm:$0x3] %vm1327, %v1352
  // Predicated region
  $region26: #{forward.3} parent=0 // pred_check
    _
  $region27: #{forward.3} parent=0 // pred_check_branch
    %1357 = sbr.rel (0) target = $region29
  $region28: #{forward.3} parent=0 // pred_region
    _
  $region29: #{forward.3} parent=0 // pred_fallthru
    _
  // Predicated region
  $region30: #{forward.3} parent=0 // pred_check
    _
  $region31: #{forward.3} parent=0 // pred_check_branch
    %1359 = sbr.rel (0) target = $region33
  $region32: #{forward.3} parent=0 // pred_region
    _
  $region33: #{forward.3} parent=0 // pred_fallthru
    _
  // Predicated region
  $region34: #{forward.3} parent=0 // pred_check
    _
  $region35: #{forward.3} parent=0 // pred_check_branch
    %1361 = sbr.rel (0) target = $region37
  $region36: #{forward.3} parent=0 // pred_region
    _
  $region37: #{forward.3} parent=0 // pred_fallthru
    _
  // Predicated region
  $region38: #{forward.3} parent=0 // pred_check
    _
  $region39: #{forward.3} parent=0 // pred_check_branch
    %1363 = sbr.rel (0) target = $region41
  $region40: #{forward.3} parent=0 // pred_region
    _
  $region41: #{forward.3} parent=0 // pred_fallthru
    _

</llo_original>
